<compile_context>
chip_gen: v6e
topology: v6e:2x2x1
jax: 0.10.0
libtpu: 0.0.40
codegen_flags: <defaults>
</compile_context>

<pallas_src>
import functools
import math

import jax
import jax.numpy as jnp
from jax.experimental import pallas as pl
from jax.experimental.pallas import tpu as pltpu


_VMEM_LIMIT = 32 * 1024 * 1024  # safe on v5e/v6e/v7x; far above our tile needs


def _round_up(x, m):
    return ((x + m - 1) // m) * m


def _choose_tile(dim, max_tile):
    """Return (tile, padded_dim). Full-dim blocks are always layout-legal."""
    if dim <= max_tile:
        return dim, dim
    return max_tile, _round_up(dim, max_tile)


# ----------------------------------------------------------------------------
# Tiled matmul kernel (bias + optional ReLU), bf16 in / f32 accumulate
# ----------------------------------------------------------------------------
def _matmul_kernel(x_ref, w_ref, b_ref, o_ref, acc_ref, *, relu):
    @pl.when(pl.program_id(2) == 0)
    def _init():
        acc_ref[...] = jnp.zeros_like(acc_ref)

    acc_ref[...] += jnp.dot(x_ref[...], w_ref[...],
                            preferred_element_type=jnp.float32)

    @pl.when(pl.program_id(2) == pl.num_programs(2) - 1)
    def _finalize():
        y = acc_ref[...] + b_ref[...]
        if relu:
            y = jnp.maximum(y, 0.0)
        o_ref[...] = y.astype(o_ref.dtype)


def linear(x2d, w, b, relu=False, out_dtype=jnp.float32,
           max_tm=256, max_tn=256, max_tk=512):
    """(M, K) @ (K, N) + (N,) -> (M, N); tiled, double-buffered, bf16 MXU."""
    M, K = x2d.shape
    N = w.shape[1]

    tm, Mp = _choose_tile(M, max_tm)
    tk, Kp = _choose_tile(K, max_tk)
    tn, Np = _choose_tile(N, max_tn)

    xb = x2d.astype(jnp.bfloat16)
    wb = w.astype(jnp.bfloat16)
    bb = b.astype(jnp.float32)
    if (Mp, Kp) != (M, K):
        xb = jnp.pad(xb, ((0, Mp - M), (0, Kp - K)))
    if (Kp, Np) != (K, N):
        wb = jnp.pad(wb, ((0, Kp - K), (0, Np - N)))
    if Np != N:
        bb = jnp.pad(bb, (0, Np - N))
    bb = bb.reshape(1, Np)

    out = pl.pallas_call(
        functools.partial(_matmul_kernel, relu=relu),
        out_shape=jax.ShapeDtypeStruct((Mp, Np), out_dtype),
        grid_spec=pltpu.PrefetchScalarGridSpec(
            num_scalar_prefetch=0,
            grid=(Mp // tm, Np // tn, Kp // tk),
            in_specs=[
                pl.BlockSpec((tm, tk), lambda i, j, k: (i, k)),
                pl.BlockSpec((tk, tn), lambda i, j, k: (k, j)),
                pl.BlockSpec((1, tn), lambda i, j, k: (0, j)),
            ],
            out_specs=pl.BlockSpec((tm, tn), lambda i, j, k: (i, j)),
            scratch_shapes=[pltpu.VMEM((tm, tn), jnp.float32)],
        ),
        compiler_params=pltpu.CompilerParams(
            dimension_semantics=("parallel", "parallel", "arbitrary"),
            vmem_limit_bytes=_VMEM_LIMIT,
        ),
    )(xb, wb, bb)

    if (Mp, Np) != (M, N):
        out = out[:M, :N]
    return out


# ----------------------------------------------------------------------------
# Fused residual add + layernorm kernel (f32 math)
# ----------------------------------------------------------------------------
def _add_ln_kernel(x_ref, s_ref, g_ref, b_ref, o_ref, *, eps):
    x = x_ref[...] + s_ref[...]
    mu = jnp.mean(x, axis=-1, keepdims=True)
    var = jnp.mean(jnp.square(x - mu), axis=-1, keepdims=True)
    y = (x - mu) * jax.lax.rsqrt(var + eps) * g_ref[...] + b_ref[...]
    o_ref[...] = y.astype(o_ref.dtype)


def add_layernorm(x2d, sub2d, gamma, beta, eps=1e-5, max_tm=512):
    M, D = x2d.shape
    tm, Mp = _choose_tile(M, max_tm)
    if Mp != M:
        x2d = jnp.pad(x2d, ((0, Mp - M), (0, 0)))
        sub2d = jnp.pad(sub2d, ((0, Mp - M), (0, 0)))

    out = pl.pallas_call(
        functools.partial(_add_ln_kernel, eps=eps),
        out_shape=jax.ShapeDtypeStruct((Mp, D), jnp.float32),
        grid=(Mp // tm,),
        in_specs=[
            pl.BlockSpec((tm, D), lambda i: (i, 0)),
            pl.BlockSpec((tm, D), lambda i: (i, 0)),
            pl.BlockSpec((1, D), lambda i: (0, 0)),
            pl.BlockSpec((1, D), lambda i: (0, 0)),
        ],
        out_specs=pl.BlockSpec((tm, D), lambda i: (i, 0)),
        compiler_params=pltpu.CompilerParams(
            dimension_semantics=("parallel",)),
    )(x2d, sub2d, gamma.reshape(1, D), beta.reshape(1, D))

    return out[:M] if Mp != M else out


# ----------------------------------------------------------------------------
# Fused multi-head attention kernel (heads folded in the lane dim)
# ----------------------------------------------------------------------------
def _mha_kernel(q_ref, k_ref, v_ref, o_ref, *, num_heads, head_dim, scale, causal):
    q = q_ref[...]          # (Sq, D) bf16
    k = k_ref[...]          # (Sk, D) bf16
    v = v_ref[...]          # (Sk, D) bf16
    sq, sk = q.shape[0], k.shape[0]

    if causal:
        qi = jax.lax.broadcasted_iota(jnp.int32, (sq, sk), 0)
        ki = jax.lax.broadcasted_iota(jnp.int32, (sq, sk), 1)
        allow = qi >= ki

    outs = []
    for h in range(num_heads):
        lo = h * head_dim
        hi = lo + head_dim
        qh = q[:, lo:hi]
        kh = k[:, lo:hi]
        vh = v[:, lo:hi]
        # q . k^T via dot_general contracting dims (no explicit transpose)
        s = jax.lax.dot_general(
            qh, kh, (((1,), (1,)), ((), ())),
            preferred_element_type=jnp.float32) * scale
        if causal:
            s = jnp.where(allow, s, -1e30)
        m = jnp.max(s, axis=-1, keepdims=True)
        p = jnp.exp(s - m)
        denom = jnp.sum(p, axis=-1, keepdims=True)
        p = p * pl.reciprocal(denom, approx=True)
        outs.append(jnp.dot(p.astype(v.dtype), vh,
                            preferred_element_type=jnp.float32))

    # Single lane-dense store of all heads.
    o_ref[...] = jnp.concatenate(outs, axis=-1).astype(o_ref.dtype)


def mha_attention(q, k, v, num_heads, causal):
    """q: [B,Sq,D] bf16, k/v: [B,Sk,D] bf16 -> [B,Sq,D] bf16."""
    # TODO(synk): for long sequences switch to a flash-style tiled online
    # softmax (grid over Sq/Sk blocks) instead of materializing (Sq, Sk).
    B, Sq, D = q.shape
    Sk = k.shape[1]
    head_dim = D // num_heads
    scale = 1.0 / math.sqrt(head_dim)
    return pl.pallas_call(
        functools.partial(_mha_kernel, num_heads=num_heads, head_dim=head_dim,
                          scale=scale, causal=causal),
        out_shape=jax.ShapeDtypeStruct((B, Sq, D), jnp.bfloat16),
        grid=(B,),
        in_specs=[
            pl.BlockSpec((None, Sq, D), lambda b: (b, 0, 0)),
            pl.BlockSpec((None, Sk, D), lambda b: (b, 0, 0)),
            pl.BlockSpec((None, Sk, D), lambda b: (b, 0, 0)),
        ],
        out_specs=pl.BlockSpec((None, Sq, D), lambda b: (b, 0, 0)),
        compiler_params=pltpu.CompilerParams(
            dimension_semantics=("parallel",)),
    )(q, k, v)


# ----------------------------------------------------------------------------
# Transformer building blocks (compose the Pallas kernels)
# ----------------------------------------------------------------------------
def self_attention(x, p, num_heads, causal):
    B, S, D = x.shape
    # Fused QKV projection: one matmul with a [D, 3D] weight.
    qkv = linear(x.reshape(B * S, D), p["wqkv"], p["bqkv"],
                 out_dtype=jnp.bfloat16).reshape(B, S, 3 * D)
    q = qkv[..., :D]
    k = qkv[..., D:2 * D]
    v = qkv[..., 2 * D:]
    o = mha_attention(q, k, v, num_heads, causal)
    o = linear(o.reshape(B * S, D), p["wo"], p["bo"])
    return o.reshape(B, S, D)


def cross_attention(x_q, memory, p, num_heads):
    B, Sq, D = x_q.shape
    Sk = memory.shape[1]
    q = linear(x_q.reshape(B * Sq, D), p["wq"], p["bq"],
               out_dtype=jnp.bfloat16).reshape(B, Sq, D)
    # Fused K/V projection from the encoder memory.
    kv = linear(memory.reshape(B * Sk, D), p["wkv"], p["bkv"],
                out_dtype=jnp.bfloat16).reshape(B, Sk, 2 * D)
    k = kv[..., :D]
    v = kv[..., D:]
    o = mha_attention(q, k, v, num_heads, causal=False)
    o = linear(o.reshape(B * Sq, D), p["wo"], p["bo"])
    return o.reshape(B, Sq, D)


def feed_forward(x, p):
    B, S, D = x.shape
    h = linear(x.reshape(B * S, D), p["w1"], p["b1"], relu=True,
               out_dtype=jnp.bfloat16)
    o = linear(h, p["w2"], p["b2"])
    return o.reshape(B, S, D)


def add_and_norm(x, sub, p):
    B, S, D = x.shape
    y = add_layernorm(x.reshape(B * S, D), sub.reshape(B * S, D),
                      p["gamma"], p["beta"])
    return y.reshape(B, S, D)


def encoder_layer(x, p, num_heads):
    a = self_attention(x, p["self_attn"], num_heads, causal=False)
    x = add_and_norm(x, a, p["ln1"])
    f = feed_forward(x, p["ffn"])
    x = add_and_norm(x, f, p["ln2"])
    return x


def decoder_layer(x, memory, p, num_heads):
    a = self_attention(x, p["self_attn"], num_heads, causal=True)
    x = add_and_norm(x, a, p["ln1"])
    c = cross_attention(x, memory, p["cross_attn"], num_heads)
    x = add_and_norm(x, c, p["ln2"])
    f = feed_forward(x, p["ffn"])
    x = add_and_norm(x, f, p["ln3"])
    return x


def positional_encoding(seq_len, d_model):
    pos = jnp.arange(seq_len, dtype=jnp.float32)[:, None]
    i = jnp.arange(d_model // 2, dtype=jnp.float32)[None, :]
    angle = pos / jnp.power(10000.0, (2.0 * i) / d_model)
    pe = jnp.zeros((seq_len, d_model), jnp.float32)
    pe = pe.at[:, 0::2].set(jnp.sin(angle))
    pe = pe.at[:, 1::2].set(jnp.cos(angle))
    return pe


def embed(tokens, table, d_model):
    return jnp.take(table, tokens, axis=0) * math.sqrt(d_model) + \
        positional_encoding(tokens.shape[1], d_model)[None, :, :]


def transformer_forward(target, source, params, cfg):
    D, H = cfg["d_model"], cfg["num_heads"]
    S_tgt = target.shape[1]

    # Encoder
    x = embed(source, params["src_embed"], D)
    for lp in params["enc_layers"]:
        x = encoder_layer(x, lp, H)
    memory = x

    # Decoder (masked self-attn uses an in-kernel causal mask)
    y = embed(target, params["tgt_embed"], D)
    for lp in params["dec_layers"]:
        y = decoder_layer(y, memory, lp, H)

    # Final projection to target vocab (logits)
    B = y.shape[0]
    logits = linear(y.reshape(B * S_tgt, D), params["out_w"], params["out_b"])
    return logits.reshape(B, S_tgt, -1)


# ----------------------------------------------------------------------------
# Deterministic parameter construction
# ----------------------------------------------------------------------------
def _dense(key, din, dout, scale=0.02):
    return (scale * jax.random.normal(key, (din, dout), jnp.float32),
            jnp.zeros((dout,), jnp.float32))


def _self_attn_params(key, d):
    k1, k2 = jax.random.split(key)
    wqkv, bqkv = _dense(k1, d, 3 * d)     # fused Q/K/V projection
    wo, bo = _dense(k2, d, d)
    return dict(wqkv=wqkv, bqkv=bqkv, wo=wo, bo=bo)


def _cross_attn_params(key, d):
    k1, k2, k3 = jax.random.split(key, 3)
    wq, bq = _dense(k1, d, d)
    wkv, bkv = _dense(k2, d, 2 * d)       # fused K/V projection
    wo, bo = _dense(k3, d, d)
    return dict(wq=wq, bq=bq, wkv=wkv, bkv=bkv, wo=wo, bo=bo)


def _ffn_params(key, d, dff):
    k1, k2 = jax.random.split(key)
    w1, b1 = _dense(k1, d, dff)
    w2, b2 = _dense(k2, dff, d)
    return dict(w1=w1, b1=b1, w2=w2, b2=b2)


def _ln_params(d):
    return dict(gamma=jnp.ones((d,), jnp.float32), beta=jnp.zeros((d,), jnp.float32))


def make_params(key, cfg):
    d, dff = cfg["d_model"], cfg["d_ff"]
    keys = jax.random.split(key, 8)
    enc_layers = []
    for i in range(cfg["num_encoder_layers"]):
        k = jax.random.fold_in(keys[0], i)
        ka, kf = jax.random.split(k)
        enc_layers.append(dict(self_attn=_self_attn_params(ka, d),
                               ffn=_ffn_params(kf, d, dff),
                               ln1=_ln_params(d), ln2=_ln_params(d)))
    dec_layers = []
    for i in range(cfg["num_decoder_layers"]):
        k = jax.random.fold_in(keys[1], i)
        ka, kc, kf = jax.random.split(k, 3)
        dec_layers.append(dict(self_attn=_self_attn_params(ka, d),
                               cross_attn=_cross_attn_params(kc, d),
                               ffn=_ffn_params(kf, d, dff),
                               ln1=_ln_params(d), ln2=_ln_params(d),
                               ln3=_ln_params(d)))
    src_embed = 0.02 * jax.random.normal(keys[2], (cfg["src_vocab"], d), jnp.float32)
    tgt_embed = 0.02 * jax.random.normal(keys[3], (cfg["tgt_vocab"], d), jnp.float32)
    out_w, out_b = _dense(keys[4], d, cfg["tgt_vocab"])
    return dict(enc_layers=enc_layers, dec_layers=dec_layers,
                src_embed=src_embed, tgt_embed=tgt_embed,
                out_w=out_w, out_b=out_b)


# ----------------------------------------------------------------------------
if __name__ == "__main__":
    cfg = dict(
        num_encoder_layers=2,
        num_decoder_layers=2,
        num_heads=4,
        d_model=32,
        d_ff=64,
        src_vocab=50,
        tgt_vocab=60,
    )

    key = jax.random.PRNGKey(0)
    kp, ks, kt = jax.random.split(key, 3)
    params = make_params(kp, cfg)

    B, S_src, S_tgt = 2, 10, 8
    source = jax.random.randint(ks, (B, S_src), 0, cfg["src_vocab"], jnp.int32)
    target = jax.random.randint(kt, (B, S_tgt), 0, cfg["tgt_vocab"], jnp.int32)

    forward = jax.jit(lambda tgt, src, prm: transformer_forward(tgt, src, prm, cfg))
    logits = forward(target, source, params)
    logits = jax.block_until_ready(logits)

    assert logits.shape == (B, S_tgt, cfg["tgt_vocab"])
    assert bool(jnp.all(jnp.isfinite(logits)))
    print("KERNEL_OK")
</pallas_src>

<mosaic_0001>
module attributes {stable_mosaic.version = 11 : i64} {
  func.func @_matmul_kernel(%arg0: i32, %arg1: i32, %arg2: i32, %arg3: memref<16x32xbf16, #tpu.memory_space<vmem>>, %arg4: memref<32x96xbf16, #tpu.memory_space<vmem>>, %arg5: memref<1x96xf32, #tpu.memory_space<vmem>>, %arg6: memref<16x96xbf16, #tpu.memory_space<vmem>>, %arg7: memref<16x96xf32, #tpu.memory_space<vmem>>) attributes {dimension_semantics = [#tpu.dimension_semantics<parallel>, #tpu.dimension_semantics<parallel>, #tpu.dimension_semantics<arbitrary>], iteration_bounds = array<i64: 1, 1, 1>, scalar_prefetch = 0 : i64, scratch_operands = 1 : i64, tpu.core_type = #tpu.core_type<tc>, window_params = [{transform_indices = @transform_0, window_bounds = array<i64: 16, 32>}, {transform_indices = @transform_1, window_bounds = array<i64: 32, 96>}, {transform_indices = @transform_2, window_bounds = array<i64: 1, 96>}, {transform_indices = @transform_3, window_bounds = array<i64: 16, 96>}]} {
    %c0_i32 = arith.constant 0 : i32
    %0 = arith.cmpi eq, %arg2, %c0_i32 : i32
    %1 = arith.extui %0 : i1 to i32
    %c0_i32_0 = arith.constant 0 : i32
    %2 = arith.cmpi ne, %1, %c0_i32_0 : i32
    scf.if %2 {
      %cst_10 = arith.constant 0.000000e+00 : f32
      %12 = vector.broadcast %cst_10 : f32 to vector<16x96xf32>
      %c0_11 = arith.constant 0 : index
      %c0_12 = arith.constant 0 : index
      %13 = vector.load %arg7[%c0_11, %c0_12] : memref<16x96xf32, #tpu.memory_space<vmem>>, vector<16x96xf32>
      tpu.vector_store %arg7[%c0_11, %c0_12], %12 {strides = array<i32>} : memref<16x96xf32, #tpu.memory_space<vmem>>, vector<16x96xf32>,
    } else {
    }
    %c0 = arith.constant 0 : index
    %c0_1 = arith.constant 0 : index
    %3 = vector.load %arg7[%c0, %c0_1] : memref<16x96xf32, #tpu.memory_space<vmem>>, vector<16x96xf32>
    %c0_2 = arith.constant 0 : index
    %c0_3 = arith.constant 0 : index
    %4 = vector.load %arg3[%c0_2, %c0_3] : memref<16x32xbf16, #tpu.memory_space<vmem>>, vector<16x32xbf16>
    %c0_4 = arith.constant 0 : index
    %c0_5 = arith.constant 0 : index
    %5 = vector.load %arg4[%c0_4, %c0_5] : memref<32x96xbf16, #tpu.memory_space<vmem>>, vector<32x96xbf16>
    %cst = arith.constant dense<0.000000e+00> : vector<16x96xf32>
    %6 = tpu.matmul %4, %5, %cst {dimension_numbers = #tpu.dot_dimension_numbers<[1], [0], [0], [1], [0, 0, 1, 1], [], []>} : vector<16x32xbf16>, vector<32x96xbf16>, vector<16x96xf32> -> vector<16x96xf32>
    %7 = arith.addf %3, %6 : vector<16x96xf32>
    %c0_6 = arith.constant 0 : index
    %c0_7 = arith.constant 0 : index
    %8 = vector.load %arg7[%c0_6, %c0_7] : memref<16x96xf32, #tpu.memory_space<vmem>>, vector<16x96xf32>
    tpu.vector_store %arg7[%c0_6, %c0_7], %7 {strides = array<i32>} : memref<16x96xf32, #tpu.memory_space<vmem>>, vector<16x96xf32>,
    %c0_i32_8 = arith.constant 0 : i32
    %9 = arith.cmpi eq, %arg2, %c0_i32_8 : i32
    %10 = arith.extui %9 : i1 to i32
    %c0_i32_9 = arith.constant 0 : i32
    %11 = arith.cmpi ne, %10, %c0_i32_9 : i32
    scf.if %11 {
      %c0_10 = arith.constant 0 : index
      %c0_11 = arith.constant 0 : index
      %12 = vector.load %arg7[%c0_10, %c0_11] : memref<16x96xf32, #tpu.memory_space<vmem>>, vector<16x96xf32>
      %c0_12 = arith.constant 0 : index
      %c0_13 = arith.constant 0 : index
      %13 = vector.load %arg5[%c0_12, %c0_13] : memref<1x96xf32, #tpu.memory_space<vmem>>, vector<1x96xf32>
      %14 = vector.broadcast %13 : vector<1x96xf32> to vector<16x96xf32>
      %15 = arith.addf %12, %14 : vector<16x96xf32>
      %16 = arith.truncf %15 : vector<16x96xf32> to vector<16x96xbf16>
      %c0_14 = arith.constant 0 : index
      %c0_15 = arith.constant 0 : index
      %17 = vector.load %arg6[%c0_14, %c0_15] : memref<16x96xbf16, #tpu.memory_space<vmem>>, vector<16x96xbf16>
      tpu.vector_store %arg6[%c0_14, %c0_15], %16 {strides = array<i32>} : memref<16x96xbf16, #tpu.memory_space<vmem>>, vector<16x96xbf16>,
    } else {
    }
    return
  }
  func.func @transform_0(%arg0: i32, %arg1: i32, %arg2: i32) -> (i32, i32) {
    %c0_i32 = arith.constant 0 : i32
    return %arg0, %arg2 : i32, i32
  }
  func.func @transform_1(%arg0: i32, %arg1: i32, %arg2: i32) -> (i32, i32) {
    %c0_i32 = arith.constant 0 : i32
    return %arg2, %arg1 : i32, i32
  }
  func.func @transform_2(%arg0: i32, %arg1: i32, %arg2: i32) -> (i32, i32) {
    %c0_i32 = arith.constant 0 : i32
    %c0_i32_0 = arith.constant 0 : i32
    return %c0_i32, %arg1 : i32, i32
  }
  func.func @transform_3(%arg0: i32, %arg1: i32, %arg2: i32) -> (i32, i32) {
    %c0_i32 = arith.constant 0 : i32
    return %arg0, %arg1 : i32, i32
  }
}

module attributes {stable_mosaic.version = 11 : i64} {
  func.func @_mha_kernel(%arg0: i32, %arg1: memref<1x8x32xbf16, #tpu.memory_space<vmem>>, %arg2: memref<1x8x32xbf16, #tpu.memory_space<vmem>>, %arg3: memref<1x8x32xbf16, #tpu.memory_space<vmem>>, %arg4: memref<1x8x32xbf16, #tpu.memory_space<vmem>>) attributes {dimension_semantics = [#tpu.dimension_semantics<parallel>], iteration_bounds = array<i64: 2>, scalar_prefetch = 0 : i64, scratch_operands = 0 : i64, tpu.core_type = #tpu.core_type<tc>, window_params = [{transform_indices = @transform_0, window_bounds = array<i64: 1, 8, 32>}, {transform_indices = @transform_1, window_bounds = array<i64: 1, 8, 32>}, {transform_indices = @transform_2, window_bounds = array<i64: 1, 8, 32>}, {transform_indices = @transform_3, window_bounds = array<i64: 1, 8, 32>}]} {
    %c0 = arith.constant 0 : index
    %c0_0 = arith.constant 0 : index
    %c0_1 = arith.constant 0 : index
    %0 = vector.load %arg1[%c0, %c0_0, %c0_1] : memref<1x8x32xbf16, #tpu.memory_space<vmem>>, vector<1x8x32xbf16>
    %1 = vector.shape_cast %0 : vector<1x8x32xbf16> to vector<8x32xbf16>
    %c0_2 = arith.constant 0 : index
    %c0_3 = arith.constant 0 : index
    %c0_4 = arith.constant 0 : index
    %2 = vector.load %arg2[%c0_2, %c0_3, %c0_4] : memref<1x8x32xbf16, #tpu.memory_space<vmem>>, vector<1x8x32xbf16>
    %3 = vector.shape_cast %2 : vector<1x8x32xbf16> to vector<8x32xbf16>
    %c0_5 = arith.constant 0 : index
    %c0_6 = arith.constant 0 : index
    %c0_7 = arith.constant 0 : index
    %4 = vector.load %arg3[%c0_5, %c0_6, %c0_7] : memref<1x8x32xbf16, #tpu.memory_space<vmem>>, vector<1x8x32xbf16>
    %5 = vector.shape_cast %4 : vector<1x8x32xbf16> to vector<8x32xbf16>
    %6 = tpu.iota {dimensions = array<i32: 0>} : vector<8x8xi32>
    %7 = tpu.iota {dimensions = array<i32: 1>} : vector<8x8xi32>
    %8 = arith.cmpi sge, %6, %7 : vector<8x8xi32>
    %9 = vector.extract_strided_slice %1 {offsets = [0, 0], sizes = [8, 8], strides = [1, 1]} : vector<8x32xbf16> to vector<8x8xbf16>
    %10 = vector.extract_strided_slice %3 {offsets = [0, 0], sizes = [8, 8], strides = [1, 1]} : vector<8x32xbf16> to vector<8x8xbf16>
    %11 = vector.extract_strided_slice %5 {offsets = [0, 0], sizes = [8, 8], strides = [1, 1]} : vector<8x32xbf16> to vector<8x8xbf16>
    %cst = arith.constant dense<0.000000e+00> : vector<8x8xf32>
    %12 = tpu.matmul %9, %10, %cst {dimension_numbers = #tpu.dot_dimension_numbers<[1], [1], [0], [0], [0, 0, 1, 0], [], []>} : vector<8x8xbf16>, vector<8x8xbf16>, vector<8x8xf32> -> vector<8x8xf32>
    %cst_8 = arith.constant 0.353553385 : f32
    %13 = vector.broadcast %cst_8 : f32 to vector<8x8xf32>
    %14 = arith.mulf %12, %13 : vector<8x8xf32>
    %cst_9 = arith.constant -1.000000e+30 : f32
    %15 = vector.broadcast %cst_9 : f32 to vector<8x8xf32>
    %16 = arith.select %8, %14, %15 : vector<8x8xi1>, vector<8x8xf32>
    %cst_10 = arith.constant dense<0xFF800000> : vector<8xf32>
    %17 = vector.multi_reduction <maximumf>, %16, %cst_10 [1] : vector<8x8xf32> to vector<8xf32>
    %18 = vector.shape_cast %17 : vector<8xf32> to vector<8x1xf32>
    %19 = vector.broadcast %18 : vector<8x1xf32> to vector<8x8xf32>
    %20 = arith.subf %16, %19 : vector<8x8xf32>
    %21 = math.exp %20 : vector<8x8xf32>
    %cst_11 = arith.constant dense<0.000000e+00> : vector<8xf32>
    %22 = vector.multi_reduction <add>, %21, %cst_11 [1] : vector<8x8xf32> to vector<8xf32>
    %23 = vector.shape_cast %22 : vector<8xf32> to vector<8x1xf32>
    %24 = tpu.reciprocal %23 {approx = true} : vector<8x1xf32> -> vector<8x1xf32>
    %25 = vector.broadcast %24 : vector<8x1xf32> to vector<8x8xf32>
    %26 = arith.mulf %21, %25 : vector<8x8xf32>
    %27 = arith.truncf %26 : vector<8x8xf32> to vector<8x8xbf16>
    %cst_12 = arith.constant dense<0.000000e+00> : vector<8x8xf32>
    %28 = tpu.matmul %27, %11, %cst_12 {dimension_numbers = #tpu.dot_dimension_numbers<[1], [0], [0], [1], [0, 0, 1, 1], [], []>} : vector<8x8xbf16>, vector<8x8xbf16>, vector<8x8xf32> -> vector<8x8xf32>
    %29 = vector.extract_strided_slice %1 {offsets = [0, 8], sizes = [8, 8], strides = [1, 1]} : vector<8x32xbf16> to vector<8x8xbf16>
    %30 = vector.extract_strided_slice %3 {offsets = [0, 8], sizes = [8, 8], strides = [1, 1]} : vector<8x32xbf16> to vector<8x8xbf16>
    %31 = vector.extract_strided_slice %5 {offsets = [0, 8], sizes = [8, 8], strides = [1, 1]} : vector<8x32xbf16> to vector<8x8xbf16>
    %cst_13 = arith.constant dense<0.000000e+00> : vector<8x8xf32>
    %32 = tpu.matmul %29, %30, %cst_13 {dimension_numbers = #tpu.dot_dimension_numbers<[1], [1], [0], [0], [0, 0, 1, 0], [], []>} : vector<8x8xbf16>, vector<8x8xbf16>, vector<8x8xf32> -> vector<8x8xf32>
    %cst_14 = arith.constant 0.353553385 : f32
    %33 = vector.broadcast %cst_14 : f32 to vector<8x8xf32>
    %34 = arith.mulf %32, %33 : vector<8x8xf32>
    %cst_15 = arith.constant -1.000000e+30 : f32
    %35 = vector.broadcast %cst_15 : f32 to vector<8x8xf32>
    %36 = arith.select %8, %34, %35 : vector<8x8xi1>, vector<8x8xf32>
    %cst_16 = arith.constant dense<0xFF800000> : vector<8xf32>
    %37 = vector.multi_reduction <maximumf>, %36, %cst_16 [1] : vector<8x8xf32> to vector<8xf32>
    %38 = vector.shape_cast %37 : vector<8xf32> to vector<8x1xf32>
    %39 = vector.broadcast %38 : vector<8x1xf32> to vector<8x8xf32>
    %40 = arith.subf %36, %39 : vector<8x8xf32>
    %41 = math.exp %40 : vector<8x8xf32>
    %cst_17 = arith.constant dense<0.000000e+00> : vector<8xf32>
    %42 = vector.multi_reduction <add>, %41, %cst_17 [1] : vector<8x8xf32> to vector<8xf32>
    %43 = vector.shape_cast %42 : vector<8xf32> to vector<8x1xf32>
    %44 = tpu.reciprocal %43 {approx = true} : vector<8x1xf32> -> vector<8x1xf32>
    %45 = vector.broadcast %44 : vector<8x1xf32> to vector<8x8xf32>
    %46 = arith.mulf %41, %45 : vector<8x8xf32>
    %47 = arith.truncf %46 : vector<8x8xf32> to vector<8x8xbf16>
    %cst_18 = arith.constant dense<0.000000e+00> : vector<8x8xf32>
    %48 = tpu.matmul %47, %31, %cst_18 {dimension_numbers = #tpu.dot_dimension_numbers<[1], [0], [0], [1], [0, 0, 1, 1], [], []>} : vector<8x8xbf16>, vector<8x8xbf16>, vector<8x8xf32> -> vector<8x8xf32>
    %49 = vector.extract_strided_slice %1 {offsets = [0, 16], sizes = [8, 8], strides = [1, 1]} : vector<8x32xbf16> to vector<8x8xbf16>
    %50 = vector.extract_strided_slice %3 {offsets = [0, 16], sizes = [8, 8], strides = [1, 1]} : vector<8x32xbf16> to vector<8x8xbf16>
    %51 = vector.extract_strided_slice %5 {offsets = [0, 16], sizes = [8, 8], strides = [1, 1]} : vector<8x32xbf16> to vector<8x8xbf16>
    %cst_19 = arith.constant dense<0.000000e+00> : vector<8x8xf32>
    %52 = tpu.matmul %49, %50, %cst_19 {dimension_numbers = #tpu.dot_dimension_numbers<[1], [1], [0], [0], [0, 0, 1, 0], [], []>} : vector<8x8xbf16>, vector<8x8xbf16>, vector<8x8xf32> -> vector<8x8xf32>
    %cst_20 = arith.constant 0.353553385 : f32
    %53 = vector.broadcast %cst_20 : f32 to vector<8x8xf32>
    %54 = arith.mulf %52, %53 : vector<8x8xf32>
    %cst_21 = arith.constant -1.000000e+30 : f32
    %55 = vector.broadcast %cst_21 : f32 to vector<8x8xf32>
    %56 = arith.select %8, %54, %55 : vector<8x8xi1>, vector<8x8xf32>
    %cst_22 = arith.constant dense<0xFF800000> : vector<8xf32>
    %57 = vector.multi_reduction <maximumf>, %56, %cst_22 [1] : vector<8x8xf32> to vector<8xf32>
    %58 = vector.shape_cast %57 : vector<8xf32> to vector<8x1xf32>
    %59 = vector.broadcast %58 : vector<8x1xf32> to vector<8x8xf32>
    %60 = arith.subf %56, %59 : vector<8x8xf32>
    %61 = math.exp %60 : vector<8x8xf32>
    %cst_23 = arith.constant dense<0.000000e+00> : vector<8xf32>
    %62 = vector.multi_reduction <add>, %61, %cst_23 [1] : vector<8x8xf32> to vector<8xf32>
    %63 = vector.shape_cast %62 : vector<8xf32> to vector<8x1xf32>
    %64 = tpu.reciprocal %63 {approx = true} : vector<8x1xf32> -> vector<8x1xf32>
    %65 = vector.broadcast %64 : vector<8x1xf32> to vector<8x8xf32>
    %66 = arith.mulf %61, %65 : vector<8x8xf32>
    %67 = arith.truncf %66 : vector<8x8xf32> to vector<8x8xbf16>
    %cst_24 = arith.constant dense<0.000000e+00> : vector<8x8xf32>
    %68 = tpu.matmul %67, %51, %cst_24 {dimension_numbers = #tpu.dot_dimension_numbers<[1], [0], [0], [1], [0, 0, 1, 1], [], []>} : vector<8x8xbf16>, vector<8x8xbf16>, vector<8x8xf32> -> vector<8x8xf32>
    %69 = vector.extract_strided_slice %1 {offsets = [0, 24], sizes = [8, 8], strides = [1, 1]} : vector<8x32xbf16> to vector<8x8xbf16>
    %70 = vector.extract_strided_slice %3 {offsets = [0, 24], sizes = [8, 8], strides = [1, 1]} : vector<8x32xbf16> to vector<8x8xbf16>
    %71 = vector.extract_strided_slice %5 {offsets = [0, 24], sizes = [8, 8], strides = [1, 1]} : vector<8x32xbf16> to vector<8x8xbf16>
    %cst_25 = arith.constant dense<0.000000e+00> : vector<8x8xf32>
    %72 = tpu.matmul %69, %70, %cst_25 {dimension_numbers = #tpu.dot_dimension_numbers<[1], [1], [0], [0], [0, 0, 1, 0], [], []>} : vector<8x8xbf16>, vector<8x8xbf16>, vector<8x8xf32> -> vector<8x8xf32>
    %cst_26 = arith.constant 0.353553385 : f32
    %73 = vector.broadcast %cst_26 : f32 to vector<8x8xf32>
    %74 = arith.mulf %72, %73 : vector<8x8xf32>
    %cst_27 = arith.constant -1.000000e+30 : f32
    %75 = vector.broadcast %cst_27 : f32 to vector<8x8xf32>
    %76 = arith.select %8, %74, %75 : vector<8x8xi1>, vector<8x8xf32>
    %cst_28 = arith.constant dense<0xFF800000> : vector<8xf32>
    %77 = vector.multi_reduction <maximumf>, %76, %cst_28 [1] : vector<8x8xf32> to vector<8xf32>
    %78 = vector.shape_cast %77 : vector<8xf32> to vector<8x1xf32>
    %79 = vector.broadcast %78 : vector<8x1xf32> to vector<8x8xf32>
    %80 = arith.subf %76, %79 : vector<8x8xf32>
    %81 = math.exp %80 : vector<8x8xf32>
    %cst_29 = arith.constant dense<0.000000e+00> : vector<8xf32>
    %82 = vector.multi_reduction <add>, %81, %cst_29 [1] : vector<8x8xf32> to vector<8xf32>
    %83 = vector.shape_cast %82 : vector<8xf32> to vector<8x1xf32>
    %84 = tpu.reciprocal %83 {approx = true} : vector<8x1xf32> -> vector<8x1xf32>
    %85 = vector.broadcast %84 : vector<8x1xf32> to vector<8x8xf32>
    %86 = arith.mulf %81, %85 : vector<8x8xf32>
    %87 = arith.truncf %86 : vector<8x8xf32> to vector<8x8xbf16>
    %cst_30 = arith.constant dense<0.000000e+00> : vector<8x8xf32>
    %88 = tpu.matmul %87, %71, %cst_30 {dimension_numbers = #tpu.dot_dimension_numbers<[1], [0], [0], [1], [0, 0, 1, 1], [], []>} : vector<8x8xbf16>, vector<8x8xbf16>, vector<8x8xf32> -> vector<8x8xf32>
    %89 = tpu.concatenate %28, %48, %68, %88 in 1 : vector<8x8xf32>, vector<8x8xf32>, vector<8x8xf32>, vector<8x8xf32> -> vector<8x32xf32>
    %90 = arith.truncf %89 : vector<8x32xf32> to vector<8x32xbf16>
    %c0_31 = arith.constant 0 : index
    %c0_32 = arith.constant 0 : index
    %c0_33 = arith.constant 0 : index
    %91 = vector.load %arg4[%c0_31, %c0_32, %c0_33] : memref<1x8x32xbf16, #tpu.memory_space<vmem>>, vector<1x8x32xbf16>
    %92 = vector.shape_cast %91 : vector<1x8x32xbf16> to vector<8x32xbf16>
    %93 = vector.shape_cast %90 : vector<8x32xbf16> to vector<1x8x32xbf16>
    tpu.vector_store %arg4[%c0_31, %c0_32, %c0_33], %93 {strides = array<i32>} : memref<1x8x32xbf16, #tpu.memory_space<vmem>>, vector<1x8x32xbf16>,
    return
  }
  func.func @transform_0(%arg0: i32) -> (i32, i32, i32) {
    %c0_i32 = arith.constant 0 : i32
    %c0_i32_0 = arith.constant 0 : i32
    %c0_i32_1 = arith.constant 0 : i32
    return %arg0, %c0_i32, %c0_i32_0 : i32, i32, i32
  }
  func.func @transform_1(%arg0: i32) -> (i32, i32, i32) {
    %c0_i32 = arith.constant 0 : i32
    %c0_i32_0 = arith.constant 0 : i32
    %c0_i32_1 = arith.constant 0 : i32
    return %arg0, %c0_i32, %c0_i32_0 : i32, i32, i32
  }
  func.func @transform_2(%arg0: i32) -> (i32, i32, i32) {
    %c0_i32 = arith.constant 0 : i32
    %c0_i32_0 = arith.constant 0 : i32
    %c0_i32_1 = arith.constant 0 : i32
    return %arg0, %c0_i32, %c0_i32_0 : i32, i32, i32
  }
  func.func @transform_3(%arg0: i32) -> (i32, i32, i32) {
    %c0_i32 = arith.constant 0 : i32
    %c0_i32_0 = arith.constant 0 : i32
    %c0_i32_1 = arith.constant 0 : i32
    return %arg0, %c0_i32, %c0_i32_0 : i32, i32, i32
  }
}

module attributes {stable_mosaic.version = 11 : i64} {
  func.func @_matmul_kernel(%arg0: i32, %arg1: i32, %arg2: i32, %arg3: memref<16x32xbf16, #tpu.memory_space<vmem>>, %arg4: memref<32x32xbf16, #tpu.memory_space<vmem>>, %arg5: memref<1x32xf32, #tpu.memory_space<vmem>>, %arg6: memref<16x32xf32, #tpu.memory_space<vmem>>, %arg7: memref<16x32xf32, #tpu.memory_space<vmem>>) attributes {dimension_semantics = [#tpu.dimension_semantics<parallel>, #tpu.dimension_semantics<parallel>, #tpu.dimension_semantics<arbitrary>], iteration_bounds = array<i64: 1, 1, 1>, scalar_prefetch = 0 : i64, scratch_operands = 1 : i64, tpu.core_type = #tpu.core_type<tc>, window_params = [{transform_indices = @transform_0, window_bounds = array<i64: 16, 32>}, {transform_indices = @transform_1, window_bounds = array<i64: 32, 32>}, {transform_indices = @transform_2, window_bounds = array<i64: 1, 32>}, {transform_indices = @transform_3, window_bounds = array<i64: 16, 32>}]} {
    %c0_i32 = arith.constant 0 : i32
    %0 = arith.cmpi eq, %arg2, %c0_i32 : i32
    %1 = arith.extui %0 : i1 to i32
    %c0_i32_0 = arith.constant 0 : i32
    %2 = arith.cmpi ne, %1, %c0_i32_0 : i32
    scf.if %2 {
      %cst_10 = arith.constant 0.000000e+00 : f32
      %12 = vector.broadcast %cst_10 : f32 to vector<16x32xf32>
      %c0_11 = arith.constant 0 : index
      %c0_12 = arith.constant 0 : index
      %13 = vector.load %arg7[%c0_11, %c0_12] : memref<16x32xf32, #tpu.memory_space<vmem>>, vector<16x32xf32>
      tpu.vector_store %arg7[%c0_11, %c0_12], %12 {strides = array<i32>} : memref<16x32xf32, #tpu.memory_space<vmem>>, vector<16x32xf32>,
    } else {
    }
    %c0 = arith.constant 0 : index
    %c0_1 = arith.constant 0 : index
    %3 = vector.load %arg7[%c0, %c0_1] : memref<16x32xf32, #tpu.memory_space<vmem>>, vector<16x32xf32>
    %c0_2 = arith.constant 0 : index
    %c0_3 = arith.constant 0 : index
    %4 = vector.load %arg3[%c0_2, %c0_3] : memref<16x32xbf16, #tpu.memory_space<vmem>>, vector<16x32xbf16>
    %c0_4 = arith.constant 0 : index
    %c0_5 = arith.constant 0 : index
    %5 = vector.load %arg4[%c0_4, %c0_5] : memref<32x32xbf16, #tpu.memory_space<vmem>>, vector<32x32xbf16>
    %cst = arith.constant dense<0.000000e+00> : vector<16x32xf32>
    %6 = tpu.matmul %4, %5, %cst {dimension_numbers = #tpu.dot_dimension_numbers<[1], [0], [0], [1], [0, 0, 1, 1], [], []>} : vector<16x32xbf16>, vector<32x32xbf16>, vector<16x32xf32> -> vector<16x32xf32>
    %7 = arith.addf %3, %6 : vector<16x32xf32>
    %c0_6 = arith.constant 0 : index
    %c0_7 = arith.constant 0 : index
    %8 = vector.load %arg7[%c0_6, %c0_7] : memref<16x32xf32, #tpu.memory_space<vmem>>, vector<16x32xf32>
    tpu.vector_store %arg7[%c0_6, %c0_7], %7 {strides = array<i32>} : memref<16x32xf32, #tpu.memory_space<vmem>>, vector<16x32xf32>,
    %c0_i32_8 = arith.constant 0 : i32
    %9 = arith.cmpi eq, %arg2, %c0_i32_8 : i32
    %10 = arith.extui %9 : i1 to i32
    %c0_i32_9 = arith.constant 0 : i32
    %11 = arith.cmpi ne, %10, %c0_i32_9 : i32
    scf.if %11 {
      %c0_10 = arith.constant 0 : index
      %c0_11 = arith.constant 0 : index
      %12 = vector.load %arg7[%c0_10, %c0_11] : memref<16x32xf32, #tpu.memory_space<vmem>>, vector<16x32xf32>
      %c0_12 = arith.constant 0 : index
      %c0_13 = arith.constant 0 : index
      %13 = vector.load %arg5[%c0_12, %c0_13] : memref<1x32xf32, #tpu.memory_space<vmem>>, vector<1x32xf32>
      %14 = vector.broadcast %13 : vector<1x32xf32> to vector<16x32xf32>
      %15 = arith.addf %12, %14 : vector<16x32xf32>
      %c0_14 = arith.constant 0 : index
      %c0_15 = arith.constant 0 : index
      %16 = vector.load %arg6[%c0_14, %c0_15] : memref<16x32xf32, #tpu.memory_space<vmem>>, vector<16x32xf32>
      tpu.vector_store %arg6[%c0_14, %c0_15], %15 {strides = array<i32>} : memref<16x32xf32, #tpu.memory_space<vmem>>, vector<16x32xf32>,
    } else {
    }
    return
  }
  func.func @transform_0(%arg0: i32, %arg1: i32, %arg2: i32) -> (i32, i32) {
    %c0_i32 = arith.constant 0 : i32
    return %arg0, %arg2 : i32, i32
  }
  func.func @transform_1(%arg0: i32, %arg1: i32, %arg2: i32) -> (i32, i32) {
    %c0_i32 = arith.constant 0 : i32
    return %arg2, %arg1 : i32, i32
  }
  func.func @transform_2(%arg0: i32, %arg1: i32, %arg2: i32) -> (i32, i32) {
    %c0_i32 = arith.constant 0 : i32
    %c0_i32_0 = arith.constant 0 : i32
    return %c0_i32, %arg1 : i32, i32
  }
  func.func @transform_3(%arg0: i32, %arg1: i32, %arg2: i32) -> (i32, i32) {
    %c0_i32 = arith.constant 0 : i32
    return %arg0, %arg1 : i32, i32
  }
}

module attributes {stable_mosaic.version = 11 : i64} {
  func.func @_add_ln_kernel(%arg0: i32, %arg1: memref<16x32xf32, #tpu.memory_space<vmem>>, %arg2: memref<16x32xf32, #tpu.memory_space<vmem>>, %arg3: memref<1x32xf32, #tpu.memory_space<vmem>>, %arg4: memref<1x32xf32, #tpu.memory_space<vmem>>, %arg5: memref<16x32xf32, #tpu.memory_space<vmem>>) attributes {dimension_semantics = [#tpu.dimension_semantics<parallel>], iteration_bounds = array<i64: 1>, scalar_prefetch = 0 : i64, scratch_operands = 0 : i64, tpu.core_type = #tpu.core_type<tc>, window_params = [{transform_indices = @transform_0, window_bounds = array<i64: 16, 32>}, {transform_indices = @transform_1, window_bounds = array<i64: 16, 32>}, {pipeline_mode = #tpu.pipeline_mode<synchronous>, transform_indices = @transform_2, window_bounds = array<i64: 1, 32>}, {pipeline_mode = #tpu.pipeline_mode<synchronous>, transform_indices = @transform_3, window_bounds = array<i64: 1, 32>}, {transform_indices = @transform_4, window_bounds = array<i64: 16, 32>}]} {
    %c0 = arith.constant 0 : index
    %c0_0 = arith.constant 0 : index
    %0 = vector.load %arg1[%c0, %c0_0] : memref<16x32xf32, #tpu.memory_space<vmem>>, vector<16x32xf32>
    %c0_1 = arith.constant 0 : index
    %c0_2 = arith.constant 0 : index
    %1 = vector.load %arg2[%c0_1, %c0_2] : memref<16x32xf32, #tpu.memory_space<vmem>>, vector<16x32xf32>
    %2 = arith.addf %0, %1 : vector<16x32xf32>
    %cst = arith.constant dense<0.000000e+00> : vector<16xf32>
    %3 = vector.multi_reduction <add>, %2, %cst [1] : vector<16x32xf32> to vector<16xf32>
    %4 = vector.shape_cast %3 : vector<16xf32> to vector<16x1xf32>
    %cst_3 = arith.constant 3.200000e+01 : f32
    %5 = vector.broadcast %cst_3 : f32 to vector<16x1xf32>
    %6 = arith.divf %4, %5 : vector<16x1xf32>
    %7 = vector.broadcast %6 : vector<16x1xf32> to vector<16x32xf32>
    %8 = arith.subf %2, %7 : vector<16x32xf32>
    %9 = arith.mulf %8, %8 : vector<16x32xf32>
    %cst_4 = arith.constant dense<0.000000e+00> : vector<16xf32>
    %10 = vector.multi_reduction <add>, %9, %cst_4 [1] : vector<16x32xf32> to vector<16xf32>
    %11 = vector.shape_cast %10 : vector<16xf32> to vector<16x1xf32>
    %cst_5 = arith.constant 3.200000e+01 : f32
    %12 = vector.broadcast %cst_5 : f32 to vector<16x1xf32>
    %13 = arith.divf %11, %12 : vector<16x1xf32>
    %14 = vector.broadcast %6 : vector<16x1xf32> to vector<16x32xf32>
    %15 = arith.subf %2, %14 : vector<16x32xf32>
    %cst_6 = arith.constant 9.99999974E-6 : f32
    %16 = vector.broadcast %cst_6 : f32 to vector<16x1xf32>
    %17 = arith.addf %13, %16 : vector<16x1xf32>
    %18 = math.rsqrt %17 : vector<16x1xf32>
    %19 = vector.broadcast %18 : vector<16x1xf32> to vector<16x32xf32>
    %20 = arith.mulf %15, %19 : vector<16x32xf32>
    %c0_7 = arith.constant 0 : index
    %c0_8 = arith.constant 0 : index
    %21 = vector.load %arg3[%c0_7, %c0_8] : memref<1x32xf32, #tpu.memory_space<vmem>>, vector<1x32xf32>
    %22 = vector.broadcast %21 : vector<1x32xf32> to vector<16x32xf32>
    %23 = arith.mulf %20, %22 : vector<16x32xf32>
    %c0_9 = arith.constant 0 : index
    %c0_10 = arith.constant 0 : index
    %24 = vector.load %arg4[%c0_9, %c0_10] : memref<1x32xf32, #tpu.memory_space<vmem>>, vector<1x32xf32>
    %25 = vector.broadcast %24 : vector<1x32xf32> to vector<16x32xf32>
    %26 = arith.addf %23, %25 : vector<16x32xf32>
    %c0_11 = arith.constant 0 : index
    %c0_12 = arith.constant 0 : index
    %27 = vector.load %arg5[%c0_11, %c0_12] : memref<16x32xf32, #tpu.memory_space<vmem>>, vector<16x32xf32>
    tpu.vector_store %arg5[%c0_11, %c0_12], %26 {strides = array<i32>} : memref<16x32xf32, #tpu.memory_space<vmem>>, vector<16x32xf32>,
    return
  }
  func.func @transform_0(%arg0: i32) -> (i32, i32) {
    %c0_i32 = arith.constant 0 : i32
    %c0_i32_0 = arith.constant 0 : i32
    return %arg0, %c0_i32 : i32, i32
  }
  func.func @transform_1(%arg0: i32) -> (i32, i32) {
    %c0_i32 = arith.constant 0 : i32
    %c0_i32_0 = arith.constant 0 : i32
    return %arg0, %c0_i32 : i32, i32
  }
  func.func @transform_2(%arg0: i32) -> (i32, i32) {
    %c0_i32 = arith.constant 0 : i32
    %c0_i32_0 = arith.constant 0 : i32
    %c0_i32_1 = arith.constant 0 : i32
    return %c0_i32, %c0_i32_0 : i32, i32
  }
  func.func @transform_3(%arg0: i32) -> (i32, i32) {
    %c0_i32 = arith.constant 0 : i32
    %c0_i32_0 = arith.constant 0 : i32
    %c0_i32_1 = arith.constant 0 : i32
    return %c0_i32, %c0_i32_0 : i32, i32
  }
  func.func @transform_4(%arg0: i32) -> (i32, i32) {
    %c0_i32 = arith.constant 0 : i32
    %c0_i32_0 = arith.constant 0 : i32
    return %arg0, %c0_i32 : i32, i32
  }
}

module attributes {stable_mosaic.version = 11 : i64} {
  func.func @_matmul_kernel(%arg0: i32, %arg1: i32, %arg2: i32, %arg3: memref<16x32xbf16, #tpu.memory_space<vmem>>, %arg4: memref<32x32xbf16, #tpu.memory_space<vmem>>, %arg5: memref<1x32xf32, #tpu.memory_space<vmem>>, %arg6: memref<16x32xbf16, #tpu.memory_space<vmem>>, %arg7: memref<16x32xf32, #tpu.memory_space<vmem>>) attributes {dimension_semantics = [#tpu.dimension_semantics<parallel>, #tpu.dimension_semantics<parallel>, #tpu.dimension_semantics<arbitrary>], iteration_bounds = array<i64: 1, 1, 1>, scalar_prefetch = 0 : i64, scratch_operands = 1 : i64, tpu.core_type = #tpu.core_type<tc>, window_params = [{transform_indices = @transform_0, window_bounds = array<i64: 16, 32>}, {transform_indices = @transform_1, window_bounds = array<i64: 32, 32>}, {transform_indices = @transform_2, window_bounds = array<i64: 1, 32>}, {transform_indices = @transform_3, window_bounds = array<i64: 16, 32>}]} {
    %c0_i32 = arith.constant 0 : i32
    %0 = arith.cmpi eq, %arg2, %c0_i32 : i32
    %1 = arith.extui %0 : i1 to i32
    %c0_i32_0 = arith.constant 0 : i32
    %2 = arith.cmpi ne, %1, %c0_i32_0 : i32
    scf.if %2 {
      %cst_10 = arith.constant 0.000000e+00 : f32
      %12 = vector.broadcast %cst_10 : f32 to vector<16x32xf32>
      %c0_11 = arith.constant 0 : index
      %c0_12 = arith.constant 0 : index
      %13 = vector.load %arg7[%c0_11, %c0_12] : memref<16x32xf32, #tpu.memory_space<vmem>>, vector<16x32xf32>
      tpu.vector_store %arg7[%c0_11, %c0_12], %12 {strides = array<i32>} : memref<16x32xf32, #tpu.memory_space<vmem>>, vector<16x32xf32>,
    } else {
    }
    %c0 = arith.constant 0 : index
    %c0_1 = arith.constant 0 : index
    %3 = vector.load %arg7[%c0, %c0_1] : memref<16x32xf32, #tpu.memory_space<vmem>>, vector<16x32xf32>
    %c0_2 = arith.constant 0 : index
    %c0_3 = arith.constant 0 : index
    %4 = vector.load %arg3[%c0_2, %c0_3] : memref<16x32xbf16, #tpu.memory_space<vmem>>, vector<16x32xbf16>
    %c0_4 = arith.constant 0 : index
    %c0_5 = arith.constant 0 : index
    %5 = vector.load %arg4[%c0_4, %c0_5] : memref<32x32xbf16, #tpu.memory_space<vmem>>, vector<32x32xbf16>
    %cst = arith.constant dense<0.000000e+00> : vector<16x32xf32>
    %6 = tpu.matmul %4, %5, %cst {dimension_numbers = #tpu.dot_dimension_numbers<[1], [0], [0], [1], [0, 0, 1, 1], [], []>} : vector<16x32xbf16>, vector<32x32xbf16>, vector<16x32xf32> -> vector<16x32xf32>
    %7 = arith.addf %3, %6 : vector<16x32xf32>
    %c0_6 = arith.constant 0 : index
    %c0_7 = arith.constant 0 : index
    %8 = vector.load %arg7[%c0_6, %c0_7] : memref<16x32xf32, #tpu.memory_space<vmem>>, vector<16x32xf32>
    tpu.vector_store %arg7[%c0_6, %c0_7], %7 {strides = array<i32>} : memref<16x32xf32, #tpu.memory_space<vmem>>, vector<16x32xf32>,
    %c0_i32_8 = arith.constant 0 : i32
    %9 = arith.cmpi eq, %arg2, %c0_i32_8 : i32
    %10 = arith.extui %9 : i1 to i32
    %c0_i32_9 = arith.constant 0 : i32
    %11 = arith.cmpi ne, %10, %c0_i32_9 : i32
    scf.if %11 {
      %c0_10 = arith.constant 0 : index
      %c0_11 = arith.constant 0 : index
      %12 = vector.load %arg7[%c0_10, %c0_11] : memref<16x32xf32, #tpu.memory_space<vmem>>, vector<16x32xf32>
      %c0_12 = arith.constant 0 : index
      %c0_13 = arith.constant 0 : index
      %13 = vector.load %arg5[%c0_12, %c0_13] : memref<1x32xf32, #tpu.memory_space<vmem>>, vector<1x32xf32>
      %14 = vector.broadcast %13 : vector<1x32xf32> to vector<16x32xf32>
      %15 = arith.addf %12, %14 : vector<16x32xf32>
      %16 = arith.truncf %15 : vector<16x32xf32> to vector<16x32xbf16>
      %c0_14 = arith.constant 0 : index
      %c0_15 = arith.constant 0 : index
      %17 = vector.load %arg6[%c0_14, %c0_15] : memref<16x32xbf16, #tpu.memory_space<vmem>>, vector<16x32xbf16>
      tpu.vector_store %arg6[%c0_14, %c0_15], %16 {strides = array<i32>} : memref<16x32xbf16, #tpu.memory_space<vmem>>, vector<16x32xbf16>,
    } else {
    }
    return
  }
  func.func @transform_0(%arg0: i32, %arg1: i32, %arg2: i32) -> (i32, i32) {
    %c0_i32 = arith.constant 0 : i32
    return %arg0, %arg2 : i32, i32
  }
  func.func @transform_1(%arg0: i32, %arg1: i32, %arg2: i32) -> (i32, i32) {
    %c0_i32 = arith.constant 0 : i32
    return %arg2, %arg1 : i32, i32
  }
  func.func @transform_2(%arg0: i32, %arg1: i32, %arg2: i32) -> (i32, i32) {
    %c0_i32 = arith.constant 0 : i32
    %c0_i32_0 = arith.constant 0 : i32
    return %c0_i32, %arg1 : i32, i32
  }
  func.func @transform_3(%arg0: i32, %arg1: i32, %arg2: i32) -> (i32, i32) {
    %c0_i32 = arith.constant 0 : i32
    return %arg0, %arg1 : i32, i32
  }
}

module attributes {stable_mosaic.version = 11 : i64} {
  func.func @_matmul_kernel(%arg0: i32, %arg1: i32, %arg2: i32, %arg3: memref<20x32xbf16, #tpu.memory_space<vmem>>, %arg4: memref<32x96xbf16, #tpu.memory_space<vmem>>, %arg5: memref<1x96xf32, #tpu.memory_space<vmem>>, %arg6: memref<20x96xbf16, #tpu.memory_space<vmem>>, %arg7: memref<20x96xf32, #tpu.memory_space<vmem>>) attributes {dimension_semantics = [#tpu.dimension_semantics<parallel>, #tpu.dimension_semantics<parallel>, #tpu.dimension_semantics<arbitrary>], iteration_bounds = array<i64: 1, 1, 1>, scalar_prefetch = 0 : i64, scratch_operands = 1 : i64, tpu.core_type = #tpu.core_type<tc>, window_params = [{transform_indices = @transform_0, window_bounds = array<i64: 20, 32>}, {transform_indices = @transform_1, window_bounds = array<i64: 32, 96>}, {transform_indices = @transform_2, window_bounds = array<i64: 1, 96>}, {transform_indices = @transform_3, window_bounds = array<i64: 20, 96>}]} {
    %c0_i32 = arith.constant 0 : i32
    %0 = arith.cmpi eq, %arg2, %c0_i32 : i32
    %1 = arith.extui %0 : i1 to i32
    %c0_i32_0 = arith.constant 0 : i32
    %2 = arith.cmpi ne, %1, %c0_i32_0 : i32
    scf.if %2 {
      %cst_10 = arith.constant 0.000000e+00 : f32
      %12 = vector.broadcast %cst_10 : f32 to vector<20x96xf32>
      %c0_11 = arith.constant 0 : index
      %c0_12 = arith.constant 0 : index
      %13 = vector.load %arg7[%c0_11, %c0_12] : memref<20x96xf32, #tpu.memory_space<vmem>>, vector<20x96xf32>
      tpu.vector_store %arg7[%c0_11, %c0_12], %12 {strides = array<i32>} : memref<20x96xf32, #tpu.memory_space<vmem>>, vector<20x96xf32>,
    } else {
    }
    %c0 = arith.constant 0 : index
    %c0_1 = arith.constant 0 : index
    %3 = vector.load %arg7[%c0, %c0_1] : memref<20x96xf32, #tpu.memory_space<vmem>>, vector<20x96xf32>
    %c0_2 = arith.constant 0 : index
    %c0_3 = arith.constant 0 : index
    %4 = vector.load %arg3[%c0_2, %c0_3] : memref<20x32xbf16, #tpu.memory_space<vmem>>, vector<20x32xbf16>
    %c0_4 = arith.constant 0 : index
    %c0_5 = arith.constant 0 : index
    %5 = vector.load %arg4[%c0_4, %c0_5] : memref<32x96xbf16, #tpu.memory_space<vmem>>, vector<32x96xbf16>
    %cst = arith.constant dense<0.000000e+00> : vector<20x96xf32>
    %6 = tpu.matmul %4, %5, %cst {dimension_numbers = #tpu.dot_dimension_numbers<[1], [0], [0], [1], [0, 0, 1, 1], [], []>} : vector<20x32xbf16>, vector<32x96xbf16>, vector<20x96xf32> -> vector<20x96xf32>
    %7 = arith.addf %3, %6 : vector<20x96xf32>
    %c0_6 = arith.constant 0 : index
    %c0_7 = arith.constant 0 : index
    %8 = vector.load %arg7[%c0_6, %c0_7] : memref<20x96xf32, #tpu.memory_space<vmem>>, vector<20x96xf32>
    tpu.vector_store %arg7[%c0_6, %c0_7], %7 {strides = array<i32>} : memref<20x96xf32, #tpu.memory_space<vmem>>, vector<20x96xf32>,
    %c0_i32_8 = arith.constant 0 : i32
    %9 = arith.cmpi eq, %arg2, %c0_i32_8 : i32
    %10 = arith.extui %9 : i1 to i32
    %c0_i32_9 = arith.constant 0 : i32
    %11 = arith.cmpi ne, %10, %c0_i32_9 : i32
    scf.if %11 {
      %c0_10 = arith.constant 0 : index
      %c0_11 = arith.constant 0 : index
      %12 = vector.load %arg7[%c0_10, %c0_11] : memref<20x96xf32, #tpu.memory_space<vmem>>, vector<20x96xf32>
      %c0_12 = arith.constant 0 : index
      %c0_13 = arith.constant 0 : index
      %13 = vector.load %arg5[%c0_12, %c0_13] : memref<1x96xf32, #tpu.memory_space<vmem>>, vector<1x96xf32>
      %14 = vector.broadcast %13 : vector<1x96xf32> to vector<20x96xf32>
      %15 = arith.addf %12, %14 : vector<20x96xf32>
      %16 = arith.truncf %15 : vector<20x96xf32> to vector<20x96xbf16>
      %c0_14 = arith.constant 0 : index
      %c0_15 = arith.constant 0 : index
      %17 = vector.load %arg6[%c0_14, %c0_15] : memref<20x96xbf16, #tpu.memory_space<vmem>>, vector<20x96xbf16>
      tpu.vector_store %arg6[%c0_14, %c0_15], %16 {strides = array<i32>} : memref<20x96xbf16, #tpu.memory_space<vmem>>, vector<20x96xbf16>,
    } else {
    }
    return
  }
  func.func @transform_0(%arg0: i32, %arg1: i32, %arg2: i32) -> (i32, i32) {
    %c0_i32 = arith.constant 0 : i32
    return %arg0, %arg2 : i32, i32
  }
  func.func @transform_1(%arg0: i32, %arg1: i32, %arg2: i32) -> (i32, i32) {
    %c0_i32 = arith.constant 0 : i32
    return %arg2, %arg1 : i32, i32
  }
  func.func @transform_2(%arg0: i32, %arg1: i32, %arg2: i32) -> (i32, i32) {
    %c0_i32 = arith.constant 0 : i32
    %c0_i32_0 = arith.constant 0 : i32
    return %c0_i32, %arg1 : i32, i32
  }
  func.func @transform_3(%arg0: i32, %arg1: i32, %arg2: i32) -> (i32, i32) {
    %c0_i32 = arith.constant 0 : i32
    return %arg0, %arg1 : i32, i32
  }
}

module attributes {stable_mosaic.version = 11 : i64} {
  func.func @_mha_kernel(%arg0: i32, %arg1: memref<1x10x32xbf16, #tpu.memory_space<vmem>>, %arg2: memref<1x10x32xbf16, #tpu.memory_space<vmem>>, %arg3: memref<1x10x32xbf16, #tpu.memory_space<vmem>>, %arg4: memref<1x10x32xbf16, #tpu.memory_space<vmem>>) attributes {dimension_semantics = [#tpu.dimension_semantics<parallel>], iteration_bounds = array<i64: 2>, scalar_prefetch = 0 : i64, scratch_operands = 0 : i64, tpu.core_type = #tpu.core_type<tc>, window_params = [{transform_indices = @transform_0, window_bounds = array<i64: 1, 10, 32>}, {transform_indices = @transform_1, window_bounds = array<i64: 1, 10, 32>}, {transform_indices = @transform_2, window_bounds = array<i64: 1, 10, 32>}, {transform_indices = @transform_3, window_bounds = array<i64: 1, 10, 32>}]} {
    %c0 = arith.constant 0 : index
    %c0_0 = arith.constant 0 : index
    %c0_1 = arith.constant 0 : index
    %0 = vector.load %arg1[%c0, %c0_0, %c0_1] : memref<1x10x32xbf16, #tpu.memory_space<vmem>>, vector<1x10x32xbf16>
    %1 = vector.shape_cast %0 : vector<1x10x32xbf16> to vector<10x32xbf16>
    %c0_2 = arith.constant 0 : index
    %c0_3 = arith.constant 0 : index
    %c0_4 = arith.constant 0 : index
    %2 = vector.load %arg2[%c0_2, %c0_3, %c0_4] : memref<1x10x32xbf16, #tpu.memory_space<vmem>>, vector<1x10x32xbf16>
    %3 = vector.shape_cast %2 : vector<1x10x32xbf16> to vector<10x32xbf16>
    %c0_5 = arith.constant 0 : index
    %c0_6 = arith.constant 0 : index
    %c0_7 = arith.constant 0 : index
    %4 = vector.load %arg3[%c0_5, %c0_6, %c0_7] : memref<1x10x32xbf16, #tpu.memory_space<vmem>>, vector<1x10x32xbf16>
    %5 = vector.shape_cast %4 : vector<1x10x32xbf16> to vector<10x32xbf16>
    %6 = vector.extract_strided_slice %1 {offsets = [0, 0], sizes = [10, 8], strides = [1, 1]} : vector<10x32xbf16> to vector<10x8xbf16>
    %7 = vector.extract_strided_slice %3 {offsets = [0, 0], sizes = [10, 8], strides = [1, 1]} : vector<10x32xbf16> to vector<10x8xbf16>
    %8 = vector.extract_strided_slice %5 {offsets = [0, 0], sizes = [10, 8], strides = [1, 1]} : vector<10x32xbf16> to vector<10x8xbf16>
    %cst = arith.constant dense<0.000000e+00> : vector<10x10xf32>
    %9 = tpu.matmul %6, %7, %cst {dimension_numbers = #tpu.dot_dimension_numbers<[1], [1], [0], [0], [0, 0, 1, 0], [], []>} : vector<10x8xbf16>, vector<10x8xbf16>, vector<10x10xf32> -> vector<10x10xf32>
    %cst_8 = arith.constant 0.353553385 : f32
    %10 = vector.broadcast %cst_8 : f32 to vector<10x10xf32>
    %11 = arith.mulf %9, %10 : vector<10x10xf32>
    %cst_9 = arith.constant dense<0xFF800000> : vector<10xf32>
    %12 = vector.multi_reduction <maximumf>, %11, %cst_9 [1] : vector<10x10xf32> to vector<10xf32>
    %13 = vector.shape_cast %12 : vector<10xf32> to vector<10x1xf32>
    %14 = vector.broadcast %13 : vector<10x1xf32> to vector<10x10xf32>
    %15 = arith.subf %11, %14 : vector<10x10xf32>
    %16 = math.exp %15 : vector<10x10xf32>
    %cst_10 = arith.constant dense<0.000000e+00> : vector<10xf32>
    %17 = vector.multi_reduction <add>, %16, %cst_10 [1] : vector<10x10xf32> to vector<10xf32>
    %18 = vector.shape_cast %17 : vector<10xf32> to vector<10x1xf32>
    %19 = tpu.reciprocal %18 {approx = true} : vector<10x1xf32> -> vector<10x1xf32>
    %20 = vector.broadcast %19 : vector<10x1xf32> to vector<10x10xf32>
    %21 = arith.mulf %16, %20 : vector<10x10xf32>
    %22 = arith.truncf %21 : vector<10x10xf32> to vector<10x10xbf16>
    %cst_11 = arith.constant dense<0.000000e+00> : vector<10x8xf32>
    %23 = tpu.matmul %22, %8, %cst_11 {dimension_numbers = #tpu.dot_dimension_numbers<[1], [0], [0], [1], [0, 0, 1, 1], [], []>} : vector<10x10xbf16>, vector<10x8xbf16>, vector<10x8xf32> -> vector<10x8xf32>
    %24 = vector.extract_strided_slice %1 {offsets = [0, 8], sizes = [10, 8], strides = [1, 1]} : vector<10x32xbf16> to vector<10x8xbf16>
    %25 = vector.extract_strided_slice %3 {offsets = [0, 8], sizes = [10, 8], strides = [1, 1]} : vector<10x32xbf16> to vector<10x8xbf16>
    %26 = vector.extract_strided_slice %5 {offsets = [0, 8], sizes = [10, 8], strides = [1, 1]} : vector<10x32xbf16> to vector<10x8xbf16>
    %cst_12 = arith.constant dense<0.000000e+00> : vector<10x10xf32>
    %27 = tpu.matmul %24, %25, %cst_12 {dimension_numbers = #tpu.dot_dimension_numbers<[1], [1], [0], [0], [0, 0, 1, 0], [], []>} : vector<10x8xbf16>, vector<10x8xbf16>, vector<10x10xf32> -> vector<10x10xf32>
    %cst_13 = arith.constant 0.353553385 : f32
    %28 = vector.broadcast %cst_13 : f32 to vector<10x10xf32>
    %29 = arith.mulf %27, %28 : vector<10x10xf32>
    %cst_14 = arith.constant dense<0xFF800000> : vector<10xf32>
    %30 = vector.multi_reduction <maximumf>, %29, %cst_14 [1] : vector<10x10xf32> to vector<10xf32>
    %31 = vector.shape_cast %30 : vector<10xf32> to vector<10x1xf32>
    %32 = vector.broadcast %31 : vector<10x1xf32> to vector<10x10xf32>
    %33 = arith.subf %29, %32 : vector<10x10xf32>
    %34 = math.exp %33 : vector<10x10xf32>
    %cst_15 = arith.constant dense<0.000000e+00> : vector<10xf32>
    %35 = vector.multi_reduction <add>, %34, %cst_15 [1] : vector<10x10xf32> to vector<10xf32>
    %36 = vector.shape_cast %35 : vector<10xf32> to vector<10x1xf32>
    %37 = tpu.reciprocal %36 {approx = true} : vector<10x1xf32> -> vector<10x1xf32>
    %38 = vector.broadcast %37 : vector<10x1xf32> to vector<10x10xf32>
    %39 = arith.mulf %34, %38 : vector<10x10xf32>
    %40 = arith.truncf %39 : vector<10x10xf32> to vector<10x10xbf16>
    %cst_16 = arith.constant dense<0.000000e+00> : vector<10x8xf32>
    %41 = tpu.matmul %40, %26, %cst_16 {dimension_numbers = #tpu.dot_dimension_numbers<[1], [0], [0], [1], [0, 0, 1, 1], [], []>} : vector<10x10xbf16>, vector<10x8xbf16>, vector<10x8xf32> -> vector<10x8xf32>
    %42 = vector.extract_strided_slice %1 {offsets = [0, 16], sizes = [10, 8], strides = [1, 1]} : vector<10x32xbf16> to vector<10x8xbf16>
    %43 = vector.extract_strided_slice %3 {offsets = [0, 16], sizes = [10, 8], strides = [1, 1]} : vector<10x32xbf16> to vector<10x8xbf16>
    %44 = vector.extract_strided_slice %5 {offsets = [0, 16], sizes = [10, 8], strides = [1, 1]} : vector<10x32xbf16> to vector<10x8xbf16>
    %cst_17 = arith.constant dense<0.000000e+00> : vector<10x10xf32>
    %45 = tpu.matmul %42, %43, %cst_17 {dimension_numbers = #tpu.dot_dimension_numbers<[1], [1], [0], [0], [0, 0, 1, 0], [], []>} : vector<10x8xbf16>, vector<10x8xbf16>, vector<10x10xf32> -> vector<10x10xf32>
    %cst_18 = arith.constant 0.353553385 : f32
    %46 = vector.broadcast %cst_18 : f32 to vector<10x10xf32>
    %47 = arith.mulf %45, %46 : vector<10x10xf32>
    %cst_19 = arith.constant dense<0xFF800000> : vector<10xf32>
    %48 = vector.multi_reduction <maximumf>, %47, %cst_19 [1] : vector<10x10xf32> to vector<10xf32>
    %49 = vector.shape_cast %48 : vector<10xf32> to vector<10x1xf32>
    %50 = vector.broadcast %49 : vector<10x1xf32> to vector<10x10xf32>
    %51 = arith.subf %47, %50 : vector<10x10xf32>
    %52 = math.exp %51 : vector<10x10xf32>
    %cst_20 = arith.constant dense<0.000000e+00> : vector<10xf32>
    %53 = vector.multi_reduction <add>, %52, %cst_20 [1] : vector<10x10xf32> to vector<10xf32>
    %54 = vector.shape_cast %53 : vector<10xf32> to vector<10x1xf32>
    %55 = tpu.reciprocal %54 {approx = true} : vector<10x1xf32> -> vector<10x1xf32>
    %56 = vector.broadcast %55 : vector<10x1xf32> to vector<10x10xf32>
    %57 = arith.mulf %52, %56 : vector<10x10xf32>
    %58 = arith.truncf %57 : vector<10x10xf32> to vector<10x10xbf16>
    %cst_21 = arith.constant dense<0.000000e+00> : vector<10x8xf32>
    %59 = tpu.matmul %58, %44, %cst_21 {dimension_numbers = #tpu.dot_dimension_numbers<[1], [0], [0], [1], [0, 0, 1, 1], [], []>} : vector<10x10xbf16>, vector<10x8xbf16>, vector<10x8xf32> -> vector<10x8xf32>
    %60 = vector.extract_strided_slice %1 {offsets = [0, 24], sizes = [10, 8], strides = [1, 1]} : vector<10x32xbf16> to vector<10x8xbf16>
    %61 = vector.extract_strided_slice %3 {offsets = [0, 24], sizes = [10, 8], strides = [1, 1]} : vector<10x32xbf16> to vector<10x8xbf16>
    %62 = vector.extract_strided_slice %5 {offsets = [0, 24], sizes = [10, 8], strides = [1, 1]} : vector<10x32xbf16> to vector<10x8xbf16>
    %cst_22 = arith.constant dense<0.000000e+00> : vector<10x10xf32>
    %63 = tpu.matmul %60, %61, %cst_22 {dimension_numbers = #tpu.dot_dimension_numbers<[1], [1], [0], [0], [0, 0, 1, 0], [], []>} : vector<10x8xbf16>, vector<10x8xbf16>, vector<10x10xf32> -> vector<10x10xf32>
    %cst_23 = arith.constant 0.353553385 : f32
    %64 = vector.broadcast %cst_23 : f32 to vector<10x10xf32>
    %65 = arith.mulf %63, %64 : vector<10x10xf32>
    %cst_24 = arith.constant dense<0xFF800000> : vector<10xf32>
    %66 = vector.multi_reduction <maximumf>, %65, %cst_24 [1] : vector<10x10xf32> to vector<10xf32>
    %67 = vector.shape_cast %66 : vector<10xf32> to vector<10x1xf32>
    %68 = vector.broadcast %67 : vector<10x1xf32> to vector<10x10xf32>
    %69 = arith.subf %65, %68 : vector<10x10xf32>
    %70 = math.exp %69 : vector<10x10xf32>
    %cst_25 = arith.constant dense<0.000000e+00> : vector<10xf32>
    %71 = vector.multi_reduction <add>, %70, %cst_25 [1] : vector<10x10xf32> to vector<10xf32>
    %72 = vector.shape_cast %71 : vector<10xf32> to vector<10x1xf32>
    %73 = tpu.reciprocal %72 {approx = true} : vector<10x1xf32> -> vector<10x1xf32>
    %74 = vector.broadcast %73 : vector<10x1xf32> to vector<10x10xf32>
    %75 = arith.mulf %70, %74 : vector<10x10xf32>
    %76 = arith.truncf %75 : vector<10x10xf32> to vector<10x10xbf16>
    %cst_26 = arith.constant dense<0.000000e+00> : vector<10x8xf32>
    %77 = tpu.matmul %76, %62, %cst_26 {dimension_numbers = #tpu.dot_dimension_numbers<[1], [0], [0], [1], [0, 0, 1, 1], [], []>} : vector<10x10xbf16>, vector<10x8xbf16>, vector<10x8xf32> -> vector<10x8xf32>
    %78 = tpu.concatenate %23, %41, %59, %77 in 1 : vector<10x8xf32>, vector<10x8xf32>, vector<10x8xf32>, vector<10x8xf32> -> vector<10x32xf32>
    %79 = arith.truncf %78 : vector<10x32xf32> to vector<10x32xbf16>
    %c0_27 = arith.constant 0 : index
    %c0_28 = arith.constant 0 : index
    %c0_29 = arith.constant 0 : index
    %80 = vector.load %arg4[%c0_27, %c0_28, %c0_29] : memref<1x10x32xbf16, #tpu.memory_space<vmem>>, vector<1x10x32xbf16>
    %81 = vector.shape_cast %80 : vector<1x10x32xbf16> to vector<10x32xbf16>
    %82 = vector.shape_cast %79 : vector<10x32xbf16> to vector<1x10x32xbf16>
    tpu.vector_store %arg4[%c0_27, %c0_28, %c0_29], %82 {strides = array<i32>} : memref<1x10x32xbf16, #tpu.memory_space<vmem>>, vector<1x10x32xbf16>,
    return
  }
  func.func @transform_0(%arg0: i32) -> (i32, i32, i32) {
    %c0_i32 = arith.constant 0 : i32
    %c0_i32_0 = arith.constant 0 : i32
    %c0_i32_1 = arith.constant 0 : i32
    return %arg0, %c0_i32, %c0_i32_0 : i32, i32, i32
  }
  func.func @transform_1(%arg0: i32) -> (i32, i32, i32) {
    %c0_i32 = arith.constant 0 : i32
    %c0_i32_0 = arith.constant 0 : i32
    %c0_i32_1 = arith.constant 0 : i32
    return %arg0, %c0_i32, %c0_i32_0 : i32, i32, i32
  }
  func.func @transform_2(%arg0: i32) -> (i32, i32, i32) {
    %c0_i32 = arith.constant 0 : i32
    %c0_i32_0 = arith.constant 0 : i32
    %c0_i32_1 = arith.constant 0 : i32
    return %arg0, %c0_i32, %c0_i32_0 : i32, i32, i32
  }
  func.func @transform_3(%arg0: i32) -> (i32, i32, i32) {
    %c0_i32 = arith.constant 0 : i32
    %c0_i32_0 = arith.constant 0 : i32
    %c0_i32_1 = arith.constant 0 : i32
    return %arg0, %c0_i32, %c0_i32_0 : i32, i32, i32
  }
}

module attributes {stable_mosaic.version = 11 : i64} {
  func.func @_add_ln_kernel(%arg0: i32, %arg1: memref<20x32xf32, #tpu.memory_space<vmem>>, %arg2: memref<20x32xf32, #tpu.memory_space<vmem>>, %arg3: memref<1x32xf32, #tpu.memory_space<vmem>>, %arg4: memref<1x32xf32, #tpu.memory_space<vmem>>, %arg5: memref<20x32xf32, #tpu.memory_space<vmem>>) attributes {dimension_semantics = [#tpu.dimension_semantics<parallel>], iteration_bounds = array<i64: 1>, scalar_prefetch = 0 : i64, scratch_operands = 0 : i64, tpu.core_type = #tpu.core_type<tc>, window_params = [{transform_indices = @transform_0, window_bounds = array<i64: 20, 32>}, {transform_indices = @transform_1, window_bounds = array<i64: 20, 32>}, {pipeline_mode = #tpu.pipeline_mode<synchronous>, transform_indices = @transform_2, window_bounds = array<i64: 1, 32>}, {pipeline_mode = #tpu.pipeline_mode<synchronous>, transform_indices = @transform_3, window_bounds = array<i64: 1, 32>}, {transform_indices = @transform_4, window_bounds = array<i64: 20, 32>}]} {
    %c0 = arith.constant 0 : index
    %c0_0 = arith.constant 0 : index
    %0 = vector.load %arg1[%c0, %c0_0] : memref<20x32xf32, #tpu.memory_space<vmem>>, vector<20x32xf32>
    %c0_1 = arith.constant 0 : index
    %c0_2 = arith.constant 0 : index
    %1 = vector.load %arg2[%c0_1, %c0_2] : memref<20x32xf32, #tpu.memory_space<vmem>>, vector<20x32xf32>
    %2 = arith.addf %0, %1 : vector<20x32xf32>
    %cst = arith.constant dense<0.000000e+00> : vector<20xf32>
    %3 = vector.multi_reduction <add>, %2, %cst [1] : vector<20x32xf32> to vector<20xf32>
    %4 = vector.shape_cast %3 : vector<20xf32> to vector<20x1xf32>
    %cst_3 = arith.constant 3.200000e+01 : f32
    %5 = vector.broadcast %cst_3 : f32 to vector<20x1xf32>
    %6 = arith.divf %4, %5 : vector<20x1xf32>
    %7 = vector.broadcast %6 : vector<20x1xf32> to vector<20x32xf32>
    %8 = arith.subf %2, %7 : vector<20x32xf32>
    %9 = arith.mulf %8, %8 : vector<20x32xf32>
    %cst_4 = arith.constant dense<0.000000e+00> : vector<20xf32>
    %10 = vector.multi_reduction <add>, %9, %cst_4 [1] : vector<20x32xf32> to vector<20xf32>
    %11 = vector.shape_cast %10 : vector<20xf32> to vector<20x1xf32>
    %cst_5 = arith.constant 3.200000e+01 : f32
    %12 = vector.broadcast %cst_5 : f32 to vector<20x1xf32>
    %13 = arith.divf %11, %12 : vector<20x1xf32>
    %14 = vector.broadcast %6 : vector<20x1xf32> to vector<20x32xf32>
    %15 = arith.subf %2, %14 : vector<20x32xf32>
    %cst_6 = arith.constant 9.99999974E-6 : f32
    %16 = vector.broadcast %cst_6 : f32 to vector<20x1xf32>
    %17 = arith.addf %13, %16 : vector<20x1xf32>
    %18 = math.rsqrt %17 : vector<20x1xf32>
    %19 = vector.broadcast %18 : vector<20x1xf32> to vector<20x32xf32>
    %20 = arith.mulf %15, %19 : vector<20x32xf32>
    %c0_7 = arith.constant 0 : index
    %c0_8 = arith.constant 0 : index
    %21 = vector.load %arg3[%c0_7, %c0_8] : memref<1x32xf32, #tpu.memory_space<vmem>>, vector<1x32xf32>
    %22 = vector.broadcast %21 : vector<1x32xf32> to vector<20x32xf32>
    %23 = arith.mulf %20, %22 : vector<20x32xf32>
    %c0_9 = arith.constant 0 : index
    %c0_10 = arith.constant 0 : index
    %24 = vector.load %arg4[%c0_9, %c0_10] : memref<1x32xf32, #tpu.memory_space<vmem>>, vector<1x32xf32>
    %25 = vector.broadcast %24 : vector<1x32xf32> to vector<20x32xf32>
    %26 = arith.addf %23, %25 : vector<20x32xf32>
    %c0_11 = arith.constant 0 : index
    %c0_12 = arith.constant 0 : index
    %27 = vector.load %arg5[%c0_11, %c0_12] : memref<20x32xf32, #tpu.memory_space<vmem>>, vector<20x32xf32>
    tpu.vector_store %arg5[%c0_11, %c0_12], %26 {strides = array<i32>} : memref<20x32xf32, #tpu.memory_space<vmem>>, vector<20x32xf32>,
    return
  }
  func.func @transform_0(%arg0: i32) -> (i32, i32) {
    %c0_i32 = arith.constant 0 : i32
    %c0_i32_0 = arith.constant 0 : i32
    return %arg0, %c0_i32 : i32, i32
  }
  func.func @transform_1(%arg0: i32) -> (i32, i32) {
    %c0_i32 = arith.constant 0 : i32
    %c0_i32_0 = arith.constant 0 : i32
    return %arg0, %c0_i32 : i32, i32
  }
  func.func @transform_2(%arg0: i32) -> (i32, i32) {
    %c0_i32 = arith.constant 0 : i32
    %c0_i32_0 = arith.constant 0 : i32
    %c0_i32_1 = arith.constant 0 : i32
    return %c0_i32, %c0_i32_0 : i32, i32
  }
  func.func @transform_3(%arg0: i32) -> (i32, i32) {
    %c0_i32 = arith.constant 0 : i32
    %c0_i32_0 = arith.constant 0 : i32
    %c0_i32_1 = arith.constant 0 : i32
    return %c0_i32, %c0_i32_0 : i32, i32
  }
  func.func @transform_4(%arg0: i32) -> (i32, i32) {
    %c0_i32 = arith.constant 0 : i32
    %c0_i32_0 = arith.constant 0 : i32
    return %arg0, %c0_i32 : i32, i32
  }
}

module attributes {stable_mosaic.version = 11 : i64} {
  func.func @_matmul_kernel(%arg0: i32, %arg1: i32, %arg2: i32, %arg3: memref<20x32xbf16, #tpu.memory_space<vmem>>, %arg4: memref<32x32xbf16, #tpu.memory_space<vmem>>, %arg5: memref<1x32xf32, #tpu.memory_space<vmem>>, %arg6: memref<20x32xf32, #tpu.memory_space<vmem>>, %arg7: memref<20x32xf32, #tpu.memory_space<vmem>>) attributes {dimension_semantics = [#tpu.dimension_semantics<parallel>, #tpu.dimension_semantics<parallel>, #tpu.dimension_semantics<arbitrary>], iteration_bounds = array<i64: 1, 1, 1>, scalar_prefetch = 0 : i64, scratch_operands = 1 : i64, tpu.core_type = #tpu.core_type<tc>, window_params = [{transform_indices = @transform_0, window_bounds = array<i64: 20, 32>}, {transform_indices = @transform_1, window_bounds = array<i64: 32, 32>}, {transform_indices = @transform_2, window_bounds = array<i64: 1, 32>}, {transform_indices = @transform_3, window_bounds = array<i64: 20, 32>}]} {
    %c0_i32 = arith.constant 0 : i32
    %0 = arith.cmpi eq, %arg2, %c0_i32 : i32
    %1 = arith.extui %0 : i1 to i32
    %c0_i32_0 = arith.constant 0 : i32
    %2 = arith.cmpi ne, %1, %c0_i32_0 : i32
    scf.if %2 {
      %cst_10 = arith.constant 0.000000e+00 : f32
      %12 = vector.broadcast %cst_10 : f32 to vector<20x32xf32>
      %c0_11 = arith.constant 0 : index
      %c0_12 = arith.constant 0 : index
      %13 = vector.load %arg7[%c0_11, %c0_12] : memref<20x32xf32, #tpu.memory_space<vmem>>, vector<20x32xf32>
      tpu.vector_store %arg7[%c0_11, %c0_12], %12 {strides = array<i32>} : memref<20x32xf32, #tpu.memory_space<vmem>>, vector<20x32xf32>,
    } else {
    }
    %c0 = arith.constant 0 : index
    %c0_1 = arith.constant 0 : index
    %3 = vector.load %arg7[%c0, %c0_1] : memref<20x32xf32, #tpu.memory_space<vmem>>, vector<20x32xf32>
    %c0_2 = arith.constant 0 : index
    %c0_3 = arith.constant 0 : index
    %4 = vector.load %arg3[%c0_2, %c0_3] : memref<20x32xbf16, #tpu.memory_space<vmem>>, vector<20x32xbf16>
    %c0_4 = arith.constant 0 : index
    %c0_5 = arith.constant 0 : index
    %5 = vector.load %arg4[%c0_4, %c0_5] : memref<32x32xbf16, #tpu.memory_space<vmem>>, vector<32x32xbf16>
    %cst = arith.constant dense<0.000000e+00> : vector<20x32xf32>
    %6 = tpu.matmul %4, %5, %cst {dimension_numbers = #tpu.dot_dimension_numbers<[1], [0], [0], [1], [0, 0, 1, 1], [], []>} : vector<20x32xbf16>, vector<32x32xbf16>, vector<20x32xf32> -> vector<20x32xf32>
    %7 = arith.addf %3, %6 : vector<20x32xf32>
    %c0_6 = arith.constant 0 : index
    %c0_7 = arith.constant 0 : index
    %8 = vector.load %arg7[%c0_6, %c0_7] : memref<20x32xf32, #tpu.memory_space<vmem>>, vector<20x32xf32>
    tpu.vector_store %arg7[%c0_6, %c0_7], %7 {strides = array<i32>} : memref<20x32xf32, #tpu.memory_space<vmem>>, vector<20x32xf32>,
    %c0_i32_8 = arith.constant 0 : i32
    %9 = arith.cmpi eq, %arg2, %c0_i32_8 : i32
    %10 = arith.extui %9 : i1 to i32
    %c0_i32_9 = arith.constant 0 : i32
    %11 = arith.cmpi ne, %10, %c0_i32_9 : i32
    scf.if %11 {
      %c0_10 = arith.constant 0 : index
      %c0_11 = arith.constant 0 : index
      %12 = vector.load %arg7[%c0_10, %c0_11] : memref<20x32xf32, #tpu.memory_space<vmem>>, vector<20x32xf32>
      %c0_12 = arith.constant 0 : index
      %c0_13 = arith.constant 0 : index
      %13 = vector.load %arg5[%c0_12, %c0_13] : memref<1x32xf32, #tpu.memory_space<vmem>>, vector<1x32xf32>
      %14 = vector.broadcast %13 : vector<1x32xf32> to vector<20x32xf32>
      %15 = arith.addf %12, %14 : vector<20x32xf32>
      %c0_14 = arith.constant 0 : index
      %c0_15 = arith.constant 0 : index
      %16 = vector.load %arg6[%c0_14, %c0_15] : memref<20x32xf32, #tpu.memory_space<vmem>>, vector<20x32xf32>
      tpu.vector_store %arg6[%c0_14, %c0_15], %15 {strides = array<i32>} : memref<20x32xf32, #tpu.memory_space<vmem>>, vector<20x32xf32>,
    } else {
    }
    return
  }
  func.func @transform_0(%arg0: i32, %arg1: i32, %arg2: i32) -> (i32, i32) {
    %c0_i32 = arith.constant 0 : i32
    return %arg0, %arg2 : i32, i32
  }
  func.func @transform_1(%arg0: i32, %arg1: i32, %arg2: i32) -> (i32, i32) {
    %c0_i32 = arith.constant 0 : i32
    return %arg2, %arg1 : i32, i32
  }
  func.func @transform_2(%arg0: i32, %arg1: i32, %arg2: i32) -> (i32, i32) {
    %c0_i32 = arith.constant 0 : i32
    %c0_i32_0 = arith.constant 0 : i32
    return %c0_i32, %arg1 : i32, i32
  }
  func.func @transform_3(%arg0: i32, %arg1: i32, %arg2: i32) -> (i32, i32) {
    %c0_i32 = arith.constant 0 : i32
    return %arg0, %arg1 : i32, i32
  }
}

module attributes {stable_mosaic.version = 11 : i64} {
  func.func @_matmul_kernel(%arg0: i32, %arg1: i32, %arg2: i32, %arg3: memref<20x32xbf16, #tpu.memory_space<vmem>>, %arg4: memref<32x64xbf16, #tpu.memory_space<vmem>>, %arg5: memref<1x64xf32, #tpu.memory_space<vmem>>, %arg6: memref<20x64xbf16, #tpu.memory_space<vmem>>, %arg7: memref<20x64xf32, #tpu.memory_space<vmem>>) attributes {dimension_semantics = [#tpu.dimension_semantics<parallel>, #tpu.dimension_semantics<parallel>, #tpu.dimension_semantics<arbitrary>], iteration_bounds = array<i64: 1, 1, 1>, scalar_prefetch = 0 : i64, scratch_operands = 1 : i64, tpu.core_type = #tpu.core_type<tc>, window_params = [{transform_indices = @transform_0, window_bounds = array<i64: 20, 32>}, {transform_indices = @transform_1, window_bounds = array<i64: 32, 64>}, {transform_indices = @transform_2, window_bounds = array<i64: 1, 64>}, {transform_indices = @transform_3, window_bounds = array<i64: 20, 64>}]} {
    %c0_i32 = arith.constant 0 : i32
    %0 = arith.cmpi eq, %arg2, %c0_i32 : i32
    %1 = arith.extui %0 : i1 to i32
    %c0_i32_0 = arith.constant 0 : i32
    %2 = arith.cmpi ne, %1, %c0_i32_0 : i32
    scf.if %2 {
      %cst_10 = arith.constant 0.000000e+00 : f32
      %12 = vector.broadcast %cst_10 : f32 to vector<20x64xf32>
      %c0_11 = arith.constant 0 : index
      %c0_12 = arith.constant 0 : index
      %13 = vector.load %arg7[%c0_11, %c0_12] : memref<20x64xf32, #tpu.memory_space<vmem>>, vector<20x64xf32>
      tpu.vector_store %arg7[%c0_11, %c0_12], %12 {strides = array<i32>} : memref<20x64xf32, #tpu.memory_space<vmem>>, vector<20x64xf32>,
    } else {
    }
    %c0 = arith.constant 0 : index
    %c0_1 = arith.constant 0 : index
    %3 = vector.load %arg7[%c0, %c0_1] : memref<20x64xf32, #tpu.memory_space<vmem>>, vector<20x64xf32>
    %c0_2 = arith.constant 0 : index
    %c0_3 = arith.constant 0 : index
    %4 = vector.load %arg3[%c0_2, %c0_3] : memref<20x32xbf16, #tpu.memory_space<vmem>>, vector<20x32xbf16>
    %c0_4 = arith.constant 0 : index
    %c0_5 = arith.constant 0 : index
    %5 = vector.load %arg4[%c0_4, %c0_5] : memref<32x64xbf16, #tpu.memory_space<vmem>>, vector<32x64xbf16>
    %cst = arith.constant dense<0.000000e+00> : vector<20x64xf32>
    %6 = tpu.matmul %4, %5, %cst {dimension_numbers = #tpu.dot_dimension_numbers<[1], [0], [0], [1], [0, 0, 1, 1], [], []>} : vector<20x32xbf16>, vector<32x64xbf16>, vector<20x64xf32> -> vector<20x64xf32>
    %7 = arith.addf %3, %6 : vector<20x64xf32>
    %c0_6 = arith.constant 0 : index
    %c0_7 = arith.constant 0 : index
    %8 = vector.load %arg7[%c0_6, %c0_7] : memref<20x64xf32, #tpu.memory_space<vmem>>, vector<20x64xf32>
    tpu.vector_store %arg7[%c0_6, %c0_7], %7 {strides = array<i32>} : memref<20x64xf32, #tpu.memory_space<vmem>>, vector<20x64xf32>,
    %c0_i32_8 = arith.constant 0 : i32
    %9 = arith.cmpi eq, %arg2, %c0_i32_8 : i32
    %10 = arith.extui %9 : i1 to i32
    %c0_i32_9 = arith.constant 0 : i32
    %11 = arith.cmpi ne, %10, %c0_i32_9 : i32
    scf.if %11 {
      %c0_10 = arith.constant 0 : index
      %c0_11 = arith.constant 0 : index
      %12 = vector.load %arg7[%c0_10, %c0_11] : memref<20x64xf32, #tpu.memory_space<vmem>>, vector<20x64xf32>
      %c0_12 = arith.constant 0 : index
      %c0_13 = arith.constant 0 : index
      %13 = vector.load %arg5[%c0_12, %c0_13] : memref<1x64xf32, #tpu.memory_space<vmem>>, vector<1x64xf32>
      %14 = vector.broadcast %13 : vector<1x64xf32> to vector<20x64xf32>
      %15 = arith.addf %12, %14 : vector<20x64xf32>
      %cst_14 = arith.constant 0.000000e+00 : f32
      %16 = vector.broadcast %cst_14 : f32 to vector<20x64xf32>
      %17 = arith.maximumf %15, %16 : vector<20x64xf32>
      %18 = arith.truncf %17 : vector<20x64xf32> to vector<20x64xbf16>
      %c0_15 = arith.constant 0 : index
      %c0_16 = arith.constant 0 : index
      %19 = vector.load %arg6[%c0_15, %c0_16] : memref<20x64xbf16, #tpu.memory_space<vmem>>, vector<20x64xbf16>
      tpu.vector_store %arg6[%c0_15, %c0_16], %18 {strides = array<i32>} : memref<20x64xbf16, #tpu.memory_space<vmem>>, vector<20x64xbf16>,
    } else {
    }
    return
  }
  func.func @transform_0(%arg0: i32, %arg1: i32, %arg2: i32) -> (i32, i32) {
    %c0_i32 = arith.constant 0 : i32
    return %arg0, %arg2 : i32, i32
  }
  func.func @transform_1(%arg0: i32, %arg1: i32, %arg2: i32) -> (i32, i32) {
    %c0_i32 = arith.constant 0 : i32
    return %arg2, %arg1 : i32, i32
  }
  func.func @transform_2(%arg0: i32, %arg1: i32, %arg2: i32) -> (i32, i32) {
    %c0_i32 = arith.constant 0 : i32
    %c0_i32_0 = arith.constant 0 : i32
    return %c0_i32, %arg1 : i32, i32
  }
  func.func @transform_3(%arg0: i32, %arg1: i32, %arg2: i32) -> (i32, i32) {
    %c0_i32 = arith.constant 0 : i32
    return %arg0, %arg1 : i32, i32
  }
}

module attributes {stable_mosaic.version = 11 : i64} {
  func.func @_matmul_kernel(%arg0: i32, %arg1: i32, %arg2: i32, %arg3: memref<20x64xbf16, #tpu.memory_space<vmem>>, %arg4: memref<64x32xbf16, #tpu.memory_space<vmem>>, %arg5: memref<1x32xf32, #tpu.memory_space<vmem>>, %arg6: memref<20x32xf32, #tpu.memory_space<vmem>>, %arg7: memref<20x32xf32, #tpu.memory_space<vmem>>) attributes {dimension_semantics = [#tpu.dimension_semantics<parallel>, #tpu.dimension_semantics<parallel>, #tpu.dimension_semantics<arbitrary>], iteration_bounds = array<i64: 1, 1, 1>, scalar_prefetch = 0 : i64, scratch_operands = 1 : i64, tpu.core_type = #tpu.core_type<tc>, window_params = [{transform_indices = @transform_0, window_bounds = array<i64: 20, 64>}, {transform_indices = @transform_1, window_bounds = array<i64: 64, 32>}, {transform_indices = @transform_2, window_bounds = array<i64: 1, 32>}, {transform_indices = @transform_3, window_bounds = array<i64: 20, 32>}]} {
    %c0_i32 = arith.constant 0 : i32
    %0 = arith.cmpi eq, %arg2, %c0_i32 : i32
    %1 = arith.extui %0 : i1 to i32
    %c0_i32_0 = arith.constant 0 : i32
    %2 = arith.cmpi ne, %1, %c0_i32_0 : i32
    scf.if %2 {
      %cst_10 = arith.constant 0.000000e+00 : f32
      %12 = vector.broadcast %cst_10 : f32 to vector<20x32xf32>
      %c0_11 = arith.constant 0 : index
      %c0_12 = arith.constant 0 : index
      %13 = vector.load %arg7[%c0_11, %c0_12] : memref<20x32xf32, #tpu.memory_space<vmem>>, vector<20x32xf32>
      tpu.vector_store %arg7[%c0_11, %c0_12], %12 {strides = array<i32>} : memref<20x32xf32, #tpu.memory_space<vmem>>, vector<20x32xf32>,
    } else {
    }
    %c0 = arith.constant 0 : index
    %c0_1 = arith.constant 0 : index
    %3 = vector.load %arg7[%c0, %c0_1] : memref<20x32xf32, #tpu.memory_space<vmem>>, vector<20x32xf32>
    %c0_2 = arith.constant 0 : index
    %c0_3 = arith.constant 0 : index
    %4 = vector.load %arg3[%c0_2, %c0_3] : memref<20x64xbf16, #tpu.memory_space<vmem>>, vector<20x64xbf16>
    %c0_4 = arith.constant 0 : index
    %c0_5 = arith.constant 0 : index
    %5 = vector.load %arg4[%c0_4, %c0_5] : memref<64x32xbf16, #tpu.memory_space<vmem>>, vector<64x32xbf16>
    %cst = arith.constant dense<0.000000e+00> : vector<20x32xf32>
    %6 = tpu.matmul %4, %5, %cst {dimension_numbers = #tpu.dot_dimension_numbers<[1], [0], [0], [1], [0, 0, 1, 1], [], []>} : vector<20x64xbf16>, vector<64x32xbf16>, vector<20x32xf32> -> vector<20x32xf32>
    %7 = arith.addf %3, %6 : vector<20x32xf32>
    %c0_6 = arith.constant 0 : index
    %c0_7 = arith.constant 0 : index
    %8 = vector.load %arg7[%c0_6, %c0_7] : memref<20x32xf32, #tpu.memory_space<vmem>>, vector<20x32xf32>
    tpu.vector_store %arg7[%c0_6, %c0_7], %7 {strides = array<i32>} : memref<20x32xf32, #tpu.memory_space<vmem>>, vector<20x32xf32>,
    %c0_i32_8 = arith.constant 0 : i32
    %9 = arith.cmpi eq, %arg2, %c0_i32_8 : i32
    %10 = arith.extui %9 : i1 to i32
    %c0_i32_9 = arith.constant 0 : i32
    %11 = arith.cmpi ne, %10, %c0_i32_9 : i32
    scf.if %11 {
      %c0_10 = arith.constant 0 : index
      %c0_11 = arith.constant 0 : index
      %12 = vector.load %arg7[%c0_10, %c0_11] : memref<20x32xf32, #tpu.memory_space<vmem>>, vector<20x32xf32>
      %c0_12 = arith.constant 0 : index
      %c0_13 = arith.constant 0 : index
      %13 = vector.load %arg5[%c0_12, %c0_13] : memref<1x32xf32, #tpu.memory_space<vmem>>, vector<1x32xf32>
      %14 = vector.broadcast %13 : vector<1x32xf32> to vector<20x32xf32>
      %15 = arith.addf %12, %14 : vector<20x32xf32>
      %c0_14 = arith.constant 0 : index
      %c0_15 = arith.constant 0 : index
      %16 = vector.load %arg6[%c0_14, %c0_15] : memref<20x32xf32, #tpu.memory_space<vmem>>, vector<20x32xf32>
      tpu.vector_store %arg6[%c0_14, %c0_15], %15 {strides = array<i32>} : memref<20x32xf32, #tpu.memory_space<vmem>>, vector<20x32xf32>,
    } else {
    }
    return
  }
  func.func @transform_0(%arg0: i32, %arg1: i32, %arg2: i32) -> (i32, i32) {
    %c0_i32 = arith.constant 0 : i32
    return %arg0, %arg2 : i32, i32
  }
  func.func @transform_1(%arg0: i32, %arg1: i32, %arg2: i32) -> (i32, i32) {
    %c0_i32 = arith.constant 0 : i32
    return %arg2, %arg1 : i32, i32
  }
  func.func @transform_2(%arg0: i32, %arg1: i32, %arg2: i32) -> (i32, i32) {
    %c0_i32 = arith.constant 0 : i32
    %c0_i32_0 = arith.constant 0 : i32
    return %c0_i32, %arg1 : i32, i32
  }
  func.func @transform_3(%arg0: i32, %arg1: i32, %arg2: i32) -> (i32, i32) {
    %c0_i32 = arith.constant 0 : i32
    return %arg0, %arg1 : i32, i32
  }
}

module attributes {stable_mosaic.version = 11 : i64} {
  func.func @_matmul_kernel(%arg0: i32, %arg1: i32, %arg2: i32, %arg3: memref<20x32xbf16, #tpu.memory_space<vmem>>, %arg4: memref<32x64xbf16, #tpu.memory_space<vmem>>, %arg5: memref<1x64xf32, #tpu.memory_space<vmem>>, %arg6: memref<20x64xbf16, #tpu.memory_space<vmem>>, %arg7: memref<20x64xf32, #tpu.memory_space<vmem>>) attributes {dimension_semantics = [#tpu.dimension_semantics<parallel>, #tpu.dimension_semantics<parallel>, #tpu.dimension_semantics<arbitrary>], iteration_bounds = array<i64: 1, 1, 1>, scalar_prefetch = 0 : i64, scratch_operands = 1 : i64, tpu.core_type = #tpu.core_type<tc>, window_params = [{transform_indices = @transform_0, window_bounds = array<i64: 20, 32>}, {transform_indices = @transform_1, window_bounds = array<i64: 32, 64>}, {transform_indices = @transform_2, window_bounds = array<i64: 1, 64>}, {transform_indices = @transform_3, window_bounds = array<i64: 20, 64>}]} {
    %c0_i32 = arith.constant 0 : i32
    %0 = arith.cmpi eq, %arg2, %c0_i32 : i32
    %1 = arith.extui %0 : i1 to i32
    %c0_i32_0 = arith.constant 0 : i32
    %2 = arith.cmpi ne, %1, %c0_i32_0 : i32
    scf.if %2 {
      %cst_10 = arith.constant 0.000000e+00 : f32
      %12 = vector.broadcast %cst_10 : f32 to vector<20x64xf32>
      %c0_11 = arith.constant 0 : index
      %c0_12 = arith.constant 0 : index
      %13 = vector.load %arg7[%c0_11, %c0_12] : memref<20x64xf32, #tpu.memory_space<vmem>>, vector<20x64xf32>
      tpu.vector_store %arg7[%c0_11, %c0_12], %12 {strides = array<i32>} : memref<20x64xf32, #tpu.memory_space<vmem>>, vector<20x64xf32>,
    } else {
    }
    %c0 = arith.constant 0 : index
    %c0_1 = arith.constant 0 : index
    %3 = vector.load %arg7[%c0, %c0_1] : memref<20x64xf32, #tpu.memory_space<vmem>>, vector<20x64xf32>
    %c0_2 = arith.constant 0 : index
    %c0_3 = arith.constant 0 : index
    %4 = vector.load %arg3[%c0_2, %c0_3] : memref<20x32xbf16, #tpu.memory_space<vmem>>, vector<20x32xbf16>
    %c0_4 = arith.constant 0 : index
    %c0_5 = arith.constant 0 : index
    %5 = vector.load %arg4[%c0_4, %c0_5] : memref<32x64xbf16, #tpu.memory_space<vmem>>, vector<32x64xbf16>
    %cst = arith.constant dense<0.000000e+00> : vector<20x64xf32>
    %6 = tpu.matmul %4, %5, %cst {dimension_numbers = #tpu.dot_dimension_numbers<[1], [0], [0], [1], [0, 0, 1, 1], [], []>} : vector<20x32xbf16>, vector<32x64xbf16>, vector<20x64xf32> -> vector<20x64xf32>
    %7 = arith.addf %3, %6 : vector<20x64xf32>
    %c0_6 = arith.constant 0 : index
    %c0_7 = arith.constant 0 : index
    %8 = vector.load %arg7[%c0_6, %c0_7] : memref<20x64xf32, #tpu.memory_space<vmem>>, vector<20x64xf32>
    tpu.vector_store %arg7[%c0_6, %c0_7], %7 {strides = array<i32>} : memref<20x64xf32, #tpu.memory_space<vmem>>, vector<20x64xf32>,
    %c0_i32_8 = arith.constant 0 : i32
    %9 = arith.cmpi eq, %arg2, %c0_i32_8 : i32
    %10 = arith.extui %9 : i1 to i32
    %c0_i32_9 = arith.constant 0 : i32
    %11 = arith.cmpi ne, %10, %c0_i32_9 : i32
    scf.if %11 {
      %c0_10 = arith.constant 0 : index
      %c0_11 = arith.constant 0 : index
      %12 = vector.load %arg7[%c0_10, %c0_11] : memref<20x64xf32, #tpu.memory_space<vmem>>, vector<20x64xf32>
      %c0_12 = arith.constant 0 : index
      %c0_13 = arith.constant 0 : index
      %13 = vector.load %arg5[%c0_12, %c0_13] : memref<1x64xf32, #tpu.memory_space<vmem>>, vector<1x64xf32>
      %14 = vector.broadcast %13 : vector<1x64xf32> to vector<20x64xf32>
      %15 = arith.addf %12, %14 : vector<20x64xf32>
      %16 = arith.truncf %15 : vector<20x64xf32> to vector<20x64xbf16>
      %c0_14 = arith.constant 0 : index
      %c0_15 = arith.constant 0 : index
      %17 = vector.load %arg6[%c0_14, %c0_15] : memref<20x64xbf16, #tpu.memory_space<vmem>>, vector<20x64xbf16>
      tpu.vector_store %arg6[%c0_14, %c0_15], %16 {strides = array<i32>} : memref<20x64xbf16, #tpu.memory_space<vmem>>, vector<20x64xbf16>,
    } else {
    }
    return
  }
  func.func @transform_0(%arg0: i32, %arg1: i32, %arg2: i32) -> (i32, i32) {
    %c0_i32 = arith.constant 0 : i32
    return %arg0, %arg2 : i32, i32
  }
  func.func @transform_1(%arg0: i32, %arg1: i32, %arg2: i32) -> (i32, i32) {
    %c0_i32 = arith.constant 0 : i32
    return %arg2, %arg1 : i32, i32
  }
  func.func @transform_2(%arg0: i32, %arg1: i32, %arg2: i32) -> (i32, i32) {
    %c0_i32 = arith.constant 0 : i32
    %c0_i32_0 = arith.constant 0 : i32
    return %c0_i32, %arg1 : i32, i32
  }
  func.func @transform_3(%arg0: i32, %arg1: i32, %arg2: i32) -> (i32, i32) {
    %c0_i32 = arith.constant 0 : i32
    return %arg0, %arg1 : i32, i32
  }
}

module attributes {stable_mosaic.version = 11 : i64} {
  func.func @_mha_kernel(%arg0: i32, %arg1: memref<1x8x32xbf16, #tpu.memory_space<vmem>>, %arg2: memref<1x10x32xbf16, #tpu.memory_space<vmem>>, %arg3: memref<1x10x32xbf16, #tpu.memory_space<vmem>>, %arg4: memref<1x8x32xbf16, #tpu.memory_space<vmem>>) attributes {dimension_semantics = [#tpu.dimension_semantics<parallel>], iteration_bounds = array<i64: 2>, scalar_prefetch = 0 : i64, scratch_operands = 0 : i64, tpu.core_type = #tpu.core_type<tc>, window_params = [{transform_indices = @transform_0, window_bounds = array<i64: 1, 8, 32>}, {transform_indices = @transform_1, window_bounds = array<i64: 1, 10, 32>}, {transform_indices = @transform_2, window_bounds = array<i64: 1, 10, 32>}, {transform_indices = @transform_3, window_bounds = array<i64: 1, 8, 32>}]} {
    %c0 = arith.constant 0 : index
    %c0_0 = arith.constant 0 : index
    %c0_1 = arith.constant 0 : index
    %0 = vector.load %arg1[%c0, %c0_0, %c0_1] : memref<1x8x32xbf16, #tpu.memory_space<vmem>>, vector<1x8x32xbf16>
    %1 = vector.shape_cast %0 : vector<1x8x32xbf16> to vector<8x32xbf16>
    %c0_2 = arith.constant 0 : index
    %c0_3 = arith.constant 0 : index
    %c0_4 = arith.constant 0 : index
    %2 = vector.load %arg2[%c0_2, %c0_3, %c0_4] : memref<1x10x32xbf16, #tpu.memory_space<vmem>>, vector<1x10x32xbf16>
    %3 = vector.shape_cast %2 : vector<1x10x32xbf16> to vector<10x32xbf16>
    %c0_5 = arith.constant 0 : index
    %c0_6 = arith.constant 0 : index
    %c0_7 = arith.constant 0 : index
    %4 = vector.load %arg3[%c0_5, %c0_6, %c0_7] : memref<1x10x32xbf16, #tpu.memory_space<vmem>>, vector<1x10x32xbf16>
    %5 = vector.shape_cast %4 : vector<1x10x32xbf16> to vector<10x32xbf16>
    %6 = vector.extract_strided_slice %1 {offsets = [0, 0], sizes = [8, 8], strides = [1, 1]} : vector<8x32xbf16> to vector<8x8xbf16>
    %7 = vector.extract_strided_slice %3 {offsets = [0, 0], sizes = [10, 8], strides = [1, 1]} : vector<10x32xbf16> to vector<10x8xbf16>
    %8 = vector.extract_strided_slice %5 {offsets = [0, 0], sizes = [10, 8], strides = [1, 1]} : vector<10x32xbf16> to vector<10x8xbf16>
    %cst = arith.constant dense<0.000000e+00> : vector<8x10xf32>
    %9 = tpu.matmul %6, %7, %cst {dimension_numbers = #tpu.dot_dimension_numbers<[1], [1], [0], [0], [0, 0, 1, 0], [], []>} : vector<8x8xbf16>, vector<10x8xbf16>, vector<8x10xf32> -> vector<8x10xf32>
    %cst_8 = arith.constant 0.353553385 : f32
    %10 = vector.broadcast %cst_8 : f32 to vector<8x10xf32>
    %11 = arith.mulf %9, %10 : vector<8x10xf32>
    %cst_9 = arith.constant dense<0xFF800000> : vector<8xf32>
    %12 = vector.multi_reduction <maximumf>, %11, %cst_9 [1] : vector<8x10xf32> to vector<8xf32>
    %13 = vector.shape_cast %12 : vector<8xf32> to vector<8x1xf32>
    %14 = vector.broadcast %13 : vector<8x1xf32> to vector<8x10xf32>
    %15 = arith.subf %11, %14 : vector<8x10xf32>
    %16 = math.exp %15 : vector<8x10xf32>
    %cst_10 = arith.constant dense<0.000000e+00> : vector<8xf32>
    %17 = vector.multi_reduction <add>, %16, %cst_10 [1] : vector<8x10xf32> to vector<8xf32>
    %18 = vector.shape_cast %17 : vector<8xf32> to vector<8x1xf32>
    %19 = tpu.reciprocal %18 {approx = true} : vector<8x1xf32> -> vector<8x1xf32>
    %20 = vector.broadcast %19 : vector<8x1xf32> to vector<8x10xf32>
    %21 = arith.mulf %16, %20 : vector<8x10xf32>
    %22 = arith.truncf %21 : vector<8x10xf32> to vector<8x10xbf16>
    %cst_11 = arith.constant dense<0.000000e+00> : vector<8x8xf32>
    %23 = tpu.matmul %22, %8, %cst_11 {dimension_numbers = #tpu.dot_dimension_numbers<[1], [0], [0], [1], [0, 0, 1, 1], [], []>} : vector<8x10xbf16>, vector<10x8xbf16>, vector<8x8xf32> -> vector<8x8xf32>
    %24 = vector.extract_strided_slice %1 {offsets = [0, 8], sizes = [8, 8], strides = [1, 1]} : vector<8x32xbf16> to vector<8x8xbf16>
    %25 = vector.extract_strided_slice %3 {offsets = [0, 8], sizes = [10, 8], strides = [1, 1]} : vector<10x32xbf16> to vector<10x8xbf16>
    %26 = vector.extract_strided_slice %5 {offsets = [0, 8], sizes = [10, 8], strides = [1, 1]} : vector<10x32xbf16> to vector<10x8xbf16>
    %cst_12 = arith.constant dense<0.000000e+00> : vector<8x10xf32>
    %27 = tpu.matmul %24, %25, %cst_12 {dimension_numbers = #tpu.dot_dimension_numbers<[1], [1], [0], [0], [0, 0, 1, 0], [], []>} : vector<8x8xbf16>, vector<10x8xbf16>, vector<8x10xf32> -> vector<8x10xf32>
    %cst_13 = arith.constant 0.353553385 : f32
    %28 = vector.broadcast %cst_13 : f32 to vector<8x10xf32>
    %29 = arith.mulf %27, %28 : vector<8x10xf32>
    %cst_14 = arith.constant dense<0xFF800000> : vector<8xf32>
    %30 = vector.multi_reduction <maximumf>, %29, %cst_14 [1] : vector<8x10xf32> to vector<8xf32>
    %31 = vector.shape_cast %30 : vector<8xf32> to vector<8x1xf32>
    %32 = vector.broadcast %31 : vector<8x1xf32> to vector<8x10xf32>
    %33 = arith.subf %29, %32 : vector<8x10xf32>
    %34 = math.exp %33 : vector<8x10xf32>
    %cst_15 = arith.constant dense<0.000000e+00> : vector<8xf32>
    %35 = vector.multi_reduction <add>, %34, %cst_15 [1] : vector<8x10xf32> to vector<8xf32>
    %36 = vector.shape_cast %35 : vector<8xf32> to vector<8x1xf32>
    %37 = tpu.reciprocal %36 {approx = true} : vector<8x1xf32> -> vector<8x1xf32>
    %38 = vector.broadcast %37 : vector<8x1xf32> to vector<8x10xf32>
    %39 = arith.mulf %34, %38 : vector<8x10xf32>
    %40 = arith.truncf %39 : vector<8x10xf32> to vector<8x10xbf16>
    %cst_16 = arith.constant dense<0.000000e+00> : vector<8x8xf32>
    %41 = tpu.matmul %40, %26, %cst_16 {dimension_numbers = #tpu.dot_dimension_numbers<[1], [0], [0], [1], [0, 0, 1, 1], [], []>} : vector<8x10xbf16>, vector<10x8xbf16>, vector<8x8xf32> -> vector<8x8xf32>
    %42 = vector.extract_strided_slice %1 {offsets = [0, 16], sizes = [8, 8], strides = [1, 1]} : vector<8x32xbf16> to vector<8x8xbf16>
    %43 = vector.extract_strided_slice %3 {offsets = [0, 16], sizes = [10, 8], strides = [1, 1]} : vector<10x32xbf16> to vector<10x8xbf16>
    %44 = vector.extract_strided_slice %5 {offsets = [0, 16], sizes = [10, 8], strides = [1, 1]} : vector<10x32xbf16> to vector<10x8xbf16>
    %cst_17 = arith.constant dense<0.000000e+00> : vector<8x10xf32>
    %45 = tpu.matmul %42, %43, %cst_17 {dimension_numbers = #tpu.dot_dimension_numbers<[1], [1], [0], [0], [0, 0, 1, 0], [], []>} : vector<8x8xbf16>, vector<10x8xbf16>, vector<8x10xf32> -> vector<8x10xf32>
    %cst_18 = arith.constant 0.353553385 : f32
    %46 = vector.broadcast %cst_18 : f32 to vector<8x10xf32>
    %47 = arith.mulf %45, %46 : vector<8x10xf32>
    %cst_19 = arith.constant dense<0xFF800000> : vector<8xf32>
    %48 = vector.multi_reduction <maximumf>, %47, %cst_19 [1] : vector<8x10xf32> to vector<8xf32>
    %49 = vector.shape_cast %48 : vector<8xf32> to vector<8x1xf32>
    %50 = vector.broadcast %49 : vector<8x1xf32> to vector<8x10xf32>
    %51 = arith.subf %47, %50 : vector<8x10xf32>
    %52 = math.exp %51 : vector<8x10xf32>
    %cst_20 = arith.constant dense<0.000000e+00> : vector<8xf32>
    %53 = vector.multi_reduction <add>, %52, %cst_20 [1] : vector<8x10xf32> to vector<8xf32>
    %54 = vector.shape_cast %53 : vector<8xf32> to vector<8x1xf32>
    %55 = tpu.reciprocal %54 {approx = true} : vector<8x1xf32> -> vector<8x1xf32>
    %56 = vector.broadcast %55 : vector<8x1xf32> to vector<8x10xf32>
    %57 = arith.mulf %52, %56 : vector<8x10xf32>
    %58 = arith.truncf %57 : vector<8x10xf32> to vector<8x10xbf16>
    %cst_21 = arith.constant dense<0.000000e+00> : vector<8x8xf32>
    %59 = tpu.matmul %58, %44, %cst_21 {dimension_numbers = #tpu.dot_dimension_numbers<[1], [0], [0], [1], [0, 0, 1, 1], [], []>} : vector<8x10xbf16>, vector<10x8xbf16>, vector<8x8xf32> -> vector<8x8xf32>
    %60 = vector.extract_strided_slice %1 {offsets = [0, 24], sizes = [8, 8], strides = [1, 1]} : vector<8x32xbf16> to vector<8x8xbf16>
    %61 = vector.extract_strided_slice %3 {offsets = [0, 24], sizes = [10, 8], strides = [1, 1]} : vector<10x32xbf16> to vector<10x8xbf16>
    %62 = vector.extract_strided_slice %5 {offsets = [0, 24], sizes = [10, 8], strides = [1, 1]} : vector<10x32xbf16> to vector<10x8xbf16>
    %cst_22 = arith.constant dense<0.000000e+00> : vector<8x10xf32>
    %63 = tpu.matmul %60, %61, %cst_22 {dimension_numbers = #tpu.dot_dimension_numbers<[1], [1], [0], [0], [0, 0, 1, 0], [], []>} : vector<8x8xbf16>, vector<10x8xbf16>, vector<8x10xf32> -> vector<8x10xf32>
    %cst_23 = arith.constant 0.353553385 : f32
    %64 = vector.broadcast %cst_23 : f32 to vector<8x10xf32>
    %65 = arith.mulf %63, %64 : vector<8x10xf32>
    %cst_24 = arith.constant dense<0xFF800000> : vector<8xf32>
    %66 = vector.multi_reduction <maximumf>, %65, %cst_24 [1] : vector<8x10xf32> to vector<8xf32>
    %67 = vector.shape_cast %66 : vector<8xf32> to vector<8x1xf32>
    %68 = vector.broadcast %67 : vector<8x1xf32> to vector<8x10xf32>
    %69 = arith.subf %65, %68 : vector<8x10xf32>
    %70 = math.exp %69 : vector<8x10xf32>
    %cst_25 = arith.constant dense<0.000000e+00> : vector<8xf32>
    %71 = vector.multi_reduction <add>, %70, %cst_25 [1] : vector<8x10xf32> to vector<8xf32>
    %72 = vector.shape_cast %71 : vector<8xf32> to vector<8x1xf32>
    %73 = tpu.reciprocal %72 {approx = true} : vector<8x1xf32> -> vector<8x1xf32>
    %74 = vector.broadcast %73 : vector<8x1xf32> to vector<8x10xf32>
    %75 = arith.mulf %70, %74 : vector<8x10xf32>
    %76 = arith.truncf %75 : vector<8x10xf32> to vector<8x10xbf16>
    %cst_26 = arith.constant dense<0.000000e+00> : vector<8x8xf32>
    %77 = tpu.matmul %76, %62, %cst_26 {dimension_numbers = #tpu.dot_dimension_numbers<[1], [0], [0], [1], [0, 0, 1, 1], [], []>} : vector<8x10xbf16>, vector<10x8xbf16>, vector<8x8xf32> -> vector<8x8xf32>
    %78 = tpu.concatenate %23, %41, %59, %77 in 1 : vector<8x8xf32>, vector<8x8xf32>, vector<8x8xf32>, vector<8x8xf32> -> vector<8x32xf32>
    %79 = arith.truncf %78 : vector<8x32xf32> to vector<8x32xbf16>
    %c0_27 = arith.constant 0 : index
    %c0_28 = arith.constant 0 : index
    %c0_29 = arith.constant 0 : index
    %80 = vector.load %arg4[%c0_27, %c0_28, %c0_29] : memref<1x8x32xbf16, #tpu.memory_space<vmem>>, vector<1x8x32xbf16>
    %81 = vector.shape_cast %80 : vector<1x8x32xbf16> to vector<8x32xbf16>
    %82 = vector.shape_cast %79 : vector<8x32xbf16> to vector<1x8x32xbf16>
    tpu.vector_store %arg4[%c0_27, %c0_28, %c0_29], %82 {strides = array<i32>} : memref<1x8x32xbf16, #tpu.memory_space<vmem>>, vector<1x8x32xbf16>,
    return
  }
  func.func @transform_0(%arg0: i32) -> (i32, i32, i32) {
    %c0_i32 = arith.constant 0 : i32
    %c0_i32_0 = arith.constant 0 : i32
    %c0_i32_1 = arith.constant 0 : i32
    return %arg0, %c0_i32, %c0_i32_0 : i32, i32, i32
  }
  func.func @transform_1(%arg0: i32) -> (i32, i32, i32) {
    %c0_i32 = arith.constant 0 : i32
    %c0_i32_0 = arith.constant 0 : i32
    %c0_i32_1 = arith.constant 0 : i32
    return %arg0, %c0_i32, %c0_i32_0 : i32, i32, i32
  }
  func.func @transform_2(%arg0: i32) -> (i32, i32, i32) {
    %c0_i32 = arith.constant 0 : i32
    %c0_i32_0 = arith.constant 0 : i32
    %c0_i32_1 = arith.constant 0 : i32
    return %arg0, %c0_i32, %c0_i32_0 : i32, i32, i32
  }
  func.func @transform_3(%arg0: i32) -> (i32, i32, i32) {
    %c0_i32 = arith.constant 0 : i32
    %c0_i32_0 = arith.constant 0 : i32
    %c0_i32_1 = arith.constant 0 : i32
    return %arg0, %c0_i32, %c0_i32_0 : i32, i32, i32
  }
}

module attributes {stable_mosaic.version = 11 : i64} {
  func.func @_matmul_kernel(%arg0: i32, %arg1: i32, %arg2: i32, %arg3: memref<16x64xbf16, #tpu.memory_space<vmem>>, %arg4: memref<64x32xbf16, #tpu.memory_space<vmem>>, %arg5: memref<1x32xf32, #tpu.memory_space<vmem>>, %arg6: memref<16x32xf32, #tpu.memory_space<vmem>>, %arg7: memref<16x32xf32, #tpu.memory_space<vmem>>) attributes {dimension_semantics = [#tpu.dimension_semantics<parallel>, #tpu.dimension_semantics<parallel>, #tpu.dimension_semantics<arbitrary>], iteration_bounds = array<i64: 1, 1, 1>, scalar_prefetch = 0 : i64, scratch_operands = 1 : i64, tpu.core_type = #tpu.core_type<tc>, window_params = [{transform_indices = @transform_0, window_bounds = array<i64: 16, 64>}, {transform_indices = @transform_1, window_bounds = array<i64: 64, 32>}, {transform_indices = @transform_2, window_bounds = array<i64: 1, 32>}, {transform_indices = @transform_3, window_bounds = array<i64: 16, 32>}]} {
    %c0_i32 = arith.constant 0 : i32
    %0 = arith.cmpi eq, %arg2, %c0_i32 : i32
    %1 = arith.extui %0 : i1 to i32
    %c0_i32_0 = arith.constant 0 : i32
    %2 = arith.cmpi ne, %1, %c0_i32_0 : i32
    scf.if %2 {
      %cst_10 = arith.constant 0.000000e+00 : f32
      %12 = vector.broadcast %cst_10 : f32 to vector<16x32xf32>
      %c0_11 = arith.constant 0 : index
      %c0_12 = arith.constant 0 : index
      %13 = vector.load %arg7[%c0_11, %c0_12] : memref<16x32xf32, #tpu.memory_space<vmem>>, vector<16x32xf32>
      tpu.vector_store %arg7[%c0_11, %c0_12], %12 {strides = array<i32>} : memref<16x32xf32, #tpu.memory_space<vmem>>, vector<16x32xf32>,
    } else {
    }
    %c0 = arith.constant 0 : index
    %c0_1 = arith.constant 0 : index
    %3 = vector.load %arg7[%c0, %c0_1] : memref<16x32xf32, #tpu.memory_space<vmem>>, vector<16x32xf32>
    %c0_2 = arith.constant 0 : index
    %c0_3 = arith.constant 0 : index
    %4 = vector.load %arg3[%c0_2, %c0_3] : memref<16x64xbf16, #tpu.memory_space<vmem>>, vector<16x64xbf16>
    %c0_4 = arith.constant 0 : index
    %c0_5 = arith.constant 0 : index
    %5 = vector.load %arg4[%c0_4, %c0_5] : memref<64x32xbf16, #tpu.memory_space<vmem>>, vector<64x32xbf16>
    %cst = arith.constant dense<0.000000e+00> : vector<16x32xf32>
    %6 = tpu.matmul %4, %5, %cst {dimension_numbers = #tpu.dot_dimension_numbers<[1], [0], [0], [1], [0, 0, 1, 1], [], []>} : vector<16x64xbf16>, vector<64x32xbf16>, vector<16x32xf32> -> vector<16x32xf32>
    %7 = arith.addf %3, %6 : vector<16x32xf32>
    %c0_6 = arith.constant 0 : index
    %c0_7 = arith.constant 0 : index
    %8 = vector.load %arg7[%c0_6, %c0_7] : memref<16x32xf32, #tpu.memory_space<vmem>>, vector<16x32xf32>
    tpu.vector_store %arg7[%c0_6, %c0_7], %7 {strides = array<i32>} : memref<16x32xf32, #tpu.memory_space<vmem>>, vector<16x32xf32>,
    %c0_i32_8 = arith.constant 0 : i32
    %9 = arith.cmpi eq, %arg2, %c0_i32_8 : i32
    %10 = arith.extui %9 : i1 to i32
    %c0_i32_9 = arith.constant 0 : i32
    %11 = arith.cmpi ne, %10, %c0_i32_9 : i32
    scf.if %11 {
      %c0_10 = arith.constant 0 : index
      %c0_11 = arith.constant 0 : index
      %12 = vector.load %arg7[%c0_10, %c0_11] : memref<16x32xf32, #tpu.memory_space<vmem>>, vector<16x32xf32>
      %c0_12 = arith.constant 0 : index
      %c0_13 = arith.constant 0 : index
      %13 = vector.load %arg5[%c0_12, %c0_13] : memref<1x32xf32, #tpu.memory_space<vmem>>, vector<1x32xf32>
      %14 = vector.broadcast %13 : vector<1x32xf32> to vector<16x32xf32>
      %15 = arith.addf %12, %14 : vector<16x32xf32>
      %c0_14 = arith.constant 0 : index
      %c0_15 = arith.constant 0 : index
      %16 = vector.load %arg6[%c0_14, %c0_15] : memref<16x32xf32, #tpu.memory_space<vmem>>, vector<16x32xf32>
      tpu.vector_store %arg6[%c0_14, %c0_15], %15 {strides = array<i32>} : memref<16x32xf32, #tpu.memory_space<vmem>>, vector<16x32xf32>,
    } else {
    }
    return
  }
  func.func @transform_0(%arg0: i32, %arg1: i32, %arg2: i32) -> (i32, i32) {
    %c0_i32 = arith.constant 0 : i32
    return %arg0, %arg2 : i32, i32
  }
  func.func @transform_1(%arg0: i32, %arg1: i32, %arg2: i32) -> (i32, i32) {
    %c0_i32 = arith.constant 0 : i32
    return %arg2, %arg1 : i32, i32
  }
  func.func @transform_2(%arg0: i32, %arg1: i32, %arg2: i32) -> (i32, i32) {
    %c0_i32 = arith.constant 0 : i32
    %c0_i32_0 = arith.constant 0 : i32
    return %c0_i32, %arg1 : i32, i32
  }
  func.func @transform_3(%arg0: i32, %arg1: i32, %arg2: i32) -> (i32, i32) {
    %c0_i32 = arith.constant 0 : i32
    return %arg0, %arg1 : i32, i32
  }
}

module attributes {stable_mosaic.version = 11 : i64} {
  func.func @_matmul_kernel(%arg0: i32, %arg1: i32, %arg2: i32, %arg3: memref<16x32xbf16, #tpu.memory_space<vmem>>, %arg4: memref<32x60xbf16, #tpu.memory_space<vmem>>, %arg5: memref<1x60xf32, #tpu.memory_space<vmem>>, %arg6: memref<16x60xf32, #tpu.memory_space<vmem>>, %arg7: memref<16x60xf32, #tpu.memory_space<vmem>>) attributes {dimension_semantics = [#tpu.dimension_semantics<parallel>, #tpu.dimension_semantics<parallel>, #tpu.dimension_semantics<arbitrary>], iteration_bounds = array<i64: 1, 1, 1>, scalar_prefetch = 0 : i64, scratch_operands = 1 : i64, tpu.core_type = #tpu.core_type<tc>, window_params = [{transform_indices = @transform_0, window_bounds = array<i64: 16, 32>}, {transform_indices = @transform_1, window_bounds = array<i64: 32, 60>}, {transform_indices = @transform_2, window_bounds = array<i64: 1, 60>}, {transform_indices = @transform_3, window_bounds = array<i64: 16, 60>}]} {
    %c0_i32 = arith.constant 0 : i32
    %0 = arith.cmpi eq, %arg2, %c0_i32 : i32
    %1 = arith.extui %0 : i1 to i32
    %c0_i32_0 = arith.constant 0 : i32
    %2 = arith.cmpi ne, %1, %c0_i32_0 : i32
    scf.if %2 {
      %cst_10 = arith.constant 0.000000e+00 : f32
      %12 = vector.broadcast %cst_10 : f32 to vector<16x60xf32>
      %c0_11 = arith.constant 0 : index
      %c0_12 = arith.constant 0 : index
      %13 = vector.load %arg7[%c0_11, %c0_12] : memref<16x60xf32, #tpu.memory_space<vmem>>, vector<16x60xf32>
      tpu.vector_store %arg7[%c0_11, %c0_12], %12 {strides = array<i32>} : memref<16x60xf32, #tpu.memory_space<vmem>>, vector<16x60xf32>,
    } else {
    }
    %c0 = arith.constant 0 : index
    %c0_1 = arith.constant 0 : index
    %3 = vector.load %arg7[%c0, %c0_1] : memref<16x60xf32, #tpu.memory_space<vmem>>, vector<16x60xf32>
    %c0_2 = arith.constant 0 : index
    %c0_3 = arith.constant 0 : index
    %4 = vector.load %arg3[%c0_2, %c0_3] : memref<16x32xbf16, #tpu.memory_space<vmem>>, vector<16x32xbf16>
    %c0_4 = arith.constant 0 : index
    %c0_5 = arith.constant 0 : index
    %5 = vector.load %arg4[%c0_4, %c0_5] : memref<32x60xbf16, #tpu.memory_space<vmem>>, vector<32x60xbf16>
    %cst = arith.constant dense<0.000000e+00> : vector<16x60xf32>
    %6 = tpu.matmul %4, %5, %cst {dimension_numbers = #tpu.dot_dimension_numbers<[1], [0], [0], [1], [0, 0, 1, 1], [], []>} : vector<16x32xbf16>, vector<32x60xbf16>, vector<16x60xf32> -> vector<16x60xf32>
    %7 = arith.addf %3, %6 : vector<16x60xf32>
    %c0_6 = arith.constant 0 : index
    %c0_7 = arith.constant 0 : index
    %8 = vector.load %arg7[%c0_6, %c0_7] : memref<16x60xf32, #tpu.memory_space<vmem>>, vector<16x60xf32>
    tpu.vector_store %arg7[%c0_6, %c0_7], %7 {strides = array<i32>} : memref<16x60xf32, #tpu.memory_space<vmem>>, vector<16x60xf32>,
    %c0_i32_8 = arith.constant 0 : i32
    %9 = arith.cmpi eq, %arg2, %c0_i32_8 : i32
    %10 = arith.extui %9 : i1 to i32
    %c0_i32_9 = arith.constant 0 : i32
    %11 = arith.cmpi ne, %10, %c0_i32_9 : i32
    scf.if %11 {
      %c0_10 = arith.constant 0 : index
      %c0_11 = arith.constant 0 : index
      %12 = vector.load %arg7[%c0_10, %c0_11] : memref<16x60xf32, #tpu.memory_space<vmem>>, vector<16x60xf32>
      %c0_12 = arith.constant 0 : index
      %c0_13 = arith.constant 0 : index
      %13 = vector.load %arg5[%c0_12, %c0_13] : memref<1x60xf32, #tpu.memory_space<vmem>>, vector<1x60xf32>
      %14 = vector.broadcast %13 : vector<1x60xf32> to vector<16x60xf32>
      %15 = arith.addf %12, %14 : vector<16x60xf32>
      %c0_14 = arith.constant 0 : index
      %c0_15 = arith.constant 0 : index
      %16 = vector.load %arg6[%c0_14, %c0_15] : memref<16x60xf32, #tpu.memory_space<vmem>>, vector<16x60xf32>
      tpu.vector_store %arg6[%c0_14, %c0_15], %15 {strides = array<i32>} : memref<16x60xf32, #tpu.memory_space<vmem>>, vector<16x60xf32>,
    } else {
    }
    return
  }
  func.func @transform_0(%arg0: i32, %arg1: i32, %arg2: i32) -> (i32, i32) {
    %c0_i32 = arith.constant 0 : i32
    return %arg0, %arg2 : i32, i32
  }
  func.func @transform_1(%arg0: i32, %arg1: i32, %arg2: i32) -> (i32, i32) {
    %c0_i32 = arith.constant 0 : i32
    return %arg2, %arg1 : i32, i32
  }
  func.func @transform_2(%arg0: i32, %arg1: i32, %arg2: i32) -> (i32, i32) {
    %c0_i32 = arith.constant 0 : i32
    %c0_i32_0 = arith.constant 0 : i32
    return %c0_i32, %arg1 : i32, i32
  }
  func.func @transform_3(%arg0: i32, %arg1: i32, %arg2: i32) -> (i32, i32) {
    %c0_i32 = arith.constant 0 : i32
    return %arg0, %arg1 : i32, i32
  }
}

module attributes {stable_mosaic.version = 11 : i64} {
  func.func @_matmul_kernel(%arg0: i32, %arg1: i32, %arg2: i32, %arg3: memref<16x32xbf16, #tpu.memory_space<vmem>>, %arg4: memref<32x64xbf16, #tpu.memory_space<vmem>>, %arg5: memref<1x64xf32, #tpu.memory_space<vmem>>, %arg6: memref<16x64xbf16, #tpu.memory_space<vmem>>, %arg7: memref<16x64xf32, #tpu.memory_space<vmem>>) attributes {dimension_semantics = [#tpu.dimension_semantics<parallel>, #tpu.dimension_semantics<parallel>, #tpu.dimension_semantics<arbitrary>], iteration_bounds = array<i64: 1, 1, 1>, scalar_prefetch = 0 : i64, scratch_operands = 1 : i64, tpu.core_type = #tpu.core_type<tc>, window_params = [{transform_indices = @transform_0, window_bounds = array<i64: 16, 32>}, {transform_indices = @transform_1, window_bounds = array<i64: 32, 64>}, {transform_indices = @transform_2, window_bounds = array<i64: 1, 64>}, {transform_indices = @transform_3, window_bounds = array<i64: 16, 64>}]} {
    %c0_i32 = arith.constant 0 : i32
    %0 = arith.cmpi eq, %arg2, %c0_i32 : i32
    %1 = arith.extui %0 : i1 to i32
    %c0_i32_0 = arith.constant 0 : i32
    %2 = arith.cmpi ne, %1, %c0_i32_0 : i32
    scf.if %2 {
      %cst_10 = arith.constant 0.000000e+00 : f32
      %12 = vector.broadcast %cst_10 : f32 to vector<16x64xf32>
      %c0_11 = arith.constant 0 : index
      %c0_12 = arith.constant 0 : index
      %13 = vector.load %arg7[%c0_11, %c0_12] : memref<16x64xf32, #tpu.memory_space<vmem>>, vector<16x64xf32>
      tpu.vector_store %arg7[%c0_11, %c0_12], %12 {strides = array<i32>} : memref<16x64xf32, #tpu.memory_space<vmem>>, vector<16x64xf32>,
    } else {
    }
    %c0 = arith.constant 0 : index
    %c0_1 = arith.constant 0 : index
    %3 = vector.load %arg7[%c0, %c0_1] : memref<16x64xf32, #tpu.memory_space<vmem>>, vector<16x64xf32>
    %c0_2 = arith.constant 0 : index
    %c0_3 = arith.constant 0 : index
    %4 = vector.load %arg3[%c0_2, %c0_3] : memref<16x32xbf16, #tpu.memory_space<vmem>>, vector<16x32xbf16>
    %c0_4 = arith.constant 0 : index
    %c0_5 = arith.constant 0 : index
    %5 = vector.load %arg4[%c0_4, %c0_5] : memref<32x64xbf16, #tpu.memory_space<vmem>>, vector<32x64xbf16>
    %cst = arith.constant dense<0.000000e+00> : vector<16x64xf32>
    %6 = tpu.matmul %4, %5, %cst {dimension_numbers = #tpu.dot_dimension_numbers<[1], [0], [0], [1], [0, 0, 1, 1], [], []>} : vector<16x32xbf16>, vector<32x64xbf16>, vector<16x64xf32> -> vector<16x64xf32>
    %7 = arith.addf %3, %6 : vector<16x64xf32>
    %c0_6 = arith.constant 0 : index
    %c0_7 = arith.constant 0 : index
    %8 = vector.load %arg7[%c0_6, %c0_7] : memref<16x64xf32, #tpu.memory_space<vmem>>, vector<16x64xf32>
    tpu.vector_store %arg7[%c0_6, %c0_7], %7 {strides = array<i32>} : memref<16x64xf32, #tpu.memory_space<vmem>>, vector<16x64xf32>,
    %c0_i32_8 = arith.constant 0 : i32
    %9 = arith.cmpi eq, %arg2, %c0_i32_8 : i32
    %10 = arith.extui %9 : i1 to i32
    %c0_i32_9 = arith.constant 0 : i32
    %11 = arith.cmpi ne, %10, %c0_i32_9 : i32
    scf.if %11 {
      %c0_10 = arith.constant 0 : index
      %c0_11 = arith.constant 0 : index
      %12 = vector.load %arg7[%c0_10, %c0_11] : memref<16x64xf32, #tpu.memory_space<vmem>>, vector<16x64xf32>
      %c0_12 = arith.constant 0 : index
      %c0_13 = arith.constant 0 : index
      %13 = vector.load %arg5[%c0_12, %c0_13] : memref<1x64xf32, #tpu.memory_space<vmem>>, vector<1x64xf32>
      %14 = vector.broadcast %13 : vector<1x64xf32> to vector<16x64xf32>
      %15 = arith.addf %12, %14 : vector<16x64xf32>
      %cst_14 = arith.constant 0.000000e+00 : f32
      %16 = vector.broadcast %cst_14 : f32 to vector<16x64xf32>
      %17 = arith.maximumf %15, %16 : vector<16x64xf32>
      %18 = arith.truncf %17 : vector<16x64xf32> to vector<16x64xbf16>
      %c0_15 = arith.constant 0 : index
      %c0_16 = arith.constant 0 : index
      %19 = vector.load %arg6[%c0_15, %c0_16] : memref<16x64xbf16, #tpu.memory_space<vmem>>, vector<16x64xbf16>
      tpu.vector_store %arg6[%c0_15, %c0_16], %18 {strides = array<i32>} : memref<16x64xbf16, #tpu.memory_space<vmem>>, vector<16x64xbf16>,
    } else {
    }
    return
  }
  func.func @transform_0(%arg0: i32, %arg1: i32, %arg2: i32) -> (i32, i32) {
    %c0_i32 = arith.constant 0 : i32
    return %arg0, %arg2 : i32, i32
  }
  func.func @transform_1(%arg0: i32, %arg1: i32, %arg2: i32) -> (i32, i32) {
    %c0_i32 = arith.constant 0 : i32
    return %arg2, %arg1 : i32, i32
  }
  func.func @transform_2(%arg0: i32, %arg1: i32, %arg2: i32) -> (i32, i32) {
    %c0_i32 = arith.constant 0 : i32
    %c0_i32_0 = arith.constant 0 : i32
    return %c0_i32, %arg1 : i32, i32
  }
  func.func @transform_3(%arg0: i32, %arg1: i32, %arg2: i32) -> (i32, i32) {
    %c0_i32 = arith.constant 0 : i32
    return %arg0, %arg1 : i32, i32
  }
}

</mosaic_0001>

<llo_original>
// kernel: _lambda_.53
$region0: #{_lambda_.53}
  #allocation0 [shape = 'u32[]', space=smem, size = 0x4, offset = 0x4, fixed_abs, tag = 'smem constant byte address 0x4 - core index']
  #allocation1 [shape = 'u32[144,128]{1,0:T(1,128)}', space=vmem, size = 0x12000, scoped, tag = 'internal scratch']
  #allocation2 [shape = 'f32[16,96]{1,0:T(8,128)}', space=vmem, size = 0x2000, scoped, tag = 'scratch operand']
  %s0 = inlined_call_operand.vmem [shape: bf16[16,32], index: 0, kind: input, shape index: {}]
  %s1 = inlined_call_operand.vmem [shape: bf16[32,96], index: 1, kind: input, shape index: {}]
  %s2 = inlined_call_operand.vmem [shape: f32[1,96], index: 2, kind: input, shape index: {}]
  %s3 = inlined_call_operand.vmem [shape: bf16[16,96], index: 3, kind: output, shape index: {}]
  %s4 = sld [smem:[#allocation0]]
  $region30: #{_lambda_.53} parent=0
    _
  %s6 = ssub.s32 1, %s4
  %s7 = scalar_select 0, %s6, %s4
  // Predicated region
  $region2: #{_lambda_.53} parent=0 // pred_check
    _
  $region3: #{_lambda_.53} parent=0 // pred_check_branch
    %9 = sbr.rel (0) target = $region5
  $region4: #{_lambda_.53} parent=0 // pred_region
    _
  $region5: #{_lambda_.53} parent=0 // pred_fallthru
    _
  // Predicated region
  $region6: #{_lambda_.53} parent=0 // pred_check
    _
  $region7: #{_lambda_.53} parent=0 // pred_check_branch
    %11 = sbr.rel (0) target = $region9
  $region8: #{_lambda_.53} parent=0 // pred_region
    _
  $region9: #{_lambda_.53} parent=0 // pred_fallthru
    _
  // Predicated region
  $region10: #{_lambda_.53} parent=0 // pred_check
    _
  $region11: #{_lambda_.53} parent=0 // pred_check_branch
    %13 = sbr.rel (0) target = $region13
  $region12: #{_lambda_.53} parent=0 // pred_region
    _
  $region13: #{_lambda_.53} parent=0 // pred_fallthru
    _
  %p15 = scmp.eq.s32.totalorder 0, 0
  // Predicated region
  $region14: #{_lambda_.53} parent=0 // pred_check
    %p16 = pneg %p15
  $region15: #{_lambda_.53} parent=0 // pred_check_branch
    %18 = sbr.rel (%p16) target = $region17
  $region16: #{_lambda_.53} parent=0 // pred_region
    %vm19 = vcmask 785408
    %20 = vst.msk [vmem:[#allocation2] sm:$0xff] %vm19, 0.0
    %21 = vst.msk [vmem:[#allocation2 + $0x8] sm:$0xff] %vm19, 0.0
  $region17: #{_lambda_.53} parent=0 // pred_fallthru
    _
  %v22 = vld [vmem:[#allocation2] sm:$0xff]
  %v23 = vld [vmem:[#allocation2 + $0x8] sm:$0xff]
  %v24 = vld [vmem:[%s0] sm:$0xf]
  %v25 = vld [vmem:[%s0 + $0x4] sm:$0xf]
  %v26 = vld [vmem:[%s1] sm:$0xf]
  %v27 = vld [vmem:[%s1 + $0x4] sm:$0xf]
  %v28 = vld [vmem:[%s1 + $0x8] sm:$0xf]
  %v29 = vld [vmem:[%s1 + $0xc] sm:$0xf]
  %v32 = vunpack.c.l.b16 %v24
  %v33 = vunpack.c.l.b16 %v25
  %v34 = vpack.c.b16 %v33, %v32
  %v39 = vunpack.c.l.b16 %v26
  %v40 = vunpack.c.l.b16 %v27
  %v41 = vunpack.c.l.b16 %v28
  %v42 = vunpack.c.l.b16 %v29
  %v43 = vpack.c.b16 %v40, %v39
  %v44 = vpack.c.b16 %v42, %v41
  %vm47 = vcmask 261120
  %v49 = vsel %vm47, %v34, 0
  %51 = vmatprep.subr.bf16.mxu0 0
  %52 = vmatpush1.bf16.msra.mxu0 0
  %53 = vmatprep.subr.bf16.mxu0 0
  %54 = vmatpush1.bf16.msra.mxu0 0
  %55 = vmatprep.subr.bf16.mxu0 0
  %56 = vmatpush1.bf16.msra.mxu0 0
  %57 = vmatprep.subr.bf16.mxu0 0
  %58 = vmatpush1.bf16.msra.mxu0 0
  %59 = vmatprep.subr.bf16.mxu0 0
  %60 = vmatpush1.bf16.msra.mxu0 0
  %61 = vmatprep.subr.bf16.mxu0 0
  %62 = vmatpush1.bf16.msra.mxu0 0
  %63 = vmatprep.subr.bf16.mxu0 0
  %64 = vmatpush1.bf16.msra.mxu0 %v44
  %65 = vmatprep.subr.bf16.mxu0 0
  %66 = vmatpush1.bf16.msra.mxu0 %v43
  %67 = vmatprep.subr.bf16.mxu0 0
  %68 = vmatpush2.bf16.msra.mxu0 0
  %69 = vmatprep.subr.bf16.mxu0 0
  %70 = vmatpush2.bf16.msra.mxu0 0
  %71 = vmatprep.subr.bf16.mxu0 0
  %72 = vmatpush2.bf16.msra.mxu0 0
  %73 = vmatprep.subr.bf16.mxu0 0
  %74 = vmatpush2.bf16.msra.mxu0 0
  %75 = vmatprep.subr.bf16.mxu0 0
  %76 = vmatpush2.bf16.msra.mxu0 0
  %77 = vmatprep.subr.bf16.mxu0 0
  %78 = vmatpush2.bf16.msra.mxu0 0
  %79 = vmatprep.subr.bf16.mxu0 0
  %80 = vmatpush2.bf16.msra.mxu0 0
  %81 = vmatprep.subr.bf16.mxu0 0
  %82 = vmatpush2.bf16.msra.mxu0 0
  %83 = vmatprep.mubr.bf16.mxu0 0
  %84 = vmatmul.mubr.bf16.gmra.mxu0 %v49
  %v85 = vpop.f32.mrf.mxu0
  %v86 = vadd.f32 0.0, %v85
  %v87 = vpop.f32.mrf.mxu0
  %v88 = vpop.f32.mrf.mxu0
  %v89 = vadd.f32 0.0, %v88
  %v90 = vpop.f32.mrf.mxu0
  %91 = vdwg.mxu0
  %v92 = vadd.f32 %v22, %v86
  %v93 = vadd.f32 %v23, %v89
  %vm94 = vcmask 785408
  %95 = vst.msk [vmem:[#allocation2] sm:$0xff] %vm94, %v92
  %96 = vst.msk [vmem:[#allocation2 + $0x8] sm:$0xff] %vm94, %v93
  // Predicated region
  $region18: #{_lambda_.53} parent=0 // pred_check
    %p97 = pneg %p15
  $region19: #{_lambda_.53} parent=0 // pred_check_branch
    %99 = sbr.rel (%p97) target = $region21
  $region20: #{_lambda_.53} parent=0 // pred_region
    %v100 = vld [vmem:[#allocation2] sm:$0xff]
    %v101 = vld [vmem:[#allocation2 + $0x8] sm:$0xff]
    %v102 = vld [vmem:[%s2] sm:$0x1]
    %v104 = vlaneseq
    %v105 = vshrl.u32 %v104, 7
    %v106 = vsub.s32 0, %v105
    %v107 = vrot.slane %v102, %v106
    %v109 = vadd.f32 %v100, %v107
    %v110 = vadd.f32 %v101, %v107
    %v111 = vpack.c.bf16 %v110, %v109
    %v113 = vunpack.c.l.b16 %v111
    %v114 = vunpack.c.h.b16 %v111
    %v115 = vpack.c.b16 %v113, %v113
    %v116 = vpack.c.b16 %v114, %v114
    %vm119 = vcmask 781312
    %120 = vst.msk [vmem:[%s3] sm:$0xf] %vm119, %v115
    %121 = vst.msk [vmem:[%s3 + $0x4] sm:$0xf] %vm119, %v116
  $region21: #{_lambda_.53} parent=0 // pred_fallthru
    _
  // Predicated region
  $region22: #{_lambda_.53} parent=0 // pred_check
    _
  $region23: #{_lambda_.53} parent=0 // pred_check_branch
    %123 = sbr.rel (0) target = $region25
  $region24: #{_lambda_.53} parent=0 // pred_region
    _
  $region25: #{_lambda_.53} parent=0 // pred_fallthru
    _
  // Predicated region
  $region26: #{_lambda_.53} parent=0 // pred_check
    _
  $region27: #{_lambda_.53} parent=0 // pred_check_branch
    %125 = sbr.rel (0) target = $region29
  $region28: #{_lambda_.53} parent=0 // pred_region
    _
  $region29: #{_lambda_.53} parent=0 // pred_fallthru
    _

// kernel: _lambda_.56
$region0: #{_lambda_.56}
  #allocation0 [shape = 'u32[]', space=smem, size = 0x4, offset = 0x4, fixed_abs, tag = 'smem constant byte address 0x4 - core index']
  #allocation1 [shape = 'u32[144,128]{1,0:T(1,128)}', space=vmem, size = 0x12000, scoped, tag = 'internal scratch']
  %s0 = inlined_call_operand.vmem [shape: f32[16,32], index: 0, kind: input, shape index: {}]
  %s1 = inlined_call_operand.vmem [shape: f32[16,32], index: 1, kind: input, shape index: {}]
  %s2 = inlined_call_operand.vmem [shape: f32[1,32], index: 2, kind: input, shape index: {}]
  %s3 = inlined_call_operand.vmem [shape: f32[1,32], index: 3, kind: input, shape index: {}]
  %s4 = inlined_call_operand.vmem [shape: f32[16,32], index: 4, kind: output, shape index: {}]
  %s5 = sld [smem:[#allocation0]]
  $region26: #{_lambda_.56} parent=0
    _
  %s7 = ssub.s32 1, %s5
  %s8 = scalar_select 0, %s7, %s5
  // Predicated region
  $region2: #{_lambda_.56} parent=0 // pred_check
    _
  $region3: #{_lambda_.56} parent=0 // pred_check_branch
    %10 = sbr.rel (0) target = $region5
  $region4: #{_lambda_.56} parent=0 // pred_region
    _
  $region5: #{_lambda_.56} parent=0 // pred_fallthru
    _
  // Predicated region
  $region6: #{_lambda_.56} parent=0 // pred_check
    _
  $region7: #{_lambda_.56} parent=0 // pred_check_branch
    %12 = sbr.rel (0) target = $region9
  $region8: #{_lambda_.56} parent=0 // pred_region
    _
  $region9: #{_lambda_.56} parent=0 // pred_fallthru
    _
  // Predicated region
  $region10: #{_lambda_.56} parent=0 // pred_check
    _
  $region11: #{_lambda_.56} parent=0 // pred_check_branch
    %14 = sbr.rel (0) target = $region13
  $region12: #{_lambda_.56} parent=0 // pred_region
    _
  $region13: #{_lambda_.56} parent=0 // pred_fallthru
    _
  // Predicated region
  $region14: #{_lambda_.56} parent=0 // pred_check
    _
  $region15: #{_lambda_.56} parent=0 // pred_check_branch
    %16 = sbr.rel (0) target = $region17
  $region16: #{_lambda_.56} parent=0 // pred_region
    _
  $region17: #{_lambda_.56} parent=0 // pred_fallthru
    _
  %v17 = vld [vmem:[%s0] sm:$0xff]
  %v18 = vld [vmem:[%s0 + $0x8] sm:$0xff]
  %v19 = vld [vmem:[%s1] sm:$0xff]
  %v20 = vld [vmem:[%s1 + $0x8] sm:$0xff]
  %v21 = vadd.f32 %v17, %v19
  %v22 = vadd.f32 %v18, %v20
  %vm23 = vcmask 261120
  %v24 = vsel %vm23, %v21, 0.0
  %25 = vadd.xlane.f32.xlu0 %v24
  %v26 = vpop.xlane.xlu0 %25
  %v27 = vsel %vm23, %v22, 0.0
  %28 = vadd.xlane.f32.xlu0 %v27
  %v29 = vpop.xlane.xlu0 %28
  %v30 = vrcp.pop 32.0
  %v31 = vmul.f32 %v26, %v30
  %v32 = vmul.f32 %v29, %v30
  %v33 = vsub.f32 %v21, %v31
  %v34 = vsub.f32 %v22, %v32
  %v35 = vmul.f32 %v33, %v33
  %v36 = vmul.f32 %v34, %v34
  %v37 = vsel %vm23, %v35, 0.0
  %38 = vadd.xlane.f32.xlu0 %v37
  %v39 = vpop.xlane.xlu0 %38
  %v40 = vsel %vm23, %v36, 0.0
  %41 = vadd.xlane.f32.xlu0 %v40
  %v42 = vpop.xlane.xlu0 %41
  %v43 = vmul.f32 %v39, %v30
  %v44 = vmul.f32 %v42, %v30
  %v45 = vadd.f32 %v43, 1e-05
  %v46 = vadd.f32 %v44, 1e-05
  %v47 = vrsqrt.pop %v45
  %v48 = vrsqrt.pop %v46
  %v49 = vmul.f32 %v33, %v47
  %v50 = vmul.f32 %v34, %v48
  %v51 = vld [vmem:[%s2] sm:$0x1]
  %v53 = vlaneseq
  %v54 = vshrl.u32 %v53, 7
  %v55 = vsub.s32 0, %v54
  %v56 = vrot.slane %v51, %v55
  %v58 = vmul.f32 %v49, %v56
  %v59 = vmul.f32 %v50, %v56
  %v60 = vld [vmem:[%s3] sm:$0x1]
  %v62 = vlaneseq
  %v63 = vshrl.u32 %v62, 7
  %v64 = vsub.s32 0, %v63
  %v65 = vrot.slane %v60, %v64
  %v67 = vadd.f32 %v58, %v65
  %v68 = vadd.f32 %v59, %v65
  %69 = vst.msk [vmem:[%s4] sm:$0xff] %vm23, %v67
  %70 = vst.msk [vmem:[%s4 + $0x8] sm:$0xff] %vm23, %v68
  // Predicated region
  $region18: #{_lambda_.56} parent=0 // pred_check
    _
  $region19: #{_lambda_.56} parent=0 // pred_check_branch
    %72 = sbr.rel (0) target = $region21
  $region20: #{_lambda_.56} parent=0 // pred_region
    _
  $region21: #{_lambda_.56} parent=0 // pred_fallthru
    _
  // Predicated region
  $region22: #{_lambda_.56} parent=0 // pred_check
    _
  $region23: #{_lambda_.56} parent=0 // pred_check_branch
    %74 = sbr.rel (0) target = $region25
  $region24: #{_lambda_.56} parent=0 // pred_region
    _
  $region25: #{_lambda_.56} parent=0 // pred_fallthru
    _

// kernel: _lambda_.55
$region0: #{_lambda_.55}
  #allocation0 [shape = 'u32[]', space=smem, size = 0x4, offset = 0x4, fixed_abs, tag = 'smem constant byte address 0x4 - core index']
  #allocation1 [shape = 'u32[144,128]{1,0:T(1,128)}', space=vmem, size = 0x12000, scoped, tag = 'internal scratch']
  #allocation2 [shape = 'f32[16,32]{1,0:T(8,128)}', space=vmem, size = 0x2000, scoped, tag = 'scratch operand']
  %s0 = inlined_call_operand.vmem [shape: bf16[16,32], index: 0, kind: input, shape index: {}]
  %s1 = inlined_call_operand.vmem [shape: bf16[32,32], index: 1, kind: input, shape index: {}]
  %s2 = inlined_call_operand.vmem [shape: f32[1,32], index: 2, kind: input, shape index: {}]
  %s3 = inlined_call_operand.vmem [shape: f32[16,32], index: 3, kind: output, shape index: {}]
  %s4 = sld [smem:[#allocation0]]
  $region30: #{_lambda_.55} parent=0
    _
  %s6 = ssub.s32 1, %s4
  %s7 = scalar_select 0, %s6, %s4
  // Predicated region
  $region2: #{_lambda_.55} parent=0 // pred_check
    _
  $region3: #{_lambda_.55} parent=0 // pred_check_branch
    %9 = sbr.rel (0) target = $region5
  $region4: #{_lambda_.55} parent=0 // pred_region
    _
  $region5: #{_lambda_.55} parent=0 // pred_fallthru
    _
  // Predicated region
  $region6: #{_lambda_.55} parent=0 // pred_check
    _
  $region7: #{_lambda_.55} parent=0 // pred_check_branch
    %11 = sbr.rel (0) target = $region9
  $region8: #{_lambda_.55} parent=0 // pred_region
    _
  $region9: #{_lambda_.55} parent=0 // pred_fallthru
    _
  // Predicated region
  $region10: #{_lambda_.55} parent=0 // pred_check
    _
  $region11: #{_lambda_.55} parent=0 // pred_check_branch
    %13 = sbr.rel (0) target = $region13
  $region12: #{_lambda_.55} parent=0 // pred_region
    _
  $region13: #{_lambda_.55} parent=0 // pred_fallthru
    _
  %p15 = scmp.eq.s32.totalorder 0, 0
  // Predicated region
  $region14: #{_lambda_.55} parent=0 // pred_check
    %p16 = pneg %p15
  $region15: #{_lambda_.55} parent=0 // pred_check_branch
    %18 = sbr.rel (%p16) target = $region17
  $region16: #{_lambda_.55} parent=0 // pred_region
    %vm19 = vcmask 261120
    %20 = vst.msk [vmem:[#allocation2] sm:$0xff] %vm19, 0.0
    %21 = vst.msk [vmem:[#allocation2 + $0x8] sm:$0xff] %vm19, 0.0
  $region17: #{_lambda_.55} parent=0 // pred_fallthru
    _
  %v22 = vld [vmem:[#allocation2] sm:$0xff]
  %v23 = vld [vmem:[#allocation2 + $0x8] sm:$0xff]
  %v24 = vld [vmem:[%s0] sm:$0xf]
  %v25 = vld [vmem:[%s0 + $0x4] sm:$0xf]
  %v26 = vld [vmem:[%s1] sm:$0xf]
  %v27 = vld [vmem:[%s1 + $0x4] sm:$0xf]
  %v28 = vld [vmem:[%s1 + $0x8] sm:$0xf]
  %v29 = vld [vmem:[%s1 + $0xc] sm:$0xf]
  %v32 = vunpack.c.l.b16 %v24
  %v33 = vunpack.c.l.b16 %v25
  %v34 = vpack.c.b16 %v33, %v32
  %v39 = vunpack.c.l.b16 %v26
  %v40 = vunpack.c.l.b16 %v27
  %v41 = vunpack.c.l.b16 %v28
  %v42 = vunpack.c.l.b16 %v29
  %v43 = vpack.c.b16 %v40, %v39
  %v44 = vpack.c.b16 %v42, %v41
  %vm47 = vcmask 261120
  %v49 = vsel %vm47, %v34, 0
  %51 = vmatprep.subr.bf16.mxu0 0
  %52 = vmatpush1.bf16.msra.mxu0 0
  %53 = vmatprep.subr.bf16.mxu0 0
  %54 = vmatpush1.bf16.msra.mxu0 0
  %55 = vmatprep.subr.bf16.mxu0 0
  %56 = vmatpush1.bf16.msra.mxu0 0
  %57 = vmatprep.subr.bf16.mxu0 0
  %58 = vmatpush1.bf16.msra.mxu0 0
  %59 = vmatprep.subr.bf16.mxu0 0
  %60 = vmatpush1.bf16.msra.mxu0 0
  %61 = vmatprep.subr.bf16.mxu0 0
  %62 = vmatpush1.bf16.msra.mxu0 0
  %63 = vmatprep.subr.bf16.mxu0 0
  %64 = vmatpush1.bf16.msra.mxu0 %v44
  %65 = vmatprep.subr.bf16.mxu0 0
  %66 = vmatpush1.bf16.msra.mxu0 %v43
  %67 = vmatprep.subr.bf16.mxu0 0
  %68 = vmatpush2.bf16.msra.mxu0 0
  %69 = vmatprep.subr.bf16.mxu0 0
  %70 = vmatpush2.bf16.msra.mxu0 0
  %71 = vmatprep.subr.bf16.mxu0 0
  %72 = vmatpush2.bf16.msra.mxu0 0
  %73 = vmatprep.subr.bf16.mxu0 0
  %74 = vmatpush2.bf16.msra.mxu0 0
  %75 = vmatprep.subr.bf16.mxu0 0
  %76 = vmatpush2.bf16.msra.mxu0 0
  %77 = vmatprep.subr.bf16.mxu0 0
  %78 = vmatpush2.bf16.msra.mxu0 0
  %79 = vmatprep.subr.bf16.mxu0 0
  %80 = vmatpush2.bf16.msra.mxu0 0
  %81 = vmatprep.subr.bf16.mxu0 0
  %82 = vmatpush2.bf16.msra.mxu0 0
  %83 = vmatprep.mubr.bf16.mxu0 0
  %84 = vmatmul.mubr.bf16.gmra.mxu0 %v49
  %v85 = vpop.f32.mrf.mxu0
  %v86 = vadd.f32 0.0, %v85
  %v87 = vpop.f32.mrf.mxu0
  %v88 = vpop.f32.mrf.mxu0
  %v89 = vadd.f32 0.0, %v88
  %v90 = vpop.f32.mrf.mxu0
  %91 = vdwg.mxu0
  %v92 = vadd.f32 %v22, %v86
  %v93 = vadd.f32 %v23, %v89
  %94 = vst.msk [vmem:[#allocation2] sm:$0xff] %vm47, %v92
  %95 = vst.msk [vmem:[#allocation2 + $0x8] sm:$0xff] %vm47, %v93
  // Predicated region
  $region18: #{_lambda_.55} parent=0 // pred_check
    %p96 = pneg %p15
  $region19: #{_lambda_.55} parent=0 // pred_check_branch
    %98 = sbr.rel (%p96) target = $region21
  $region20: #{_lambda_.55} parent=0 // pred_region
    %v99 = vld [vmem:[#allocation2] sm:$0xff]
    %v100 = vld [vmem:[#allocation2 + $0x8] sm:$0xff]
    %v101 = vld [vmem:[%s2] sm:$0x1]
    %v103 = vlaneseq
    %v104 = vshrl.u32 %v103, 7
    %v105 = vsub.s32 0, %v104
    %v106 = vrot.slane %v101, %v105
    %v108 = vadd.f32 %v99, %v106
    %v109 = vadd.f32 %v100, %v106
    %110 = vst.msk [vmem:[%s3] sm:$0xff] %vm47, %v108
    %111 = vst.msk [vmem:[%s3 + $0x8] sm:$0xff] %vm47, %v109
  $region21: #{_lambda_.55} parent=0 // pred_fallthru
    _
  // Predicated region
  $region22: #{_lambda_.55} parent=0 // pred_check
    _
  $region23: #{_lambda_.55} parent=0 // pred_check_branch
    %113 = sbr.rel (0) target = $region25
  $region24: #{_lambda_.55} parent=0 // pred_region
    _
  $region25: #{_lambda_.55} parent=0 // pred_fallthru
    _
  // Predicated region
  $region26: #{_lambda_.55} parent=0 // pred_check
    _
  $region27: #{_lambda_.55} parent=0 // pred_check_branch
    %115 = sbr.rel (0) target = $region29
  $region28: #{_lambda_.55} parent=0 // pred_region
    _
  $region29: #{_lambda_.55} parent=0 // pred_fallthru
    _

// kernel: _lambda_.54
$region0: #{_lambda_.54}
  #allocation0 [shape = 'u32[]', space=smem, size = 0x4, offset = 0x4, fixed_abs, tag = 'smem constant byte address 0x4 - core index']
  #allocation1 [shape = 'u32[144,128]{1,0:T(1,128)}', space=vmem, size = 0x12000, scoped, tag = 'internal scratch']
  %s0 = inlined_call_operand.vmem [shape: bf16[2,8,32], index: 0, kind: input, shape index: {}]
  %s1 = inlined_call_operand.vmem [shape: bf16[2,8,32], index: 1, kind: input, shape index: {}]
  %s2 = inlined_call_operand.vmem [shape: bf16[2,8,32], index: 2, kind: input, shape index: {}]
  %s3 = inlined_call_operand.vmem [shape: bf16[2,8,32], index: 3, kind: output, shape index: {}]
  %s4 = sld [smem:[#allocation0]]
  $region45: #{_lambda_.54} parent=0
    _
  %s6 = ssub.s32 1, %s4
  %s7 = scalar_select 0, %s6, %s4
  loop: start=0, step=1, limit=4
  $region2: #{_lambda_.54} parent=0 // loop_pre_header
    _
  $region3: #{_lambda_.54} parent=0 // loop_header
    %s9 = sphi 0, %s13
    %p10 = scmp.ge.s32.totalorder %s9, 4
    %s19 = sphi 0, %s21
    %s22 = sphi 0, %s19
    %s23 = sphi 0, %s22
    %s39 = sphi 0, %s23
    %s45 = sphi 0, %s47
    %s48 = sphi 0, %s45
    %s49 = sphi 0, %s48
    %s65 = sphi 0, %s49
    %s71 = sphi 0, %s73
    %s74 = sphi 0, %s71
    %s75 = sphi 0, %s74
    %s91 = sphi 0, %s75
    %s97 = sphi 0, %s99
    %s100 = sphi 0, %s97
    %s101 = sphi 0, %s100
    %s117 = sphi 0, %s101
  $region4: #{_lambda_.54} parent=0 // loop_header_branch
    %12 = sbr.rel (%p10) target = $region8
  $region5: #{_lambda_.54} parent=0 // loop_body
    %s14 = ssub.s32 %s9, 1
    %s15 = ssub.s32 %s9, 2
    %s16 = sadd.s32 %s9, 1
    %s17 = ssub.s32 %s9, %s16
    %p18 = scmp.eq.s32.totalorder %s17, 0
    %s20 = sadd.s32 %s19, 1
    %s21 = scalar_select %p18, %s19, %s20
    %p24 = pneg %p18
    %p25 = scmp.eq.s32.totalorder %s9, 1
    %p26 = por %p24, %p25
    %p27 = scmp.ne.s32.totalorder %s19, %s22
    %p28 = scmp.eq.s32.totalorder %s9, 0
    %p29 = por %p27, %p28
    %p30 = scmp.ne.s32.totalorder %s19, %s22
    %p31 = scmp.eq.s32.totalorder %s14, 1
    %p32 = por %p30, %p31
    %p33 = scmp.ne.s32.totalorder %s22, %s23
    %p34 = scmp.eq.s32.totalorder %s14, 0
    %p35 = por %p33, %p34
    %p36 = scmp.ne.s32.totalorder %s22, %s23
    %p37 = scmp.eq.s32.totalorder %s15, 1
    %p38 = por %p36, %p37
    %p40 = scmp.ne.s32.totalorder %s23, %s39
    %p41 = scmp.eq.s32.totalorder %s15, 0
    %p42 = por %p40, %p41
    %s43 = ssub.s32 %s9, %s16
    %p44 = scmp.eq.s32.totalorder %s43, 0
    %s46 = sadd.s32 %s45, 1
    %s47 = scalar_select %p44, %s45, %s46
    %p50 = pneg %p44
    %p51 = scmp.eq.s32.totalorder %s9, 1
    %p52 = por %p50, %p51
    %p53 = scmp.ne.s32.totalorder %s45, %s48
    %p54 = scmp.eq.s32.totalorder %s9, 0
    %p55 = por %p53, %p54
    %p56 = scmp.ne.s32.totalorder %s45, %s48
    %p57 = scmp.eq.s32.totalorder %s14, 1
    %p58 = por %p56, %p57
    %p59 = scmp.ne.s32.totalorder %s48, %s49
    %p60 = scmp.eq.s32.totalorder %s14, 0
    %p61 = por %p59, %p60
    %p62 = scmp.ne.s32.totalorder %s48, %s49
    %p63 = scmp.eq.s32.totalorder %s15, 1
    %p64 = por %p62, %p63
    %p66 = scmp.ne.s32.totalorder %s49, %s65
    %p67 = scmp.eq.s32.totalorder %s15, 0
    %p68 = por %p66, %p67
    %s69 = ssub.s32 %s9, %s16
    %p70 = scmp.eq.s32.totalorder %s69, 0
    %s72 = sadd.s32 %s71, 1
    %s73 = scalar_select %p70, %s71, %s72
    %p76 = pneg %p70
    %p77 = scmp.eq.s32.totalorder %s9, 1
    %p78 = por %p76, %p77
    %p79 = scmp.ne.s32.totalorder %s71, %s74
    %p80 = scmp.eq.s32.totalorder %s9, 0
    %p81 = por %p79, %p80
    %p82 = scmp.ne.s32.totalorder %s71, %s74
    %p83 = scmp.eq.s32.totalorder %s14, 1
    %p84 = por %p82, %p83
    %p85 = scmp.ne.s32.totalorder %s74, %s75
    %p86 = scmp.eq.s32.totalorder %s14, 0
    %p87 = por %p85, %p86
    %p88 = scmp.ne.s32.totalorder %s74, %s75
    %p89 = scmp.eq.s32.totalorder %s15, 1
    %p90 = por %p88, %p89
    %p92 = scmp.ne.s32.totalorder %s75, %s91
    %p93 = scmp.eq.s32.totalorder %s15, 0
    %p94 = por %p92, %p93
    %s95 = ssub.s32 %s9, %s16
    %p96 = scmp.eq.s32.totalorder %s95, 0
    %s98 = sadd.s32 %s97, 1
    %s99 = scalar_select %p96, %s97, %s98
    %p102 = pneg %p96
    %p103 = scmp.eq.s32.totalorder %s9, 1
    %p104 = por %p102, %p103
    %p105 = scmp.ne.s32.totalorder %s97, %s100
    %p106 = scmp.eq.s32.totalorder %s9, 0
    %p107 = por %p105, %p106
    %p108 = scmp.ne.s32.totalorder %s97, %s100
    %p109 = scmp.eq.s32.totalorder %s14, 1
    %p110 = por %p108, %p109
    %p111 = scmp.ne.s32.totalorder %s100, %s101
    %p112 = scmp.eq.s32.totalorder %s14, 0
    %p113 = por %p111, %p112
    %p114 = scmp.ne.s32.totalorder %s100, %s101
    %p115 = scmp.eq.s32.totalorder %s15, 1
    %p116 = por %p114, %p115
    %p118 = scmp.ne.s32.totalorder %s101, %s117
    %p119 = scmp.eq.s32.totalorder %s15, 0
    %p120 = por %p118, %p119
    %p121 = scmp.le.s32.totalorder 1, %s9
    %p122 = scmp.lt.s32.totalorder %s9, 3
    %p123 = pnand %p121, %p122
    %p124 = pneg %p123
    // Predicated region
    $region9: #{_lambda_.54} parent=5 // pred_check
      _
    $region10: #{_lambda_.54} parent=5 // pred_check_branch
      %126 = sbr.rel (%p123) target = $region12
    $region11: #{_lambda_.54} parent=5 // pred_region
      %s127 = ssub.s32 %s9, 1
    $region12: #{_lambda_.54} parent=5 // pred_fallthru
      _
    %p128 = scmp.lt.s32.totalorder %s9, 2
    // Predicated region
    $region13: #{_lambda_.54} parent=5 // pred_check
      %p129 = pneg %p128
    $region14: #{_lambda_.54} parent=5 // pred_check_branch
      %131 = sbr.rel (%p129) target = $region16
    $region15: #{_lambda_.54} parent=5 // pred_region
      // Predicated region
      $region17: #{_lambda_.54} parent=15 // pred_check
        %p132 = pneg %p29
      $region18: #{_lambda_.54} parent=15 // pred_check_branch
        %134 = sbr.rel (%p132) target = $region20
      $region19: #{_lambda_.54} parent=15 // pred_region
        %p135 = scmp.lt.s32.totalorder %s9, 1
        %s136 = scalar_select %p135, %s9, 1
        %s137 = smul.addr %s136, 4
        %s138 = scalar_lea.vmem %s0, %s137
      $region20: #{_lambda_.54} parent=15 // pred_fallthru
        _
      // Predicated region
      $region21: #{_lambda_.54} parent=15 // pred_check
        %p139 = pneg %p55
      $region22: #{_lambda_.54} parent=15 // pred_check_branch
        %141 = sbr.rel (%p139) target = $region24
      $region23: #{_lambda_.54} parent=15 // pred_region
        %p142 = scmp.lt.s32.totalorder %s9, 1
        %s143 = scalar_select %p142, %s9, 1
        %s144 = smul.addr %s143, 4
        %s145 = scalar_lea.vmem %s1, %s144
      $region24: #{_lambda_.54} parent=15 // pred_fallthru
        _
      // Predicated region
      $region25: #{_lambda_.54} parent=15 // pred_check
        %p146 = pneg %p81
      $region26: #{_lambda_.54} parent=15 // pred_check_branch
        %148 = sbr.rel (%p146) target = $region28
      $region27: #{_lambda_.54} parent=15 // pred_region
        %p149 = scmp.lt.s32.totalorder %s9, 1
        %s150 = scalar_select %p149, %s9, 1
        %s151 = smul.addr %s150, 4
        %s152 = scalar_lea.vmem %s2, %s151
      $region28: #{_lambda_.54} parent=15 // pred_fallthru
        _
    $region16: #{_lambda_.54} parent=5 // pred_fallthru
      _
    %p153 = scmp.le.s32.totalorder 1, %s9
    %p154 = scmp.lt.s32.totalorder %s9, 3
    %p155 = pnand %p153, %p154
    %p156 = pneg %p155
    // Predicated region
    $region29: #{_lambda_.54} parent=5 // pred_check
      _
    $region30: #{_lambda_.54} parent=5 // pred_check_branch
      %158 = sbr.rel (%p155) target = $region32
    $region31: #{_lambda_.54} parent=5 // pred_region
      %s159 = ssub.s32 %s9, 1
      %p160 = scmp.lt.s32.totalorder %s14, 1
      %s161 = scalar_select %p160, %s14, 1
      %s162 = smul.addr %s161, 4
      %s163 = scalar_lea.vmem %s0, %s162
      %p164 = pneg %p35
      %p165 = pneg %p32
      %p166 = scmp.lt.s32.totalorder %s14, 1
      %s167 = scalar_select %p166, %s14, 1
      %s168 = smul.addr %s167, 4
      %s169 = scalar_lea.vmem %s1, %s168
      %p170 = pneg %p61
      %p171 = pneg %p58
      %p172 = scmp.lt.s32.totalorder %s14, 1
      %s173 = scalar_select %p172, %s14, 1
      %s174 = smul.addr %s173, 4
      %s175 = scalar_lea.vmem %s2, %s174
      %p176 = pneg %p87
      %p177 = pneg %p84
      %p178 = pneg %p113
      %p179 = pneg %p110
      %p180 = scmp.lt.s32.totalorder %s14, 1
      %s181 = scalar_select %p180, %s14, 1
      %s182 = smul.addr %s181, 4
      %s183 = scalar_lea.vmem %s3, %s182
      %p184 = scmp.lt.s32.totalorder %s14, 1
      %s185 = scalar_select %p184, %s14, 1
      %s186 = smul.addr %s185, 4
      %s187 = scalar_lea.vmem %s0, %s186
      %p188 = scmp.lt.s32.totalorder %s14, 1
      %s189 = scalar_select %p188, %s14, 1
      %s190 = smul.addr %s189, 4
      %s191 = scalar_lea.vmem %s1, %s190
      %p192 = scmp.lt.s32.totalorder %s14, 1
      %s193 = scalar_select %p192, %s14, 1
      %s194 = smul.addr %s193, 4
      %s195 = scalar_lea.vmem %s2, %s194
      %p196 = scmp.lt.s32.totalorder %s14, 1
      %s197 = scalar_select %p196, %s14, 1
      %s198 = smul.addr %s197, 4
      %s199 = scalar_lea.vmem %s3, %s198
      %v201 = vld [vmem:[%s187] sm:$0xf]
      %v202 = vld [vmem:[%s191] sm:$0xf]
      %v203 = vld [vmem:[%s195] sm:$0xf]
      %v204 = vlaneseq
      %v205 = vshrl.u32 %v204, 7
      %v206 = vlaneseq
      %v207 = vand.u32 %v206, 127
      %vm208 = vcmp.ge.s32.totalorder %v205, %v207
      %vm209 = vcmask 64512
      %v211 = vsel %vm209, %v201, 0
      %v214 = vsel %vm209, %v202, 0
      %216 = vmatprep.subr.bf16.mxu0 0
      %217 = vmatpush1.bf16.xpose.msra.mxu0 0
      %218 = vmatprep.subr.bf16.mxu0 0
      %219 = vmatpush1.bf16.xpose.msra.mxu0 0
      %220 = vmatprep.subr.bf16.mxu0 0
      %221 = vmatpush1.bf16.xpose.msra.mxu0 0
      %222 = vmatprep.subr.bf16.mxu0 0
      %223 = vmatpush1.bf16.xpose.msra.mxu0 0
      %224 = vmatprep.subr.bf16.mxu0 0
      %225 = vmatpush1.bf16.xpose.msra.mxu0 0
      %226 = vmatprep.subr.bf16.mxu0 0
      %227 = vmatpush1.bf16.xpose.msra.mxu0 0
      %228 = vmatprep.subr.bf16.mxu0 0
      %229 = vmatpush1.bf16.xpose.msra.mxu0 0
      %230 = vmatprep.subr.bf16.mxu0 0
      %231 = vmatpush1.bf16.xpose.msra.mxu0 %v214
      %232 = vmatprep.subr.bf16.mxu0 0
      %233 = vmatpush2.bf16.xpose.msra.mxu0 0
      %234 = vmatprep.subr.bf16.mxu0 0
      %235 = vmatpush2.bf16.xpose.msra.mxu0 0
      %236 = vmatprep.subr.bf16.mxu0 0
      %237 = vmatpush2.bf16.xpose.msra.mxu0 0
      %238 = vmatprep.subr.bf16.mxu0 0
      %239 = vmatpush2.bf16.xpose.msra.mxu0 0
      %240 = vmatprep.subr.bf16.mxu0 0
      %241 = vmatpush2.bf16.xpose.msra.mxu0 0
      %242 = vmatprep.subr.bf16.mxu0 0
      %243 = vmatpush2.bf16.xpose.msra.mxu0 0
      %244 = vmatprep.subr.bf16.mxu0 0
      %245 = vmatpush2.bf16.xpose.msra.mxu0 0
      %246 = vmatprep.subr.bf16.mxu0 0
      %247 = vmatpush2.bf16.xpose.msra.mxu0 0
      %248 = vmatprep.mubr.bf16.mxu0 0
      %249 = vmatmul.mubr.bf16.gmra.mxu0 %v211
      %v250 = vpop.f32.mrf.mxu0
      %v251 = vadd.f32 0.0, %v250
      %v252 = vpop.f32.mrf.mxu0
      %v253 = vpop.f32.mrf.mxu0
      %v254 = vpop.f32.mrf.mxu0
      %255 = vdwg.mxu0
      %v256 = vmul.f32 %v251, 0.35355338
      %v257 = vsel %vm208, %v256, -1e+30
      %v258 = vsel %vm209, %v257, -inf
      %259 = vmax.xlane.f32.xlu0 %v258
      %v260 = vpop.xlane.xlu0 %259
      %v261 = vsub.f32 %v257, %v260
      %v262 = vmul.f32 %v261, 1.442695
      %v263 = vpow.pop %v262
      %v264 = vsel %vm209, %v263, 0.0
      %265 = vadd.xlane.f32.xlu0 %v264
      %v266 = vpop.xlane.xlu0 %265
      %v267 = vrcp.pop %v266
      %v268 = vmul.f32 %v263, %v267
      %v269 = vpack.c.bf16 %v268, %v268
      %v271 = vsel %vm209, %v269, 0
      %vm273 = vcmask 1043456
      %v275 = vsel %vm273, %v203, 0
      %277 = vmatprep.subr.bf16.mxu0 0
      %278 = vmatpush1.bf16.msra.mxu0 0
      %279 = vmatprep.subr.bf16.mxu0 0
      %280 = vmatpush1.bf16.msra.mxu0 0
      %281 = vmatprep.subr.bf16.mxu0 0
      %282 = vmatpush1.bf16.msra.mxu0 0
      %283 = vmatprep.subr.bf16.mxu0 0
      %284 = vmatpush1.bf16.msra.mxu0 0
      %285 = vmatprep.subr.bf16.mxu0 0
      %286 = vmatpush1.bf16.msra.mxu0 0
      %287 = vmatprep.subr.bf16.mxu0 0
      %288 = vmatpush1.bf16.msra.mxu0 0
      %289 = vmatprep.subr.bf16.mxu0 0
      %290 = vmatpush1.bf16.msra.mxu0 0
      %291 = vmatprep.subr.bf16.mxu0 0
      %292 = vmatpush1.bf16.msra.mxu0 %v275
      %293 = vmatprep.subr.bf16.mxu0 0
      %294 = vmatpush2.bf16.msra.mxu0 0
      %295 = vmatprep.subr.bf16.mxu0 0
      %296 = vmatpush2.bf16.msra.mxu0 0
      %297 = vmatprep.subr.bf16.mxu0 0
      %298 = vmatpush2.bf16.msra.mxu0 0
      %299 = vmatprep.subr.bf16.mxu0 0
      %300 = vmatpush2.bf16.msra.mxu0 0
      %301 = vmatprep.subr.bf16.mxu0 0
      %302 = vmatpush2.bf16.msra.mxu0 0
      %303 = vmatprep.subr.bf16.mxu0 0
      %304 = vmatpush2.bf16.msra.mxu0 0
      %305 = vmatprep.subr.bf16.mxu0 0
      %306 = vmatpush2.bf16.msra.mxu0 0
      %307 = vmatprep.subr.bf16.mxu0 0
      %308 = vmatpush2.bf16.msra.mxu0 0
      %309 = vmatprep.mubr.bf16.mxu0 0
      %310 = vmatmul.mubr.bf16.gmra.mxu0 %v271
      %v311 = vpop.f32.mrf.mxu0
      %v312 = vadd.f32 0.0, %v311
      %v313 = vpop.f32.mrf.mxu0
      %v314 = vpop.f32.mrf.mxu0
      %v315 = vpop.f32.mrf.mxu0
      %316 = vdwg.mxu0
      %v318 = vunpack.c.l.b16 %v201
      %v319 = vpack.c.b16 %v318, %v318
      %320 = vrot.lane.b32.xlu0 %v319, 120
      %v321 = vpop.permute.xlu0 %320
      %v323 = vunpack.c.l.b16 %v202
      %v324 = vpack.c.b16 %v323, %v323
      %325 = vrot.lane.b32.xlu0 %v324, 120
      %v326 = vpop.permute.xlu0 %325
      %v328 = vsel %vm209, %v321, 0
      %v331 = vsel %vm209, %v326, 0
      %333 = vmatprep.subr.bf16.mxu0 0
      %334 = vmatpush1.bf16.xpose.msra.mxu0 0
      %335 = vmatprep.subr.bf16.mxu0 0
      %336 = vmatpush1.bf16.xpose.msra.mxu0 0
      %337 = vmatprep.subr.bf16.mxu0 0
      %338 = vmatpush1.bf16.xpose.msra.mxu0 0
      %339 = vmatprep.subr.bf16.mxu0 0
      %340 = vmatpush1.bf16.xpose.msra.mxu0 0
      %341 = vmatprep.subr.bf16.mxu0 0
      %342 = vmatpush1.bf16.xpose.msra.mxu0 0
      %343 = vmatprep.subr.bf16.mxu0 0
      %344 = vmatpush1.bf16.xpose.msra.mxu0 0
      %345 = vmatprep.subr.bf16.mxu0 0
      %346 = vmatpush1.bf16.xpose.msra.mxu0 0
      %347 = vmatprep.subr.bf16.mxu0 0
      %348 = vmatpush1.bf16.xpose.msra.mxu0 %v331
      %349 = vmatprep.subr.bf16.mxu0 0
      %350 = vmatpush2.bf16.xpose.msra.mxu0 0
      %351 = vmatprep.subr.bf16.mxu0 0
      %352 = vmatpush2.bf16.xpose.msra.mxu0 0
      %353 = vmatprep.subr.bf16.mxu0 0
      %354 = vmatpush2.bf16.xpose.msra.mxu0 0
      %355 = vmatprep.subr.bf16.mxu0 0
      %356 = vmatpush2.bf16.xpose.msra.mxu0 0
      %357 = vmatprep.subr.bf16.mxu0 0
      %358 = vmatpush2.bf16.xpose.msra.mxu0 0
      %359 = vmatprep.subr.bf16.mxu0 0
      %360 = vmatpush2.bf16.xpose.msra.mxu0 0
      %361 = vmatprep.subr.bf16.mxu0 0
      %362 = vmatpush2.bf16.xpose.msra.mxu0 0
      %363 = vmatprep.subr.bf16.mxu0 0
      %364 = vmatpush2.bf16.xpose.msra.mxu0 0
      %365 = vmatprep.mubr.bf16.mxu0 0
      %366 = vmatmul.mubr.bf16.gmra.mxu0 %v328
      %v367 = vpop.f32.mrf.mxu0
      %v368 = vadd.f32 0.0, %v367
      %v369 = vpop.f32.mrf.mxu0
      %v370 = vpop.f32.mrf.mxu0
      %v371 = vpop.f32.mrf.mxu0
      %372 = vdwg.mxu0
      %v373 = vmul.f32 %v368, 0.35355338
      %v374 = vsel %vm208, %v373, -1e+30
      %v375 = vsel %vm209, %v374, -inf
      %376 = vmax.xlane.f32.xlu0 %v375
      %v377 = vpop.xlane.xlu0 %376
      %v378 = vsub.f32 %v374, %v377
      %v379 = vmul.f32 %v378, 1.442695
      %v380 = vpow.pop %v379
      %v381 = vsel %vm209, %v380, 0.0
      %382 = vadd.xlane.f32.xlu0 %v381
      %v383 = vpop.xlane.xlu0 %382
      %v384 = vrcp.pop %v383
      %v385 = vmul.f32 %v380, %v384
      %v386 = vpack.c.bf16 %v385, %v385
      %v388 = vunpack.c.l.b16 %v203
      %v389 = vpack.c.b16 %v388, %v388
      %390 = vrot.lane.b32.xlu0 %v389, 120
      %v391 = vpop.permute.xlu0 %390
      %v393 = vsel %vm209, %v386, 0
      %v396 = vsel %vm273, %v391, 0
      %398 = vmatprep.subr.bf16.mxu0 0
      %399 = vmatpush1.bf16.msra.mxu0 0
      %400 = vmatprep.subr.bf16.mxu0 0
      %401 = vmatpush1.bf16.msra.mxu0 0
      %402 = vmatprep.subr.bf16.mxu0 0
      %403 = vmatpush1.bf16.msra.mxu0 0
      %404 = vmatprep.subr.bf16.mxu0 0
      %405 = vmatpush1.bf16.msra.mxu0 0
      %406 = vmatprep.subr.bf16.mxu0 0
      %407 = vmatpush1.bf16.msra.mxu0 0
      %408 = vmatprep.subr.bf16.mxu0 0
      %409 = vmatpush1.bf16.msra.mxu0 0
      %410 = vmatprep.subr.bf16.mxu0 0
      %411 = vmatpush1.bf16.msra.mxu0 0
      %412 = vmatprep.subr.bf16.mxu0 0
      %413 = vmatpush1.bf16.msra.mxu0 %v396
      %414 = vmatprep.subr.bf16.mxu0 0
      %415 = vmatpush2.bf16.msra.mxu0 0
      %416 = vmatprep.subr.bf16.mxu0 0
      %417 = vmatpush2.bf16.msra.mxu0 0
      %418 = vmatprep.subr.bf16.mxu0 0
      %419 = vmatpush2.bf16.msra.mxu0 0
      %420 = vmatprep.subr.bf16.mxu0 0
      %421 = vmatpush2.bf16.msra.mxu0 0
      %422 = vmatprep.subr.bf16.mxu0 0
      %423 = vmatpush2.bf16.msra.mxu0 0
      %424 = vmatprep.subr.bf16.mxu0 0
      %425 = vmatpush2.bf16.msra.mxu0 0
      %426 = vmatprep.subr.bf16.mxu0 0
      %427 = vmatpush2.bf16.msra.mxu0 0
      %428 = vmatprep.subr.bf16.mxu0 0
      %429 = vmatpush2.bf16.msra.mxu0 0
      %430 = vmatprep.mubr.bf16.mxu0 0
      %431 = vmatmul.mubr.bf16.gmra.mxu0 %v393
      %v432 = vpop.f32.mrf.mxu0
      %v433 = vadd.f32 0.0, %v432
      %v434 = vpop.f32.mrf.mxu0
      %v435 = vpop.f32.mrf.mxu0
      %v436 = vpop.f32.mrf.mxu0
      %437 = vdwg.mxu0
      %438 = vrot.lane.b32.xlu0 %v319, 112
      %v439 = vpop.permute.xlu0 %438
      %440 = vrot.lane.b32.xlu0 %v324, 112
      %v441 = vpop.permute.xlu0 %440
      %v443 = vsel %vm209, %v439, 0
      %v446 = vsel %vm209, %v441, 0
      %448 = vmatprep.subr.bf16.mxu0 0
      %449 = vmatpush1.bf16.xpose.msra.mxu0 0
      %450 = vmatprep.subr.bf16.mxu0 0
      %451 = vmatpush1.bf16.xpose.msra.mxu0 0
      %452 = vmatprep.subr.bf16.mxu0 0
      %453 = vmatpush1.bf16.xpose.msra.mxu0 0
      %454 = vmatprep.subr.bf16.mxu0 0
      %455 = vmatpush1.bf16.xpose.msra.mxu0 0
      %456 = vmatprep.subr.bf16.mxu0 0
      %457 = vmatpush1.bf16.xpose.msra.mxu0 0
      %458 = vmatprep.subr.bf16.mxu0 0
      %459 = vmatpush1.bf16.xpose.msra.mxu0 0
      %460 = vmatprep.subr.bf16.mxu0 0
      %461 = vmatpush1.bf16.xpose.msra.mxu0 0
      %462 = vmatprep.subr.bf16.mxu0 0
      %463 = vmatpush1.bf16.xpose.msra.mxu0 %v446
      %464 = vmatprep.subr.bf16.mxu0 0
      %465 = vmatpush2.bf16.xpose.msra.mxu0 0
      %466 = vmatprep.subr.bf16.mxu0 0
      %467 = vmatpush2.bf16.xpose.msra.mxu0 0
      %468 = vmatprep.subr.bf16.mxu0 0
      %469 = vmatpush2.bf16.xpose.msra.mxu0 0
      %470 = vmatprep.subr.bf16.mxu0 0
      %471 = vmatpush2.bf16.xpose.msra.mxu0 0
      %472 = vmatprep.subr.bf16.mxu0 0
      %473 = vmatpush2.bf16.xpose.msra.mxu0 0
      %474 = vmatprep.subr.bf16.mxu0 0
      %475 = vmatpush2.bf16.xpose.msra.mxu0 0
      %476 = vmatprep.subr.bf16.mxu0 0
      %477 = vmatpush2.bf16.xpose.msra.mxu0 0
      %478 = vmatprep.subr.bf16.mxu0 0
      %479 = vmatpush2.bf16.xpose.msra.mxu0 0
      %480 = vmatprep.mubr.bf16.mxu0 0
      %481 = vmatmul.mubr.bf16.gmra.mxu0 %v443
      %v482 = vpop.f32.mrf.mxu0
      %v483 = vadd.f32 0.0, %v482
      %v484 = vpop.f32.mrf.mxu0
      %v485 = vpop.f32.mrf.mxu0
      %v486 = vpop.f32.mrf.mxu0
      %487 = vdwg.mxu0
      %v488 = vmul.f32 %v483, 0.35355338
      %v489 = vsel %vm208, %v488, -1e+30
      %v490 = vsel %vm209, %v489, -inf
      %491 = vmax.xlane.f32.xlu0 %v490
      %v492 = vpop.xlane.xlu0 %491
      %v493 = vsub.f32 %v489, %v492
      %v494 = vmul.f32 %v493, 1.442695
      %v495 = vpow.pop %v494
      %v496 = vsel %vm209, %v495, 0.0
      %497 = vadd.xlane.f32.xlu0 %v496
      %v498 = vpop.xlane.xlu0 %497
      %v499 = vrcp.pop %v498
      %v500 = vmul.f32 %v495, %v499
      %v501 = vpack.c.bf16 %v500, %v500
      %502 = vrot.lane.b32.xlu0 %v389, 112
      %v503 = vpop.permute.xlu0 %502
      %v505 = vsel %vm209, %v501, 0
      %v508 = vsel %vm273, %v503, 0
      %510 = vmatprep.subr.bf16.mxu0 0
      %511 = vmatpush1.bf16.msra.mxu0 0
      %512 = vmatprep.subr.bf16.mxu0 0
      %513 = vmatpush1.bf16.msra.mxu0 0
      %514 = vmatprep.subr.bf16.mxu0 0
      %515 = vmatpush1.bf16.msra.mxu0 0
      %516 = vmatprep.subr.bf16.mxu0 0
      %517 = vmatpush1.bf16.msra.mxu0 0
      %518 = vmatprep.subr.bf16.mxu0 0
      %519 = vmatpush1.bf16.msra.mxu0 0
      %520 = vmatprep.subr.bf16.mxu0 0
      %521 = vmatpush1.bf16.msra.mxu0 0
      %522 = vmatprep.subr.bf16.mxu0 0
      %523 = vmatpush1.bf16.msra.mxu0 0
      %524 = vmatprep.subr.bf16.mxu0 0
      %525 = vmatpush1.bf16.msra.mxu0 %v508
      %526 = vmatprep.subr.bf16.mxu0 0
      %527 = vmatpush2.bf16.msra.mxu0 0
      %528 = vmatprep.subr.bf16.mxu0 0
      %529 = vmatpush2.bf16.msra.mxu0 0
      %530 = vmatprep.subr.bf16.mxu0 0
      %531 = vmatpush2.bf16.msra.mxu0 0
      %532 = vmatprep.subr.bf16.mxu0 0
      %533 = vmatpush2.bf16.msra.mxu0 0
      %534 = vmatprep.subr.bf16.mxu0 0
      %535 = vmatpush2.bf16.msra.mxu0 0
      %536 = vmatprep.subr.bf16.mxu0 0
      %537 = vmatpush2.bf16.msra.mxu0 0
      %538 = vmatprep.subr.bf16.mxu0 0
      %539 = vmatpush2.bf16.msra.mxu0 0
      %540 = vmatprep.subr.bf16.mxu0 0
      %541 = vmatpush2.bf16.msra.mxu0 0
      %542 = vmatprep.mubr.bf16.mxu0 0
      %543 = vmatmul.mubr.bf16.gmra.mxu0 %v505
      %v544 = vpop.f32.mrf.mxu0
      %v545 = vadd.f32 0.0, %v544
      %v546 = vpop.f32.mrf.mxu0
      %v547 = vpop.f32.mrf.mxu0
      %v548 = vpop.f32.mrf.mxu0
      %549 = vdwg.mxu0
      %550 = vrot.lane.b32.xlu0 %v319, 104
      %v551 = vpop.permute.xlu0 %550
      %552 = vrot.lane.b32.xlu0 %v324, 104
      %v553 = vpop.permute.xlu0 %552
      %v555 = vsel %vm209, %v551, 0
      %v558 = vsel %vm209, %v553, 0
      %560 = vmatprep.subr.bf16.mxu0 0
      %561 = vmatpush1.bf16.xpose.msra.mxu0 0
      %562 = vmatprep.subr.bf16.mxu0 0
      %563 = vmatpush1.bf16.xpose.msra.mxu0 0
      %564 = vmatprep.subr.bf16.mxu0 0
      %565 = vmatpush1.bf16.xpose.msra.mxu0 0
      %566 = vmatprep.subr.bf16.mxu0 0
      %567 = vmatpush1.bf16.xpose.msra.mxu0 0
      %568 = vmatprep.subr.bf16.mxu0 0
      %569 = vmatpush1.bf16.xpose.msra.mxu0 0
      %570 = vmatprep.subr.bf16.mxu0 0
      %571 = vmatpush1.bf16.xpose.msra.mxu0 0
      %572 = vmatprep.subr.bf16.mxu0 0
      %573 = vmatpush1.bf16.xpose.msra.mxu0 0
      %574 = vmatprep.subr.bf16.mxu0 0
      %575 = vmatpush1.bf16.xpose.msra.mxu0 %v558
      %576 = vmatprep.subr.bf16.mxu0 0
      %577 = vmatpush2.bf16.xpose.msra.mxu0 0
      %578 = vmatprep.subr.bf16.mxu0 0
      %579 = vmatpush2.bf16.xpose.msra.mxu0 0
      %580 = vmatprep.subr.bf16.mxu0 0
      %581 = vmatpush2.bf16.xpose.msra.mxu0 0
      %582 = vmatprep.subr.bf16.mxu0 0
      %583 = vmatpush2.bf16.xpose.msra.mxu0 0
      %584 = vmatprep.subr.bf16.mxu0 0
      %585 = vmatpush2.bf16.xpose.msra.mxu0 0
      %586 = vmatprep.subr.bf16.mxu0 0
      %587 = vmatpush2.bf16.xpose.msra.mxu0 0
      %588 = vmatprep.subr.bf16.mxu0 0
      %589 = vmatpush2.bf16.xpose.msra.mxu0 0
      %590 = vmatprep.subr.bf16.mxu0 0
      %591 = vmatpush2.bf16.xpose.msra.mxu0 0
      %592 = vmatprep.mubr.bf16.mxu0 0
      %593 = vmatmul.mubr.bf16.gmra.mxu0 %v555
      %v594 = vpop.f32.mrf.mxu0
      %v595 = vadd.f32 0.0, %v594
      %v596 = vpop.f32.mrf.mxu0
      %v597 = vpop.f32.mrf.mxu0
      %v598 = vpop.f32.mrf.mxu0
      %599 = vdwg.mxu0
      %v600 = vmul.f32 %v595, 0.35355338
      %v601 = vsel %vm208, %v600, -1e+30
      %v602 = vsel %vm209, %v601, -inf
      %603 = vmax.xlane.f32.xlu0 %v602
      %v604 = vpop.xlane.xlu0 %603
      %v605 = vsub.f32 %v601, %v604
      %v606 = vmul.f32 %v605, 1.442695
      %v607 = vpow.pop %v606
      %v608 = vsel %vm209, %v607, 0.0
      %609 = vadd.xlane.f32.xlu0 %v608
      %v610 = vpop.xlane.xlu0 %609
      %v611 = vrcp.pop %v610
      %v612 = vmul.f32 %v607, %v611
      %v613 = vpack.c.bf16 %v612, %v612
      %614 = vrot.lane.b32.xlu0 %v389, 104
      %v615 = vpop.permute.xlu0 %614
      %v617 = vsel %vm209, %v613, 0
      %v620 = vsel %vm273, %v615, 0
      %622 = vmatprep.subr.bf16.mxu0 0
      %623 = vmatpush1.bf16.msra.mxu0 0
      %624 = vmatprep.subr.bf16.mxu0 0
      %625 = vmatpush1.bf16.msra.mxu0 0
      %626 = vmatprep.subr.bf16.mxu0 0
      %627 = vmatpush1.bf16.msra.mxu0 0
      %628 = vmatprep.subr.bf16.mxu0 0
      %629 = vmatpush1.bf16.msra.mxu0 0
      %630 = vmatprep.subr.bf16.mxu0 0
      %631 = vmatpush1.bf16.msra.mxu0 0
      %632 = vmatprep.subr.bf16.mxu0 0
      %633 = vmatpush1.bf16.msra.mxu0 0
      %634 = vmatprep.subr.bf16.mxu0 0
      %635 = vmatpush1.bf16.msra.mxu0 0
      %636 = vmatprep.subr.bf16.mxu0 0
      %637 = vmatpush1.bf16.msra.mxu0 %v620
      %638 = vmatprep.subr.bf16.mxu0 0
      %639 = vmatpush2.bf16.msra.mxu0 0
      %640 = vmatprep.subr.bf16.mxu0 0
      %641 = vmatpush2.bf16.msra.mxu0 0
      %642 = vmatprep.subr.bf16.mxu0 0
      %643 = vmatpush2.bf16.msra.mxu0 0
      %644 = vmatprep.subr.bf16.mxu0 0
      %645 = vmatpush2.bf16.msra.mxu0 0
      %646 = vmatprep.subr.bf16.mxu0 0
      %647 = vmatpush2.bf16.msra.mxu0 0
      %648 = vmatprep.subr.bf16.mxu0 0
      %649 = vmatpush2.bf16.msra.mxu0 0
      %650 = vmatprep.subr.bf16.mxu0 0
      %651 = vmatpush2.bf16.msra.mxu0 0
      %652 = vmatprep.subr.bf16.mxu0 0
      %653 = vmatpush2.bf16.msra.mxu0 0
      %654 = vmatprep.mubr.bf16.mxu0 0
      %655 = vmatmul.mubr.bf16.gmra.mxu0 %v617
      %v656 = vpop.f32.mrf.mxu0
      %v657 = vadd.f32 0.0, %v656
      %v658 = vpop.f32.mrf.mxu0
      %v659 = vpop.f32.mrf.mxu0
      %v660 = vpop.f32.mrf.mxu0
      %661 = vdwg.mxu0
      %663 = vrot.lane.b32.xlu0 %v433, 8
      %v664 = vpop.permute.xlu0 %663
      %667 = vrot.lane.b32.xlu0 %v545, 16
      %v668 = vpop.permute.xlu0 %667
      %671 = vrot.lane.b32.xlu0 %v657, 24
      %v672 = vpop.permute.xlu0 %671
      %v674 = vsel %vm209, %v312, %v664
      %vm675 = vcmask 130048
      %v676 = vsel %vm675, %v674, %v668
      %vm677 = vcmask 195584
      %v678 = vsel %vm677, %v676, %v672
      %v679 = vpack.c.bf16 %v678, %v678
      %vm680 = vcmask 257024
      %681 = vst.msk [vmem:[%s199] sm:$0xf] %vm680, %v679
      %p682 = scmp.lt.s32.totalorder %s14, 1
      %s683 = scalar_select %p682, %s14, 1
      %s684 = smul.addr %s683, 4
      %s685 = scalar_lea.vmem %s3, %s684
      // Predicated region
      $region33: #{_lambda_.54} parent=31 // pred_check
        %p686 = pneg %p110
      $region34: #{_lambda_.54} parent=31 // pred_check_branch
        %688 = sbr.rel (%p686) target = $region36
      $region35: #{_lambda_.54} parent=31 // pred_region
        _
      $region36: #{_lambda_.54} parent=31 // pred_fallthru
        _
    $region32: #{_lambda_.54} parent=5 // pred_fallthru
      _
    %p689 = scmp.le.s32.totalorder 2, %s9
    // Predicated region
    $region37: #{_lambda_.54} parent=5 // pred_check
      %p690 = pneg %p689
    $region38: #{_lambda_.54} parent=5 // pred_check_branch
      %692 = sbr.rel (%p690) target = $region40
    $region39: #{_lambda_.54} parent=5 // pred_region
      %s693 = ssub.s32 %s9, 2
      // Predicated region
      $region41: #{_lambda_.54} parent=39 // pred_check
        %p694 = pneg %p116
      $region42: #{_lambda_.54} parent=39 // pred_check_branch
        %696 = sbr.rel (%p694) target = $region44
      $region43: #{_lambda_.54} parent=39 // pred_region
        %p697 = scmp.lt.s32.totalorder %s15, 1
        %s698 = scalar_select %p697, %s15, 1
        %s699 = smul.addr %s698, 4
        %s700 = scalar_lea.vmem %s3, %s699
      $region44: #{_lambda_.54} parent=39 // pred_fallthru
        _
    $region40: #{_lambda_.54} parent=5 // pred_fallthru
      _
  $region6: #{_lambda_.54} parent=0 // loop_footer
    %s13 = sadd.s32 1, %s9
  $region7: #{_lambda_.54} parent=0 // loop_footer_branch
    %8 = sbr.rel target = $region3
  $region8: #{_lambda_.54} parent=0 // loop_exit
    _

// kernel: _lambda_.57
$region0: #{_lambda_.57}
  #allocation0 [shape = 'u32[]', space=smem, size = 0x4, offset = 0x4, fixed_abs, tag = 'smem constant byte address 0x4 - core index']
  #allocation1 [shape = 'u32[144,128]{1,0:T(1,128)}', space=vmem, size = 0x12000, scoped, tag = 'internal scratch']
  #allocation2 [shape = 'f32[16,32]{1,0:T(8,128)}', space=vmem, size = 0x2000, scoped, tag = 'scratch operand']
  %s0 = inlined_call_operand.vmem [shape: bf16[16,32], index: 0, kind: input, shape index: {}]
  %s1 = inlined_call_operand.vmem [shape: bf16[32,32], index: 1, kind: input, shape index: {}]
  %s2 = inlined_call_operand.vmem [shape: f32[1,32], index: 2, kind: input, shape index: {}]
  %s3 = inlined_call_operand.vmem [shape: bf16[16,32], index: 3, kind: output, shape index: {}]
  %s4 = sld [smem:[#allocation0]]
  $region30: #{_lambda_.57} parent=0
    _
  %s6 = ssub.s32 1, %s4
  %s7 = scalar_select 0, %s6, %s4
  // Predicated region
  $region2: #{_lambda_.57} parent=0 // pred_check
    _
  $region3: #{_lambda_.57} parent=0 // pred_check_branch
    %9 = sbr.rel (0) target = $region5
  $region4: #{_lambda_.57} parent=0 // pred_region
    _
  $region5: #{_lambda_.57} parent=0 // pred_fallthru
    _
  // Predicated region
  $region6: #{_lambda_.57} parent=0 // pred_check
    _
  $region7: #{_lambda_.57} parent=0 // pred_check_branch
    %11 = sbr.rel (0) target = $region9
  $region8: #{_lambda_.57} parent=0 // pred_region
    _
  $region9: #{_lambda_.57} parent=0 // pred_fallthru
    _
  // Predicated region
  $region10: #{_lambda_.57} parent=0 // pred_check
    _
  $region11: #{_lambda_.57} parent=0 // pred_check_branch
    %13 = sbr.rel (0) target = $region13
  $region12: #{_lambda_.57} parent=0 // pred_region
    _
  $region13: #{_lambda_.57} parent=0 // pred_fallthru
    _
  %p15 = scmp.eq.s32.totalorder 0, 0
  // Predicated region
  $region14: #{_lambda_.57} parent=0 // pred_check
    %p16 = pneg %p15
  $region15: #{_lambda_.57} parent=0 // pred_check_branch
    %18 = sbr.rel (%p16) target = $region17
  $region16: #{_lambda_.57} parent=0 // pred_region
    %vm19 = vcmask 261120
    %20 = vst.msk [vmem:[#allocation2] sm:$0xff] %vm19, 0.0
    %21 = vst.msk [vmem:[#allocation2 + $0x8] sm:$0xff] %vm19, 0.0
  $region17: #{_lambda_.57} parent=0 // pred_fallthru
    _
  %v22 = vld [vmem:[#allocation2] sm:$0xff]
  %v23 = vld [vmem:[#allocation2 + $0x8] sm:$0xff]
  %v24 = vld [vmem:[%s0] sm:$0xf]
  %v25 = vld [vmem:[%s0 + $0x4] sm:$0xf]
  %v26 = vld [vmem:[%s1] sm:$0xf]
  %v27 = vld [vmem:[%s1 + $0x4] sm:$0xf]
  %v28 = vld [vmem:[%s1 + $0x8] sm:$0xf]
  %v29 = vld [vmem:[%s1 + $0xc] sm:$0xf]
  %v32 = vunpack.c.l.b16 %v24
  %v33 = vunpack.c.l.b16 %v25
  %v34 = vpack.c.b16 %v33, %v32
  %v39 = vunpack.c.l.b16 %v26
  %v40 = vunpack.c.l.b16 %v27
  %v41 = vunpack.c.l.b16 %v28
  %v42 = vunpack.c.l.b16 %v29
  %v43 = vpack.c.b16 %v40, %v39
  %v44 = vpack.c.b16 %v42, %v41
  %vm47 = vcmask 261120
  %v49 = vsel %vm47, %v34, 0
  %51 = vmatprep.subr.bf16.mxu0 0
  %52 = vmatpush1.bf16.msra.mxu0 0
  %53 = vmatprep.subr.bf16.mxu0 0
  %54 = vmatpush1.bf16.msra.mxu0 0
  %55 = vmatprep.subr.bf16.mxu0 0
  %56 = vmatpush1.bf16.msra.mxu0 0
  %57 = vmatprep.subr.bf16.mxu0 0
  %58 = vmatpush1.bf16.msra.mxu0 0
  %59 = vmatprep.subr.bf16.mxu0 0
  %60 = vmatpush1.bf16.msra.mxu0 0
  %61 = vmatprep.subr.bf16.mxu0 0
  %62 = vmatpush1.bf16.msra.mxu0 0
  %63 = vmatprep.subr.bf16.mxu0 0
  %64 = vmatpush1.bf16.msra.mxu0 %v44
  %65 = vmatprep.subr.bf16.mxu0 0
  %66 = vmatpush1.bf16.msra.mxu0 %v43
  %67 = vmatprep.subr.bf16.mxu0 0
  %68 = vmatpush2.bf16.msra.mxu0 0
  %69 = vmatprep.subr.bf16.mxu0 0
  %70 = vmatpush2.bf16.msra.mxu0 0
  %71 = vmatprep.subr.bf16.mxu0 0
  %72 = vmatpush2.bf16.msra.mxu0 0
  %73 = vmatprep.subr.bf16.mxu0 0
  %74 = vmatpush2.bf16.msra.mxu0 0
  %75 = vmatprep.subr.bf16.mxu0 0
  %76 = vmatpush2.bf16.msra.mxu0 0
  %77 = vmatprep.subr.bf16.mxu0 0
  %78 = vmatpush2.bf16.msra.mxu0 0
  %79 = vmatprep.subr.bf16.mxu0 0
  %80 = vmatpush2.bf16.msra.mxu0 0
  %81 = vmatprep.subr.bf16.mxu0 0
  %82 = vmatpush2.bf16.msra.mxu0 0
  %83 = vmatprep.mubr.bf16.mxu0 0
  %84 = vmatmul.mubr.bf16.gmra.mxu0 %v49
  %v85 = vpop.f32.mrf.mxu0
  %v86 = vadd.f32 0.0, %v85
  %v87 = vpop.f32.mrf.mxu0
  %v88 = vpop.f32.mrf.mxu0
  %v89 = vadd.f32 0.0, %v88
  %v90 = vpop.f32.mrf.mxu0
  %91 = vdwg.mxu0
  %v92 = vadd.f32 %v22, %v86
  %v93 = vadd.f32 %v23, %v89
  %94 = vst.msk [vmem:[#allocation2] sm:$0xff] %vm47, %v92
  %95 = vst.msk [vmem:[#allocation2 + $0x8] sm:$0xff] %vm47, %v93
  // Predicated region
  $region18: #{_lambda_.57} parent=0 // pred_check
    %p96 = pneg %p15
  $region19: #{_lambda_.57} parent=0 // pred_check_branch
    %98 = sbr.rel (%p96) target = $region21
  $region20: #{_lambda_.57} parent=0 // pred_region
    %v99 = vld [vmem:[#allocation2] sm:$0xff]
    %v100 = vld [vmem:[#allocation2 + $0x8] sm:$0xff]
    %v101 = vld [vmem:[%s2] sm:$0x1]
    %v103 = vlaneseq
    %v104 = vshrl.u32 %v103, 7
    %v105 = vsub.s32 0, %v104
    %v106 = vrot.slane %v101, %v105
    %v108 = vadd.f32 %v99, %v106
    %v109 = vadd.f32 %v100, %v106
    %v110 = vpack.c.bf16 %v109, %v108
    %v112 = vunpack.c.l.b16 %v110
    %v113 = vunpack.c.h.b16 %v110
    %v114 = vpack.c.b16 %v112, %v112
    %v115 = vpack.c.b16 %v113, %v113
    %vm118 = vcmask 257024
    %119 = vst.msk [vmem:[%s3] sm:$0xf] %vm118, %v114
    %120 = vst.msk [vmem:[%s3 + $0x4] sm:$0xf] %vm118, %v115
  $region21: #{_lambda_.57} parent=0 // pred_fallthru
    _
  // Predicated region
  $region22: #{_lambda_.57} parent=0 // pred_check
    _
  $region23: #{_lambda_.57} parent=0 // pred_check_branch
    %122 = sbr.rel (0) target = $region25
  $region24: #{_lambda_.57} parent=0 // pred_region
    _
  $region25: #{_lambda_.57} parent=0 // pred_fallthru
    _
  // Predicated region
  $region26: #{_lambda_.57} parent=0 // pred_check
    _
  $region27: #{_lambda_.57} parent=0 // pred_check_branch
    %124 = sbr.rel (0) target = $region29
  $region28: #{_lambda_.57} parent=0 // pred_region
    _
  $region29: #{_lambda_.57} parent=0 // pred_fallthru
    _

// kernel: _lambda_.39
$region0: #{_lambda_.39}
  #allocation0 [shape = 'u32[]', space=smem, size = 0x4, offset = 0x4, fixed_abs, tag = 'smem constant byte address 0x4 - core index']
  #allocation1 [shape = 'u32[144,128]{1,0:T(1,128)}', space=vmem, size = 0x12000, scoped, tag = 'internal scratch']
  #allocation2 [shape = 'f32[20,96]{1,0:T(8,128)}', space=vmem, size = 0x3000, scoped, tag = 'scratch operand']
  %s0 = inlined_call_operand.vmem [shape: bf16[20,32], index: 0, kind: input, shape index: {}]
  %s1 = inlined_call_operand.vmem [shape: bf16[32,96], index: 1, kind: input, shape index: {}]
  %s2 = inlined_call_operand.vmem [shape: f32[1,96], index: 2, kind: input, shape index: {}]
  %s3 = inlined_call_operand.vmem [shape: bf16[20,96], index: 3, kind: output, shape index: {}]
  %s4 = sld [smem:[#allocation0]]
  $region30: #{_lambda_.39} parent=0
    _
  %s6 = ssub.s32 1, %s4
  %s7 = scalar_select 0, %s6, %s4
  // Predicated region
  $region2: #{_lambda_.39} parent=0 // pred_check
    _
  $region3: #{_lambda_.39} parent=0 // pred_check_branch
    %9 = sbr.rel (0) target = $region5
  $region4: #{_lambda_.39} parent=0 // pred_region
    _
  $region5: #{_lambda_.39} parent=0 // pred_fallthru
    _
  // Predicated region
  $region6: #{_lambda_.39} parent=0 // pred_check
    _
  $region7: #{_lambda_.39} parent=0 // pred_check_branch
    %11 = sbr.rel (0) target = $region9
  $region8: #{_lambda_.39} parent=0 // pred_region
    _
  $region9: #{_lambda_.39} parent=0 // pred_fallthru
    _
  // Predicated region
  $region10: #{_lambda_.39} parent=0 // pred_check
    _
  $region11: #{_lambda_.39} parent=0 // pred_check_branch
    %13 = sbr.rel (0) target = $region13
  $region12: #{_lambda_.39} parent=0 // pred_region
    _
  $region13: #{_lambda_.39} parent=0 // pred_fallthru
    _
  %p15 = scmp.eq.s32.totalorder 0, 0
  // Predicated region
  $region14: #{_lambda_.39} parent=0 // pred_check
    %p16 = pneg %p15
  $region15: #{_lambda_.39} parent=0 // pred_check_branch
    %18 = sbr.rel (%p16) target = $region17
  $region16: #{_lambda_.39} parent=0 // pred_region
    %vm19 = vcmask 785408
    %20 = vst.msk [vmem:[#allocation2] sm:$0xff] %vm19, 0.0
    %21 = vst.msk [vmem:[#allocation2 + $0x8] sm:$0xff] %vm19, 0.0
    %vm22 = vcmask 781312
    %23 = vst.msk [vmem:[#allocation2 + $0x10] sm:$0xf] %vm22, 0.0
  $region17: #{_lambda_.39} parent=0 // pred_fallthru
    _
  %v24 = vld [vmem:[#allocation2] sm:$0xff]
  %v25 = vld [vmem:[#allocation2 + $0x8] sm:$0xff]
  %v26 = vld [vmem:[#allocation2 + $0x10] sm:$0xf]
  %v27 = vld [vmem:[%s0] sm:$0xf]
  %v28 = vld [vmem:[%s0 + $0x4] sm:$0xf]
  %v29 = vld [vmem:[%s0 + $0x8] sm:$0x3]
  %v30 = vld [vmem:[%s1] sm:$0xf]
  %v31 = vld [vmem:[%s1 + $0x4] sm:$0xf]
  %v32 = vld [vmem:[%s1 + $0x8] sm:$0xf]
  %v33 = vld [vmem:[%s1 + $0xc] sm:$0xf]
  %v37 = vunpack.c.l.b16 %v27
  %v38 = vunpack.c.l.b16 %v28
  %v39 = vunpack.c.l.b16 %v29
  %v40 = vpack.c.b16 %v38, %v37
  %v41 = vpack.c.b16 %v39, %v39
  %v46 = vunpack.c.l.b16 %v30
  %v47 = vunpack.c.l.b16 %v31
  %v48 = vunpack.c.l.b16 %v32
  %v49 = vunpack.c.l.b16 %v33
  %v50 = vpack.c.b16 %v47, %v46
  %v51 = vpack.c.b16 %v49, %v48
  %vm54 = vcmask 261120
  %v56 = vsel %vm54, %v40, 0
  %v59 = vsel %vm54, %v41, 0
  %61 = vmatprep.subr.bf16.mxu0 0
  %62 = vmatpush1.bf16.msra.mxu0 0
  %63 = vmatprep.subr.bf16.mxu0 0
  %64 = vmatpush1.bf16.msra.mxu0 0
  %65 = vmatprep.subr.bf16.mxu0 0
  %66 = vmatpush1.bf16.msra.mxu0 0
  %67 = vmatprep.subr.bf16.mxu0 0
  %68 = vmatpush1.bf16.msra.mxu0 0
  %69 = vmatprep.subr.bf16.mxu0 0
  %70 = vmatpush1.bf16.msra.mxu0 0
  %71 = vmatprep.subr.bf16.mxu0 0
  %72 = vmatpush1.bf16.msra.mxu0 0
  %73 = vmatprep.subr.bf16.mxu0 0
  %74 = vmatpush1.bf16.msra.mxu0 %v51
  %75 = vmatprep.subr.bf16.mxu0 0
  %76 = vmatpush1.bf16.msra.mxu0 %v50
  %77 = vmatprep.subr.bf16.mxu0 0
  %78 = vmatpush2.bf16.msra.mxu0 0
  %79 = vmatprep.subr.bf16.mxu0 0
  %80 = vmatpush2.bf16.msra.mxu0 0
  %81 = vmatprep.subr.bf16.mxu0 0
  %82 = vmatpush2.bf16.msra.mxu0 0
  %83 = vmatprep.subr.bf16.mxu0 0
  %84 = vmatpush2.bf16.msra.mxu0 0
  %85 = vmatprep.subr.bf16.mxu0 0
  %86 = vmatpush2.bf16.msra.mxu0 0
  %87 = vmatprep.subr.bf16.mxu0 0
  %88 = vmatpush2.bf16.msra.mxu0 0
  %89 = vmatprep.subr.bf16.mxu0 0
  %90 = vmatpush2.bf16.msra.mxu0 0
  %91 = vmatprep.subr.bf16.mxu0 0
  %92 = vmatpush2.bf16.msra.mxu0 0
  %93 = vmatprep.mubr.bf16.mxu0 0
  %94 = vmatmul.mubr.bf16.gmra.mxu0 %v56
  %v95 = vpop.f32.mrf.mxu0
  %v96 = vadd.f32 0.0, %v95
  %v97 = vpop.f32.mrf.mxu0
  %v98 = vpop.f32.mrf.mxu0
  %v99 = vadd.f32 0.0, %v98
  %v100 = vpop.f32.mrf.mxu0
  %101 = vmatprep.mubr.bf16.mxu0 0
  %102 = vmatmul.mubr.bf16.gmra.mxu0 %v59
  %v103 = vpop.f32.mrf.mxu0
  %v104 = vadd.f32 0.0, %v103
  %v105 = vpop.f32.mrf.mxu0
  %v106 = vpop.f32.mrf.mxu0
  %v107 = vpop.f32.mrf.mxu0
  %108 = vdwg.mxu0
  %v109 = vadd.f32 %v24, %v96
  %v110 = vadd.f32 %v25, %v99
  %v111 = vadd.f32 %v26, %v104
  %vm112 = vcmask 785408
  %113 = vst.msk [vmem:[#allocation2] sm:$0xff] %vm112, %v109
  %114 = vst.msk [vmem:[#allocation2 + $0x8] sm:$0xff] %vm112, %v110
  %vm115 = vcmask 781312
  %116 = vst.msk [vmem:[#allocation2 + $0x10] sm:$0xf] %vm115, %v111
  // Predicated region
  $region18: #{_lambda_.39} parent=0 // pred_check
    %p117 = pneg %p15
  $region19: #{_lambda_.39} parent=0 // pred_check_branch
    %119 = sbr.rel (%p117) target = $region21
  $region20: #{_lambda_.39} parent=0 // pred_region
    %v120 = vld [vmem:[#allocation2] sm:$0xff]
    %v121 = vld [vmem:[#allocation2 + $0x8] sm:$0xff]
    %v122 = vld [vmem:[#allocation2 + $0x10] sm:$0xf]
    %v123 = vld [vmem:[%s2] sm:$0x1]
    %v125 = vlaneseq
    %v126 = vshrl.u32 %v125, 7
    %v127 = vsub.s32 0, %v126
    %v128 = vrot.slane %v123, %v127
    %v130 = vadd.f32 %v120, %v128
    %v131 = vadd.f32 %v121, %v128
    %v132 = vadd.f32 %v122, %v128
    %v133 = vpack.c.bf16 %v131, %v130
    %v134 = vpack.c.bf16 %v132, %v132
    %v137 = vunpack.c.l.b16 %v133
    %v138 = vunpack.c.h.b16 %v133
    %v139 = vunpack.c.l.b16 %v134
    %v140 = vpack.c.b16 %v137, %v137
    %v141 = vpack.c.b16 %v138, %v138
    %v142 = vpack.c.b16 %v139, %v139
    %146 = vst.msk [vmem:[%s3] sm:$0xf] %vm115, %v140
    %147 = vst.msk [vmem:[%s3 + $0x4] sm:$0xf] %vm115, %v141
    %vm148 = vcmask 779264
    %149 = vst.msk [vmem:[%s3 + $0x8] sm:$0x3] %vm148, %v142
  $region21: #{_lambda_.39} parent=0 // pred_fallthru
    _
  // Predicated region
  $region22: #{_lambda_.39} parent=0 // pred_check
    _
  $region23: #{_lambda_.39} parent=0 // pred_check_branch
    %151 = sbr.rel (0) target = $region25
  $region24: #{_lambda_.39} parent=0 // pred_region
    _
  $region25: #{_lambda_.39} parent=0 // pred_fallthru
    _
  // Predicated region
  $region26: #{_lambda_.39} parent=0 // pred_check
    _
  $region27: #{_lambda_.39} parent=0 // pred_check_branch
    %153 = sbr.rel (0) target = $region29
  $region28: #{_lambda_.39} parent=0 // pred_region
    _
  $region29: #{_lambda_.39} parent=0 // pred_fallthru
    _

// kernel: _lambda_.42
$region0: #{_lambda_.42}
  #allocation0 [shape = 'u32[]', space=smem, size = 0x4, offset = 0x4, fixed_abs, tag = 'smem constant byte address 0x4 - core index']
  #allocation1 [shape = 'u32[144,128]{1,0:T(1,128)}', space=vmem, size = 0x12000, scoped, tag = 'internal scratch']
  %s0 = inlined_call_operand.vmem [shape: f32[20,32], index: 0, kind: input, shape index: {}]
  %s1 = inlined_call_operand.vmem [shape: f32[20,32], index: 1, kind: input, shape index: {}]
  %s2 = inlined_call_operand.vmem [shape: f32[1,32], index: 2, kind: input, shape index: {}]
  %s3 = inlined_call_operand.vmem [shape: f32[1,32], index: 3, kind: input, shape index: {}]
  %s4 = inlined_call_operand.vmem [shape: f32[20,32], index: 4, kind: output, shape index: {}]
  %s5 = sld [smem:[#allocation0]]
  $region26: #{_lambda_.42} parent=0
    _
  %s7 = ssub.s32 1, %s5
  %s8 = scalar_select 0, %s7, %s5
  // Predicated region
  $region2: #{_lambda_.42} parent=0 // pred_check
    _
  $region3: #{_lambda_.42} parent=0 // pred_check_branch
    %10 = sbr.rel (0) target = $region5
  $region4: #{_lambda_.42} parent=0 // pred_region
    _
  $region5: #{_lambda_.42} parent=0 // pred_fallthru
    _
  // Predicated region
  $region6: #{_lambda_.42} parent=0 // pred_check
    _
  $region7: #{_lambda_.42} parent=0 // pred_check_branch
    %12 = sbr.rel (0) target = $region9
  $region8: #{_lambda_.42} parent=0 // pred_region
    _
  $region9: #{_lambda_.42} parent=0 // pred_fallthru
    _
  // Predicated region
  $region10: #{_lambda_.42} parent=0 // pred_check
    _
  $region11: #{_lambda_.42} parent=0 // pred_check_branch
    %14 = sbr.rel (0) target = $region13
  $region12: #{_lambda_.42} parent=0 // pred_region
    _
  $region13: #{_lambda_.42} parent=0 // pred_fallthru
    _
  // Predicated region
  $region14: #{_lambda_.42} parent=0 // pred_check
    _
  $region15: #{_lambda_.42} parent=0 // pred_check_branch
    %16 = sbr.rel (0) target = $region17
  $region16: #{_lambda_.42} parent=0 // pred_region
    _
  $region17: #{_lambda_.42} parent=0 // pred_fallthru
    _
  %v17 = vld [vmem:[%s0] sm:$0xff]
  %v18 = vld [vmem:[%s0 + $0x8] sm:$0xff]
  %v19 = vld [vmem:[%s0 + $0x10] sm:$0xf]
  %v20 = vld [vmem:[%s1] sm:$0xff]
  %v21 = vld [vmem:[%s1 + $0x8] sm:$0xff]
  %v22 = vld [vmem:[%s1 + $0x10] sm:$0xf]
  %v23 = vadd.f32 %v17, %v20
  %v24 = vadd.f32 %v18, %v21
  %v25 = vadd.f32 %v19, %v22
  %vm26 = vcmask 261120
  %v27 = vsel %vm26, %v23, 0.0
  %28 = vadd.xlane.f32.xlu0 %v27
  %v29 = vpop.xlane.xlu0 %28
  %v30 = vsel %vm26, %v24, 0.0
  %31 = vadd.xlane.f32.xlu0 %v30
  %v32 = vpop.xlane.xlu0 %31
  %vm33 = vcmask 257024
  %v34 = vsel %vm33, %v25, 0.0
  %35 = vadd.xlane.f32.xlu0 %v34
  %v36 = vpop.xlane.xlu0 %35
  %v37 = vrcp.pop 32.0
  %v38 = vmul.f32 %v29, %v37
  %v39 = vmul.f32 %v32, %v37
  %v40 = vmul.f32 %v36, %v37
  %v41 = vsub.f32 %v23, %v38
  %v42 = vsub.f32 %v24, %v39
  %v43 = vsub.f32 %v25, %v40
  %v44 = vmul.f32 %v41, %v41
  %v45 = vmul.f32 %v42, %v42
  %v46 = vmul.f32 %v43, %v43
  %v47 = vsel %vm26, %v44, 0.0
  %48 = vadd.xlane.f32.xlu0 %v47
  %v49 = vpop.xlane.xlu0 %48
  %v50 = vsel %vm26, %v45, 0.0
  %51 = vadd.xlane.f32.xlu0 %v50
  %v52 = vpop.xlane.xlu0 %51
  %v53 = vsel %vm33, %v46, 0.0
  %54 = vadd.xlane.f32.xlu0 %v53
  %v55 = vpop.xlane.xlu0 %54
  %v56 = vmul.f32 %v49, %v37
  %v57 = vmul.f32 %v52, %v37
  %v58 = vmul.f32 %v55, %v37
  %v59 = vadd.f32 %v56, 1e-05
  %v60 = vadd.f32 %v57, 1e-05
  %v61 = vadd.f32 %v58, 1e-05
  %v62 = vrsqrt.pop %v59
  %v63 = vrsqrt.pop %v60
  %v64 = vrsqrt.pop %v61
  %v65 = vmul.f32 %v41, %v62
  %v66 = vmul.f32 %v42, %v63
  %v67 = vmul.f32 %v43, %v64
  %v68 = vld [vmem:[%s2] sm:$0x1]
  %v70 = vlaneseq
  %v71 = vshrl.u32 %v70, 7
  %v72 = vsub.s32 0, %v71
  %v73 = vrot.slane %v68, %v72
  %v75 = vmul.f32 %v65, %v73
  %v76 = vmul.f32 %v66, %v73
  %v77 = vmul.f32 %v67, %v73
  %v78 = vld [vmem:[%s3] sm:$0x1]
  %v80 = vlaneseq
  %v81 = vshrl.u32 %v80, 7
  %v82 = vsub.s32 0, %v81
  %v83 = vrot.slane %v78, %v82
  %v85 = vadd.f32 %v75, %v83
  %v86 = vadd.f32 %v76, %v83
  %v87 = vadd.f32 %v77, %v83
  %88 = vst.msk [vmem:[%s4] sm:$0xff] %vm26, %v85
  %89 = vst.msk [vmem:[%s4 + $0x8] sm:$0xff] %vm26, %v86
  %90 = vst.msk [vmem:[%s4 + $0x10] sm:$0xf] %vm33, %v87
  // Predicated region
  $region18: #{_lambda_.42} parent=0 // pred_check
    _
  $region19: #{_lambda_.42} parent=0 // pred_check_branch
    %92 = sbr.rel (0) target = $region21
  $region20: #{_lambda_.42} parent=0 // pred_region
    _
  $region21: #{_lambda_.42} parent=0 // pred_fallthru
    _
  // Predicated region
  $region22: #{_lambda_.42} parent=0 // pred_check
    _
  $region23: #{_lambda_.42} parent=0 // pred_check_branch
    %94 = sbr.rel (0) target = $region25
  $region24: #{_lambda_.42} parent=0 // pred_region
    _
  $region25: #{_lambda_.42} parent=0 // pred_fallthru
    _

// kernel: _lambda_.41
$region0: #{_lambda_.41}
  #allocation0 [shape = 'u32[]', space=smem, size = 0x4, offset = 0x4, fixed_abs, tag = 'smem constant byte address 0x4 - core index']
  #allocation1 [shape = 'u32[144,128]{1,0:T(1,128)}', space=vmem, size = 0x12000, scoped, tag = 'internal scratch']
  #allocation2 [shape = 'f32[20,32]{1,0:T(8,128)}', space=vmem, size = 0x3000, scoped, tag = 'scratch operand']
  %s0 = inlined_call_operand.vmem [shape: bf16[20,32], index: 0, kind: input, shape index: {}]
  %s1 = inlined_call_operand.vmem [shape: bf16[32,32], index: 1, kind: input, shape index: {}]
  %s2 = inlined_call_operand.vmem [shape: f32[1,32], index: 2, kind: input, shape index: {}]
  %s3 = inlined_call_operand.vmem [shape: f32[20,32], index: 3, kind: output, shape index: {}]
  %s4 = sld [smem:[#allocation0]]
  $region30: #{_lambda_.41} parent=0
    _
  %s6 = ssub.s32 1, %s4
  %s7 = scalar_select 0, %s6, %s4
  // Predicated region
  $region2: #{_lambda_.41} parent=0 // pred_check
    _
  $region3: #{_lambda_.41} parent=0 // pred_check_branch
    %9 = sbr.rel (0) target = $region5
  $region4: #{_lambda_.41} parent=0 // pred_region
    _
  $region5: #{_lambda_.41} parent=0 // pred_fallthru
    _
  // Predicated region
  $region6: #{_lambda_.41} parent=0 // pred_check
    _
  $region7: #{_lambda_.41} parent=0 // pred_check_branch
    %11 = sbr.rel (0) target = $region9
  $region8: #{_lambda_.41} parent=0 // pred_region
    _
  $region9: #{_lambda_.41} parent=0 // pred_fallthru
    _
  // Predicated region
  $region10: #{_lambda_.41} parent=0 // pred_check
    _
  $region11: #{_lambda_.41} parent=0 // pred_check_branch
    %13 = sbr.rel (0) target = $region13
  $region12: #{_lambda_.41} parent=0 // pred_region
    _
  $region13: #{_lambda_.41} parent=0 // pred_fallthru
    _
  %p15 = scmp.eq.s32.totalorder 0, 0
  // Predicated region
  $region14: #{_lambda_.41} parent=0 // pred_check
    %p16 = pneg %p15
  $region15: #{_lambda_.41} parent=0 // pred_check_branch
    %18 = sbr.rel (%p16) target = $region17
  $region16: #{_lambda_.41} parent=0 // pred_region
    %vm19 = vcmask 261120
    %20 = vst.msk [vmem:[#allocation2] sm:$0xff] %vm19, 0.0
    %21 = vst.msk [vmem:[#allocation2 + $0x8] sm:$0xff] %vm19, 0.0
    %vm22 = vcmask 257024
    %23 = vst.msk [vmem:[#allocation2 + $0x10] sm:$0xf] %vm22, 0.0
  $region17: #{_lambda_.41} parent=0 // pred_fallthru
    _
  %v24 = vld [vmem:[#allocation2] sm:$0xff]
  %v25 = vld [vmem:[#allocation2 + $0x8] sm:$0xff]
  %v26 = vld [vmem:[#allocation2 + $0x10] sm:$0xf]
  %v27 = vld [vmem:[%s0] sm:$0xf]
  %v28 = vld [vmem:[%s0 + $0x4] sm:$0xf]
  %v29 = vld [vmem:[%s0 + $0x8] sm:$0x3]
  %v30 = vld [vmem:[%s1] sm:$0xf]
  %v31 = vld [vmem:[%s1 + $0x4] sm:$0xf]
  %v32 = vld [vmem:[%s1 + $0x8] sm:$0xf]
  %v33 = vld [vmem:[%s1 + $0xc] sm:$0xf]
  %v37 = vunpack.c.l.b16 %v27
  %v38 = vunpack.c.l.b16 %v28
  %v39 = vunpack.c.l.b16 %v29
  %v40 = vpack.c.b16 %v38, %v37
  %v41 = vpack.c.b16 %v39, %v39
  %v46 = vunpack.c.l.b16 %v30
  %v47 = vunpack.c.l.b16 %v31
  %v48 = vunpack.c.l.b16 %v32
  %v49 = vunpack.c.l.b16 %v33
  %v50 = vpack.c.b16 %v47, %v46
  %v51 = vpack.c.b16 %v49, %v48
  %vm54 = vcmask 261120
  %v56 = vsel %vm54, %v40, 0
  %v59 = vsel %vm54, %v41, 0
  %61 = vmatprep.subr.bf16.mxu0 0
  %62 = vmatpush1.bf16.msra.mxu0 0
  %63 = vmatprep.subr.bf16.mxu0 0
  %64 = vmatpush1.bf16.msra.mxu0 0
  %65 = vmatprep.subr.bf16.mxu0 0
  %66 = vmatpush1.bf16.msra.mxu0 0
  %67 = vmatprep.subr.bf16.mxu0 0
  %68 = vmatpush1.bf16.msra.mxu0 0
  %69 = vmatprep.subr.bf16.mxu0 0
  %70 = vmatpush1.bf16.msra.mxu0 0
  %71 = vmatprep.subr.bf16.mxu0 0
  %72 = vmatpush1.bf16.msra.mxu0 0
  %73 = vmatprep.subr.bf16.mxu0 0
  %74 = vmatpush1.bf16.msra.mxu0 %v51
  %75 = vmatprep.subr.bf16.mxu0 0
  %76 = vmatpush1.bf16.msra.mxu0 %v50
  %77 = vmatprep.subr.bf16.mxu0 0
  %78 = vmatpush2.bf16.msra.mxu0 0
  %79 = vmatprep.subr.bf16.mxu0 0
  %80 = vmatpush2.bf16.msra.mxu0 0
  %81 = vmatprep.subr.bf16.mxu0 0
  %82 = vmatpush2.bf16.msra.mxu0 0
  %83 = vmatprep.subr.bf16.mxu0 0
  %84 = vmatpush2.bf16.msra.mxu0 0
  %85 = vmatprep.subr.bf16.mxu0 0
  %86 = vmatpush2.bf16.msra.mxu0 0
  %87 = vmatprep.subr.bf16.mxu0 0
  %88 = vmatpush2.bf16.msra.mxu0 0
  %89 = vmatprep.subr.bf16.mxu0 0
  %90 = vmatpush2.bf16.msra.mxu0 0
  %91 = vmatprep.subr.bf16.mxu0 0
  %92 = vmatpush2.bf16.msra.mxu0 0
  %93 = vmatprep.mubr.bf16.mxu0 0
  %94 = vmatmul.mubr.bf16.gmra.mxu0 %v56
  %v95 = vpop.f32.mrf.mxu0
  %v96 = vadd.f32 0.0, %v95
  %v97 = vpop.f32.mrf.mxu0
  %v98 = vpop.f32.mrf.mxu0
  %v99 = vadd.f32 0.0, %v98
  %v100 = vpop.f32.mrf.mxu0
  %101 = vmatprep.mubr.bf16.mxu0 0
  %102 = vmatmul.mubr.bf16.gmra.mxu0 %v59
  %v103 = vpop.f32.mrf.mxu0
  %v104 = vadd.f32 0.0, %v103
  %v105 = vpop.f32.mrf.mxu0
  %v106 = vpop.f32.mrf.mxu0
  %v107 = vpop.f32.mrf.mxu0
  %108 = vdwg.mxu0
  %v109 = vadd.f32 %v24, %v96
  %v110 = vadd.f32 %v25, %v99
  %v111 = vadd.f32 %v26, %v104
  %112 = vst.msk [vmem:[#allocation2] sm:$0xff] %vm54, %v109
  %113 = vst.msk [vmem:[#allocation2 + $0x8] sm:$0xff] %vm54, %v110
  %vm114 = vcmask 257024
  %115 = vst.msk [vmem:[#allocation2 + $0x10] sm:$0xf] %vm114, %v111
  // Predicated region
  $region18: #{_lambda_.41} parent=0 // pred_check
    %p116 = pneg %p15
  $region19: #{_lambda_.41} parent=0 // pred_check_branch
    %118 = sbr.rel (%p116) target = $region21
  $region20: #{_lambda_.41} parent=0 // pred_region
    %v119 = vld [vmem:[#allocation2] sm:$0xff]
    %v120 = vld [vmem:[#allocation2 + $0x8] sm:$0xff]
    %v121 = vld [vmem:[#allocation2 + $0x10] sm:$0xf]
    %v122 = vld [vmem:[%s2] sm:$0x1]
    %v124 = vlaneseq
    %v125 = vshrl.u32 %v124, 7
    %v126 = vsub.s32 0, %v125
    %v127 = vrot.slane %v122, %v126
    %v129 = vadd.f32 %v119, %v127
    %v130 = vadd.f32 %v120, %v127
    %v131 = vadd.f32 %v121, %v127
    %132 = vst.msk [vmem:[%s3] sm:$0xff] %vm54, %v129
    %133 = vst.msk [vmem:[%s3 + $0x8] sm:$0xff] %vm54, %v130
    %134 = vst.msk [vmem:[%s3 + $0x10] sm:$0xf] %vm114, %v131
  $region21: #{_lambda_.41} parent=0 // pred_fallthru
    _
  // Predicated region
  $region22: #{_lambda_.41} parent=0 // pred_check
    _
  $region23: #{_lambda_.41} parent=0 // pred_check_branch
    %136 = sbr.rel (0) target = $region25
  $region24: #{_lambda_.41} parent=0 // pred_region
    _
  $region25: #{_lambda_.41} parent=0 // pred_fallthru
    _
  // Predicated region
  $region26: #{_lambda_.41} parent=0 // pred_check
    _
  $region27: #{_lambda_.41} parent=0 // pred_check_branch
    %138 = sbr.rel (0) target = $region29
  $region28: #{_lambda_.41} parent=0 // pred_region
    _
  $region29: #{_lambda_.41} parent=0 // pred_fallthru
    _

// kernel: _lambda_.40
$region0: #{_lambda_.40}
  #allocation0 [shape = 'u32[]', space=smem, size = 0x4, offset = 0x4, fixed_abs, tag = 'smem constant byte address 0x4 - core index']
  #allocation1 [shape = 'u32[144,128]{1,0:T(1,128)}', space=vmem, size = 0x12000, scoped, tag = 'internal scratch']
  %s0 = inlined_call_operand.vmem [shape: bf16[2,10,32], index: 0, kind: input, shape index: {}]
  %s1 = inlined_call_operand.vmem [shape: bf16[2,10,32], index: 1, kind: input, shape index: {}]
  %s2 = inlined_call_operand.vmem [shape: bf16[2,10,32], index: 2, kind: input, shape index: {}]
  %s3 = inlined_call_operand.vmem [shape: bf16[2,10,32], index: 3, kind: output, shape index: {}]
  %s4 = sld [smem:[#allocation0]]
  $region45: #{_lambda_.40} parent=0
    _
  %s6 = ssub.s32 1, %s4
  %s7 = scalar_select 0, %s6, %s4
  loop: start=0, step=1, limit=4
  $region2: #{_lambda_.40} parent=0 // loop_pre_header
    _
  $region3: #{_lambda_.40} parent=0 // loop_header
    %s9 = sphi 0, %s13
    %p10 = scmp.ge.s32.totalorder %s9, 4
    %s19 = sphi 0, %s21
    %s22 = sphi 0, %s19
    %s23 = sphi 0, %s22
    %s39 = sphi 0, %s23
    %s45 = sphi 0, %s47
    %s48 = sphi 0, %s45
    %s49 = sphi 0, %s48
    %s65 = sphi 0, %s49
    %s71 = sphi 0, %s73
    %s74 = sphi 0, %s71
    %s75 = sphi 0, %s74
    %s91 = sphi 0, %s75
    %s97 = sphi 0, %s99
    %s100 = sphi 0, %s97
    %s101 = sphi 0, %s100
    %s117 = sphi 0, %s101
  $region4: #{_lambda_.40} parent=0 // loop_header_branch
    %12 = sbr.rel (%p10) target = $region8
  $region5: #{_lambda_.40} parent=0 // loop_body
    %s14 = ssub.s32 %s9, 1
    %s15 = ssub.s32 %s9, 2
    %s16 = sadd.s32 %s9, 1
    %s17 = ssub.s32 %s9, %s16
    %p18 = scmp.eq.s32.totalorder %s17, 0
    %s20 = sadd.s32 %s19, 1
    %s21 = scalar_select %p18, %s19, %s20
    %p24 = pneg %p18
    %p25 = scmp.eq.s32.totalorder %s9, 1
    %p26 = por %p24, %p25
    %p27 = scmp.ne.s32.totalorder %s19, %s22
    %p28 = scmp.eq.s32.totalorder %s9, 0
    %p29 = por %p27, %p28
    %p30 = scmp.ne.s32.totalorder %s19, %s22
    %p31 = scmp.eq.s32.totalorder %s14, 1
    %p32 = por %p30, %p31
    %p33 = scmp.ne.s32.totalorder %s22, %s23
    %p34 = scmp.eq.s32.totalorder %s14, 0
    %p35 = por %p33, %p34
    %p36 = scmp.ne.s32.totalorder %s22, %s23
    %p37 = scmp.eq.s32.totalorder %s15, 1
    %p38 = por %p36, %p37
    %p40 = scmp.ne.s32.totalorder %s23, %s39
    %p41 = scmp.eq.s32.totalorder %s15, 0
    %p42 = por %p40, %p41
    %s43 = ssub.s32 %s9, %s16
    %p44 = scmp.eq.s32.totalorder %s43, 0
    %s46 = sadd.s32 %s45, 1
    %s47 = scalar_select %p44, %s45, %s46
    %p50 = pneg %p44
    %p51 = scmp.eq.s32.totalorder %s9, 1
    %p52 = por %p50, %p51
    %p53 = scmp.ne.s32.totalorder %s45, %s48
    %p54 = scmp.eq.s32.totalorder %s9, 0
    %p55 = por %p53, %p54
    %p56 = scmp.ne.s32.totalorder %s45, %s48
    %p57 = scmp.eq.s32.totalorder %s14, 1
    %p58 = por %p56, %p57
    %p59 = scmp.ne.s32.totalorder %s48, %s49
    %p60 = scmp.eq.s32.totalorder %s14, 0
    %p61 = por %p59, %p60
    %p62 = scmp.ne.s32.totalorder %s48, %s49
    %p63 = scmp.eq.s32.totalorder %s15, 1
    %p64 = por %p62, %p63
    %p66 = scmp.ne.s32.totalorder %s49, %s65
    %p67 = scmp.eq.s32.totalorder %s15, 0
    %p68 = por %p66, %p67
    %s69 = ssub.s32 %s9, %s16
    %p70 = scmp.eq.s32.totalorder %s69, 0
    %s72 = sadd.s32 %s71, 1
    %s73 = scalar_select %p70, %s71, %s72
    %p76 = pneg %p70
    %p77 = scmp.eq.s32.totalorder %s9, 1
    %p78 = por %p76, %p77
    %p79 = scmp.ne.s32.totalorder %s71, %s74
    %p80 = scmp.eq.s32.totalorder %s9, 0
    %p81 = por %p79, %p80
    %p82 = scmp.ne.s32.totalorder %s71, %s74
    %p83 = scmp.eq.s32.totalorder %s14, 1
    %p84 = por %p82, %p83
    %p85 = scmp.ne.s32.totalorder %s74, %s75
    %p86 = scmp.eq.s32.totalorder %s14, 0
    %p87 = por %p85, %p86
    %p88 = scmp.ne.s32.totalorder %s74, %s75
    %p89 = scmp.eq.s32.totalorder %s15, 1
    %p90 = por %p88, %p89
    %p92 = scmp.ne.s32.totalorder %s75, %s91
    %p93 = scmp.eq.s32.totalorder %s15, 0
    %p94 = por %p92, %p93
    %s95 = ssub.s32 %s9, %s16
    %p96 = scmp.eq.s32.totalorder %s95, 0
    %s98 = sadd.s32 %s97, 1
    %s99 = scalar_select %p96, %s97, %s98
    %p102 = pneg %p96
    %p103 = scmp.eq.s32.totalorder %s9, 1
    %p104 = por %p102, %p103
    %p105 = scmp.ne.s32.totalorder %s97, %s100
    %p106 = scmp.eq.s32.totalorder %s9, 0
    %p107 = por %p105, %p106
    %p108 = scmp.ne.s32.totalorder %s97, %s100
    %p109 = scmp.eq.s32.totalorder %s14, 1
    %p110 = por %p108, %p109
    %p111 = scmp.ne.s32.totalorder %s100, %s101
    %p112 = scmp.eq.s32.totalorder %s14, 0
    %p113 = por %p111, %p112
    %p114 = scmp.ne.s32.totalorder %s100, %s101
    %p115 = scmp.eq.s32.totalorder %s15, 1
    %p116 = por %p114, %p115
    %p118 = scmp.ne.s32.totalorder %s101, %s117
    %p119 = scmp.eq.s32.totalorder %s15, 0
    %p120 = por %p118, %p119
    %p121 = scmp.le.s32.totalorder 1, %s9
    %p122 = scmp.lt.s32.totalorder %s9, 3
    %p123 = pnand %p121, %p122
    %p124 = pneg %p123
    // Predicated region
    $region9: #{_lambda_.40} parent=5 // pred_check
      _
    $region10: #{_lambda_.40} parent=5 // pred_check_branch
      %126 = sbr.rel (%p123) target = $region12
    $region11: #{_lambda_.40} parent=5 // pred_region
      %s127 = ssub.s32 %s9, 1
    $region12: #{_lambda_.40} parent=5 // pred_fallthru
      _
    %p128 = scmp.lt.s32.totalorder %s9, 2
    // Predicated region
    $region13: #{_lambda_.40} parent=5 // pred_check
      %p129 = pneg %p128
    $region14: #{_lambda_.40} parent=5 // pred_check_branch
      %131 = sbr.rel (%p129) target = $region16
    $region15: #{_lambda_.40} parent=5 // pred_region
      // Predicated region
      $region17: #{_lambda_.40} parent=15 // pred_check
        %p132 = pneg %p29
      $region18: #{_lambda_.40} parent=15 // pred_check_branch
        %134 = sbr.rel (%p132) target = $region20
      $region19: #{_lambda_.40} parent=15 // pred_region
        %p135 = scmp.lt.s32.totalorder %s9, 1
        %s136 = scalar_select %p135, %s9, 1
        %s137 = smul.addr %s136, 2
        %s138 = smul.addr %s137, 4
        %s139 = scalar_lea.vmem %s0, %s138
      $region20: #{_lambda_.40} parent=15 // pred_fallthru
        _
      // Predicated region
      $region21: #{_lambda_.40} parent=15 // pred_check
        %p140 = pneg %p55
      $region22: #{_lambda_.40} parent=15 // pred_check_branch
        %142 = sbr.rel (%p140) target = $region24
      $region23: #{_lambda_.40} parent=15 // pred_region
        %p143 = scmp.lt.s32.totalorder %s9, 1
        %s144 = scalar_select %p143, %s9, 1
        %s145 = smul.addr %s144, 2
        %s146 = smul.addr %s145, 4
        %s147 = scalar_lea.vmem %s1, %s146
      $region24: #{_lambda_.40} parent=15 // pred_fallthru
        _
      // Predicated region
      $region25: #{_lambda_.40} parent=15 // pred_check
        %p148 = pneg %p81
      $region26: #{_lambda_.40} parent=15 // pred_check_branch
        %150 = sbr.rel (%p148) target = $region28
      $region27: #{_lambda_.40} parent=15 // pred_region
        %p151 = scmp.lt.s32.totalorder %s9, 1
        %s152 = scalar_select %p151, %s9, 1
        %s153 = smul.addr %s152, 2
        %s154 = smul.addr %s153, 4
        %s155 = scalar_lea.vmem %s2, %s154
      $region28: #{_lambda_.40} parent=15 // pred_fallthru
        _
    $region16: #{_lambda_.40} parent=5 // pred_fallthru
      _
    %p156 = scmp.le.s32.totalorder 1, %s9
    %p157 = scmp.lt.s32.totalorder %s9, 3
    %p158 = pnand %p156, %p157
    %p159 = pneg %p158
    // Predicated region
    $region29: #{_lambda_.40} parent=5 // pred_check
      _
    $region30: #{_lambda_.40} parent=5 // pred_check_branch
      %161 = sbr.rel (%p158) target = $region32
    $region31: #{_lambda_.40} parent=5 // pred_region
      %s162 = ssub.s32 %s9, 1
      %p163 = scmp.lt.s32.totalorder %s14, 1
      %s164 = scalar_select %p163, %s14, 1
      %s165 = smul.addr %s164, 2
      %s166 = smul.addr %s165, 4
      %s167 = scalar_lea.vmem %s0, %s166
      %p168 = pneg %p35
      %p169 = pneg %p32
      %p170 = scmp.lt.s32.totalorder %s14, 1
      %s171 = scalar_select %p170, %s14, 1
      %s172 = smul.addr %s171, 2
      %s173 = smul.addr %s172, 4
      %s174 = scalar_lea.vmem %s1, %s173
      %p175 = pneg %p61
      %p176 = pneg %p58
      %p177 = scmp.lt.s32.totalorder %s14, 1
      %s178 = scalar_select %p177, %s14, 1
      %s179 = smul.addr %s178, 2
      %s180 = smul.addr %s179, 4
      %s181 = scalar_lea.vmem %s2, %s180
      %p182 = pneg %p87
      %p183 = pneg %p84
      %p184 = pneg %p113
      %p185 = pneg %p110
      %p186 = scmp.lt.s32.totalorder %s14, 1
      %s187 = scalar_select %p186, %s14, 1
      %s188 = smul.addr %s187, 2
      %s189 = smul.addr %s188, 4
      %s190 = scalar_lea.vmem %s3, %s189
      %p191 = scmp.lt.s32.totalorder %s14, 1
      %s192 = scalar_select %p191, %s14, 1
      %s193 = smul.addr %s192, 2
      %s194 = smul.addr %s193, 4
      %s195 = scalar_lea.vmem %s0, %s194
      %p196 = scmp.lt.s32.totalorder %s14, 1
      %s197 = scalar_select %p196, %s14, 1
      %s198 = smul.addr %s197, 2
      %s199 = smul.addr %s198, 4
      %s200 = scalar_lea.vmem %s1, %s199
      %p201 = scmp.lt.s32.totalorder %s14, 1
      %s202 = scalar_select %p201, %s14, 1
      %s203 = smul.addr %s202, 2
      %s204 = smul.addr %s203, 4
      %s205 = scalar_lea.vmem %s2, %s204
      %p206 = scmp.lt.s32.totalorder %s14, 1
      %s207 = scalar_select %p206, %s14, 1
      %s208 = smul.addr %s207, 2
      %s209 = smul.addr %s208, 4
      %s210 = scalar_lea.vmem %s3, %s209
      %v212 = vld [vmem:[%s195] sm:$0xf]
      %v213 = vld [vmem:[%s195 + $0x4] sm:$0x1]
      %v214 = vld [vmem:[%s200] sm:$0xf]
      %v215 = vld [vmem:[%s200 + $0x4] sm:$0x1]
      %v216 = vld [vmem:[%s205] sm:$0xf]
      %v217 = vld [vmem:[%s205 + $0x4] sm:$0x1]
      %v220 = vunpack.c.l.b16 %v212
      %v221 = vunpack.c.l.b16 %v213
      %v222 = vpack.c.b16 %v221, %v220
      %v225 = vunpack.c.l.b16 %v214
      %v226 = vunpack.c.l.b16 %v215
      %v227 = vpack.c.b16 %v226, %v225
      %vm228 = vcmask 64512
      %v230 = vsel %vm228, %v222, 0
      %v233 = vsel %vm228, %v227, 0
      %235 = vmatprep.subr.bf16.mxu0 0
      %236 = vmatpush1.bf16.xpose.msra.mxu0 0
      %237 = vmatprep.subr.bf16.mxu0 0
      %238 = vmatpush1.bf16.xpose.msra.mxu0 0
      %239 = vmatprep.subr.bf16.mxu0 0
      %240 = vmatpush1.bf16.xpose.msra.mxu0 0
      %241 = vmatprep.subr.bf16.mxu0 0
      %242 = vmatpush1.bf16.xpose.msra.mxu0 0
      %243 = vmatprep.subr.bf16.mxu0 0
      %244 = vmatpush1.bf16.xpose.msra.mxu0 0
      %245 = vmatprep.subr.bf16.mxu0 0
      %246 = vmatpush1.bf16.xpose.msra.mxu0 0
      %247 = vmatprep.subr.bf16.mxu0 0
      %248 = vmatpush1.bf16.xpose.msra.mxu0 0
      %249 = vmatprep.subr.bf16.mxu0 0
      %250 = vmatpush1.bf16.xpose.msra.mxu0 %v233
      %251 = vmatprep.subr.bf16.mxu0 0
      %252 = vmatpush2.bf16.xpose.msra.mxu0 0
      %253 = vmatprep.subr.bf16.mxu0 0
      %254 = vmatpush2.bf16.xpose.msra.mxu0 0
      %255 = vmatprep.subr.bf16.mxu0 0
      %256 = vmatpush2.bf16.xpose.msra.mxu0 0
      %257 = vmatprep.subr.bf16.mxu0 0
      %258 = vmatpush2.bf16.xpose.msra.mxu0 0
      %259 = vmatprep.subr.bf16.mxu0 0
      %260 = vmatpush2.bf16.xpose.msra.mxu0 0
      %261 = vmatprep.subr.bf16.mxu0 0
      %262 = vmatpush2.bf16.xpose.msra.mxu0 0
      %263 = vmatprep.subr.bf16.mxu0 0
      %264 = vmatpush2.bf16.xpose.msra.mxu0 0
      %265 = vmatprep.subr.bf16.mxu0 0
      %266 = vmatpush2.bf16.xpose.msra.mxu0 0
      %267 = vmatprep.mubr.bf16.mxu0 0
      %268 = vmatmul.mubr.bf16.gmra.mxu0 %v230
      %v269 = vpop.f32.mrf.mxu0
      %v270 = vadd.f32 0.0, %v269
      %v271 = vpop.f32.mrf.mxu0
      %v272 = vpop.f32.mrf.mxu0
      %v273 = vadd.f32 0.0, %v272
      %v274 = vpop.f32.mrf.mxu0
      %275 = vdwg.mxu0
      %v276 = vmul.f32 %v270, 0.35355338
      %v277 = vmul.f32 %v273, 0.35355338
      %vm278 = vcmask 80896
      %v279 = vsel %vm278, %v276, -inf
      %280 = vmax.xlane.f32.xlu0 %v279
      %v281 = vpop.xlane.xlu0 %280
      %vm282 = vcmask 74752
      %v283 = vsel %vm282, %v277, -inf
      %284 = vmax.xlane.f32.xlu0 %v283
      %v285 = vpop.xlane.xlu0 %284
      %v286 = vsub.f32 %v276, %v281
      %v287 = vsub.f32 %v277, %v285
      %v288 = vmul.f32 %v286, 1.442695
      %v289 = vpow.pop %v288
      %v290 = vmul.f32 %v287, 1.442695
      %v291 = vpow.pop %v290
      %v292 = vsel %vm278, %v289, 0.0
      %293 = vadd.xlane.f32.xlu0 %v292
      %v294 = vpop.xlane.xlu0 %293
      %v295 = vsel %vm282, %v291, 0.0
      %296 = vadd.xlane.f32.xlu0 %v295
      %v297 = vpop.xlane.xlu0 %296
      %v298 = vrcp.pop %v294
      %v299 = vrcp.pop %v297
      %v300 = vmul.f32 %v289, %v298
      %v301 = vmul.f32 %v291, %v299
      %v302 = vpack.c.bf16 %v301, %v300
      %v305 = vunpack.c.l.b16 %v216
      %v306 = vunpack.c.l.b16 %v217
      %v307 = vpack.c.b16 %v306, %v305
      %v309 = vsel %vm278, %v302, 0
      %vm311 = vcmask 1044480
      %v313 = vsel %vm311, %v307, 0
      %315 = vmatprep.subr.bf16.mxu0 0
      %316 = vmatpush1.bf16.msra.mxu0 0
      %317 = vmatprep.subr.bf16.mxu0 0
      %318 = vmatpush1.bf16.msra.mxu0 0
      %319 = vmatprep.subr.bf16.mxu0 0
      %320 = vmatpush1.bf16.msra.mxu0 0
      %321 = vmatprep.subr.bf16.mxu0 0
      %322 = vmatpush1.bf16.msra.mxu0 0
      %323 = vmatprep.subr.bf16.mxu0 0
      %324 = vmatpush1.bf16.msra.mxu0 0
      %325 = vmatprep.subr.bf16.mxu0 0
      %326 = vmatpush1.bf16.msra.mxu0 0
      %327 = vmatprep.subr.bf16.mxu0 0
      %328 = vmatpush1.bf16.msra.mxu0 0
      %329 = vmatprep.subr.bf16.mxu0 0
      %330 = vmatpush1.bf16.msra.mxu0 %v313
      %331 = vmatprep.subr.bf16.mxu0 0
      %332 = vmatpush2.bf16.msra.mxu0 0
      %333 = vmatprep.subr.bf16.mxu0 0
      %334 = vmatpush2.bf16.msra.mxu0 0
      %335 = vmatprep.subr.bf16.mxu0 0
      %336 = vmatpush2.bf16.msra.mxu0 0
      %337 = vmatprep.subr.bf16.mxu0 0
      %338 = vmatpush2.bf16.msra.mxu0 0
      %339 = vmatprep.subr.bf16.mxu0 0
      %340 = vmatpush2.bf16.msra.mxu0 0
      %341 = vmatprep.subr.bf16.mxu0 0
      %342 = vmatpush2.bf16.msra.mxu0 0
      %343 = vmatprep.subr.bf16.mxu0 0
      %344 = vmatpush2.bf16.msra.mxu0 0
      %345 = vmatprep.subr.bf16.mxu0 0
      %346 = vmatpush2.bf16.msra.mxu0 0
      %347 = vmatprep.mubr.bf16.mxu0 0
      %348 = vmatmul.mubr.bf16.gmra.mxu0 %v309
      %v349 = vpop.f32.mrf.mxu0
      %v350 = vadd.f32 0.0, %v349
      %v351 = vpop.f32.mrf.mxu0
      %v352 = vpop.f32.mrf.mxu0
      %v353 = vadd.f32 0.0, %v352
      %v354 = vpop.f32.mrf.mxu0
      %355 = vdwg.mxu0
      %356 = vrot.lane.b32.xlu0 %v222, 120
      %v357 = vpop.permute.xlu0 %356
      %358 = vrot.lane.b32.xlu0 %v227, 120
      %v359 = vpop.permute.xlu0 %358
      %v361 = vsel %vm228, %v357, 0
      %v364 = vsel %vm228, %v359, 0
      %366 = vmatprep.subr.bf16.mxu0 0
      %367 = vmatpush1.bf16.xpose.msra.mxu0 0
      %368 = vmatprep.subr.bf16.mxu0 0
      %369 = vmatpush1.bf16.xpose.msra.mxu0 0
      %370 = vmatprep.subr.bf16.mxu0 0
      %371 = vmatpush1.bf16.xpose.msra.mxu0 0
      %372 = vmatprep.subr.bf16.mxu0 0
      %373 = vmatpush1.bf16.xpose.msra.mxu0 0
      %374 = vmatprep.subr.bf16.mxu0 0
      %375 = vmatpush1.bf16.xpose.msra.mxu0 0
      %376 = vmatprep.subr.bf16.mxu0 0
      %377 = vmatpush1.bf16.xpose.msra.mxu0 0
      %378 = vmatprep.subr.bf16.mxu0 0
      %379 = vmatpush1.bf16.xpose.msra.mxu0 0
      %380 = vmatprep.subr.bf16.mxu0 0
      %381 = vmatpush1.bf16.xpose.msra.mxu0 %v364
      %382 = vmatprep.subr.bf16.mxu0 0
      %383 = vmatpush2.bf16.xpose.msra.mxu0 0
      %384 = vmatprep.subr.bf16.mxu0 0
      %385 = vmatpush2.bf16.xpose.msra.mxu0 0
      %386 = vmatprep.subr.bf16.mxu0 0
      %387 = vmatpush2.bf16.xpose.msra.mxu0 0
      %388 = vmatprep.subr.bf16.mxu0 0
      %389 = vmatpush2.bf16.xpose.msra.mxu0 0
      %390 = vmatprep.subr.bf16.mxu0 0
      %391 = vmatpush2.bf16.xpose.msra.mxu0 0
      %392 = vmatprep.subr.bf16.mxu0 0
      %393 = vmatpush2.bf16.xpose.msra.mxu0 0
      %394 = vmatprep.subr.bf16.mxu0 0
      %395 = vmatpush2.bf16.xpose.msra.mxu0 0
      %396 = vmatprep.subr.bf16.mxu0 0
      %397 = vmatpush2.bf16.xpose.msra.mxu0 0
      %398 = vmatprep.mubr.bf16.mxu0 0
      %399 = vmatmul.mubr.bf16.gmra.mxu0 %v361
      %v400 = vpop.f32.mrf.mxu0
      %v401 = vadd.f32 0.0, %v400
      %v402 = vpop.f32.mrf.mxu0
      %v403 = vpop.f32.mrf.mxu0
      %v404 = vadd.f32 0.0, %v403
      %v405 = vpop.f32.mrf.mxu0
      %406 = vdwg.mxu0
      %v407 = vmul.f32 %v401, 0.35355338
      %v408 = vmul.f32 %v404, 0.35355338
      %v409 = vsel %vm278, %v407, -inf
      %410 = vmax.xlane.f32.xlu0 %v409
      %v411 = vpop.xlane.xlu0 %410
      %v412 = vsel %vm282, %v408, -inf
      %413 = vmax.xlane.f32.xlu0 %v412
      %v414 = vpop.xlane.xlu0 %413
      %v415 = vsub.f32 %v407, %v411
      %v416 = vsub.f32 %v408, %v414
      %v417 = vmul.f32 %v415, 1.442695
      %v418 = vpow.pop %v417
      %v419 = vmul.f32 %v416, 1.442695
      %v420 = vpow.pop %v419
      %v421 = vsel %vm278, %v418, 0.0
      %422 = vadd.xlane.f32.xlu0 %v421
      %v423 = vpop.xlane.xlu0 %422
      %v424 = vsel %vm282, %v420, 0.0
      %425 = vadd.xlane.f32.xlu0 %v424
      %v426 = vpop.xlane.xlu0 %425
      %v427 = vrcp.pop %v423
      %v428 = vrcp.pop %v426
      %v429 = vmul.f32 %v418, %v427
      %v430 = vmul.f32 %v420, %v428
      %v431 = vpack.c.bf16 %v430, %v429
      %432 = vrot.lane.b32.xlu0 %v307, 120
      %v433 = vpop.permute.xlu0 %432
      %v435 = vsel %vm278, %v431, 0
      %v438 = vsel %vm311, %v433, 0
      %440 = vmatprep.subr.bf16.mxu0 0
      %441 = vmatpush1.bf16.msra.mxu0 0
      %442 = vmatprep.subr.bf16.mxu0 0
      %443 = vmatpush1.bf16.msra.mxu0 0
      %444 = vmatprep.subr.bf16.mxu0 0
      %445 = vmatpush1.bf16.msra.mxu0 0
      %446 = vmatprep.subr.bf16.mxu0 0
      %447 = vmatpush1.bf16.msra.mxu0 0
      %448 = vmatprep.subr.bf16.mxu0 0
      %449 = vmatpush1.bf16.msra.mxu0 0
      %450 = vmatprep.subr.bf16.mxu0 0
      %451 = vmatpush1.bf16.msra.mxu0 0
      %452 = vmatprep.subr.bf16.mxu0 0
      %453 = vmatpush1.bf16.msra.mxu0 0
      %454 = vmatprep.subr.bf16.mxu0 0
      %455 = vmatpush1.bf16.msra.mxu0 %v438
      %456 = vmatprep.subr.bf16.mxu0 0
      %457 = vmatpush2.bf16.msra.mxu0 0
      %458 = vmatprep.subr.bf16.mxu0 0
      %459 = vmatpush2.bf16.msra.mxu0 0
      %460 = vmatprep.subr.bf16.mxu0 0
      %461 = vmatpush2.bf16.msra.mxu0 0
      %462 = vmatprep.subr.bf16.mxu0 0
      %463 = vmatpush2.bf16.msra.mxu0 0
      %464 = vmatprep.subr.bf16.mxu0 0
      %465 = vmatpush2.bf16.msra.mxu0 0
      %466 = vmatprep.subr.bf16.mxu0 0
      %467 = vmatpush2.bf16.msra.mxu0 0
      %468 = vmatprep.subr.bf16.mxu0 0
      %469 = vmatpush2.bf16.msra.mxu0 0
      %470 = vmatprep.subr.bf16.mxu0 0
      %471 = vmatpush2.bf16.msra.mxu0 0
      %472 = vmatprep.mubr.bf16.mxu0 0
      %473 = vmatmul.mubr.bf16.gmra.mxu0 %v435
      %v474 = vpop.f32.mrf.mxu0
      %v475 = vadd.f32 0.0, %v474
      %v476 = vpop.f32.mrf.mxu0
      %v477 = vpop.f32.mrf.mxu0
      %v478 = vadd.f32 0.0, %v477
      %v479 = vpop.f32.mrf.mxu0
      %480 = vdwg.mxu0
      %481 = vrot.lane.b32.xlu0 %v222, 112
      %v482 = vpop.permute.xlu0 %481
      %483 = vrot.lane.b32.xlu0 %v227, 112
      %v484 = vpop.permute.xlu0 %483
      %v486 = vsel %vm228, %v482, 0
      %v489 = vsel %vm228, %v484, 0
      %491 = vmatprep.subr.bf16.mxu0 0
      %492 = vmatpush1.bf16.xpose.msra.mxu0 0
      %493 = vmatprep.subr.bf16.mxu0 0
      %494 = vmatpush1.bf16.xpose.msra.mxu0 0
      %495 = vmatprep.subr.bf16.mxu0 0
      %496 = vmatpush1.bf16.xpose.msra.mxu0 0
      %497 = vmatprep.subr.bf16.mxu0 0
      %498 = vmatpush1.bf16.xpose.msra.mxu0 0
      %499 = vmatprep.subr.bf16.mxu0 0
      %500 = vmatpush1.bf16.xpose.msra.mxu0 0
      %501 = vmatprep.subr.bf16.mxu0 0
      %502 = vmatpush1.bf16.xpose.msra.mxu0 0
      %503 = vmatprep.subr.bf16.mxu0 0
      %504 = vmatpush1.bf16.xpose.msra.mxu0 0
      %505 = vmatprep.subr.bf16.mxu0 0
      %506 = vmatpush1.bf16.xpose.msra.mxu0 %v489
      %507 = vmatprep.subr.bf16.mxu0 0
      %508 = vmatpush2.bf16.xpose.msra.mxu0 0
      %509 = vmatprep.subr.bf16.mxu0 0
      %510 = vmatpush2.bf16.xpose.msra.mxu0 0
      %511 = vmatprep.subr.bf16.mxu0 0
      %512 = vmatpush2.bf16.xpose.msra.mxu0 0
      %513 = vmatprep.subr.bf16.mxu0 0
      %514 = vmatpush2.bf16.xpose.msra.mxu0 0
      %515 = vmatprep.subr.bf16.mxu0 0
      %516 = vmatpush2.bf16.xpose.msra.mxu0 0
      %517 = vmatprep.subr.bf16.mxu0 0
      %518 = vmatpush2.bf16.xpose.msra.mxu0 0
      %519 = vmatprep.subr.bf16.mxu0 0
      %520 = vmatpush2.bf16.xpose.msra.mxu0 0
      %521 = vmatprep.subr.bf16.mxu0 0
      %522 = vmatpush2.bf16.xpose.msra.mxu0 0
      %523 = vmatprep.mubr.bf16.mxu0 0
      %524 = vmatmul.mubr.bf16.gmra.mxu0 %v486
      %v525 = vpop.f32.mrf.mxu0
      %v526 = vadd.f32 0.0, %v525
      %v527 = vpop.f32.mrf.mxu0
      %v528 = vpop.f32.mrf.mxu0
      %v529 = vadd.f32 0.0, %v528
      %v530 = vpop.f32.mrf.mxu0
      %531 = vdwg.mxu0
      %v532 = vmul.f32 %v526, 0.35355338
      %v533 = vmul.f32 %v529, 0.35355338
      %v534 = vsel %vm278, %v532, -inf
      %535 = vmax.xlane.f32.xlu0 %v534
      %v536 = vpop.xlane.xlu0 %535
      %v537 = vsel %vm282, %v533, -inf
      %538 = vmax.xlane.f32.xlu0 %v537
      %v539 = vpop.xlane.xlu0 %538
      %v540 = vsub.f32 %v532, %v536
      %v541 = vsub.f32 %v533, %v539
      %v542 = vmul.f32 %v540, 1.442695
      %v543 = vpow.pop %v542
      %v544 = vmul.f32 %v541, 1.442695
      %v545 = vpow.pop %v544
      %v546 = vsel %vm278, %v543, 0.0
      %547 = vadd.xlane.f32.xlu0 %v546
      %v548 = vpop.xlane.xlu0 %547
      %v549 = vsel %vm282, %v545, 0.0
      %550 = vadd.xlane.f32.xlu0 %v549
      %v551 = vpop.xlane.xlu0 %550
      %v552 = vrcp.pop %v548
      %v553 = vrcp.pop %v551
      %v554 = vmul.f32 %v543, %v552
      %v555 = vmul.f32 %v545, %v553
      %v556 = vpack.c.bf16 %v555, %v554
      %557 = vrot.lane.b32.xlu0 %v307, 112
      %v558 = vpop.permute.xlu0 %557
      %v560 = vsel %vm278, %v556, 0
      %v563 = vsel %vm311, %v558, 0
      %565 = vmatprep.subr.bf16.mxu0 0
      %566 = vmatpush1.bf16.msra.mxu0 0
      %567 = vmatprep.subr.bf16.mxu0 0
      %568 = vmatpush1.bf16.msra.mxu0 0
      %569 = vmatprep.subr.bf16.mxu0 0
      %570 = vmatpush1.bf16.msra.mxu0 0
      %571 = vmatprep.subr.bf16.mxu0 0
      %572 = vmatpush1.bf16.msra.mxu0 0
      %573 = vmatprep.subr.bf16.mxu0 0
      %574 = vmatpush1.bf16.msra.mxu0 0
      %575 = vmatprep.subr.bf16.mxu0 0
      %576 = vmatpush1.bf16.msra.mxu0 0
      %577 = vmatprep.subr.bf16.mxu0 0
      %578 = vmatpush1.bf16.msra.mxu0 0
      %579 = vmatprep.subr.bf16.mxu0 0
      %580 = vmatpush1.bf16.msra.mxu0 %v563
      %581 = vmatprep.subr.bf16.mxu0 0
      %582 = vmatpush2.bf16.msra.mxu0 0
      %583 = vmatprep.subr.bf16.mxu0 0
      %584 = vmatpush2.bf16.msra.mxu0 0
      %585 = vmatprep.subr.bf16.mxu0 0
      %586 = vmatpush2.bf16.msra.mxu0 0
      %587 = vmatprep.subr.bf16.mxu0 0
      %588 = vmatpush2.bf16.msra.mxu0 0
      %589 = vmatprep.subr.bf16.mxu0 0
      %590 = vmatpush2.bf16.msra.mxu0 0
      %591 = vmatprep.subr.bf16.mxu0 0
      %592 = vmatpush2.bf16.msra.mxu0 0
      %593 = vmatprep.subr.bf16.mxu0 0
      %594 = vmatpush2.bf16.msra.mxu0 0
      %595 = vmatprep.subr.bf16.mxu0 0
      %596 = vmatpush2.bf16.msra.mxu0 0
      %597 = vmatprep.mubr.bf16.mxu0 0
      %598 = vmatmul.mubr.bf16.gmra.mxu0 %v560
      %v599 = vpop.f32.mrf.mxu0
      %v600 = vadd.f32 0.0, %v599
      %v601 = vpop.f32.mrf.mxu0
      %v602 = vpop.f32.mrf.mxu0
      %v603 = vadd.f32 0.0, %v602
      %v604 = vpop.f32.mrf.mxu0
      %605 = vdwg.mxu0
      %606 = vrot.lane.b32.xlu0 %v222, 104
      %v607 = vpop.permute.xlu0 %606
      %608 = vrot.lane.b32.xlu0 %v227, 104
      %v609 = vpop.permute.xlu0 %608
      %v611 = vsel %vm228, %v607, 0
      %v614 = vsel %vm228, %v609, 0
      %616 = vmatprep.subr.bf16.mxu0 0
      %617 = vmatpush1.bf16.xpose.msra.mxu0 0
      %618 = vmatprep.subr.bf16.mxu0 0
      %619 = vmatpush1.bf16.xpose.msra.mxu0 0
      %620 = vmatprep.subr.bf16.mxu0 0
      %621 = vmatpush1.bf16.xpose.msra.mxu0 0
      %622 = vmatprep.subr.bf16.mxu0 0
      %623 = vmatpush1.bf16.xpose.msra.mxu0 0
      %624 = vmatprep.subr.bf16.mxu0 0
      %625 = vmatpush1.bf16.xpose.msra.mxu0 0
      %626 = vmatprep.subr.bf16.mxu0 0
      %627 = vmatpush1.bf16.xpose.msra.mxu0 0
      %628 = vmatprep.subr.bf16.mxu0 0
      %629 = vmatpush1.bf16.xpose.msra.mxu0 0
      %630 = vmatprep.subr.bf16.mxu0 0
      %631 = vmatpush1.bf16.xpose.msra.mxu0 %v614
      %632 = vmatprep.subr.bf16.mxu0 0
      %633 = vmatpush2.bf16.xpose.msra.mxu0 0
      %634 = vmatprep.subr.bf16.mxu0 0
      %635 = vmatpush2.bf16.xpose.msra.mxu0 0
      %636 = vmatprep.subr.bf16.mxu0 0
      %637 = vmatpush2.bf16.xpose.msra.mxu0 0
      %638 = vmatprep.subr.bf16.mxu0 0
      %639 = vmatpush2.bf16.xpose.msra.mxu0 0
      %640 = vmatprep.subr.bf16.mxu0 0
      %641 = vmatpush2.bf16.xpose.msra.mxu0 0
      %642 = vmatprep.subr.bf16.mxu0 0
      %643 = vmatpush2.bf16.xpose.msra.mxu0 0
      %644 = vmatprep.subr.bf16.mxu0 0
      %645 = vmatpush2.bf16.xpose.msra.mxu0 0
      %646 = vmatprep.subr.bf16.mxu0 0
      %647 = vmatpush2.bf16.xpose.msra.mxu0 0
      %648 = vmatprep.mubr.bf16.mxu0 0
      %649 = vmatmul.mubr.bf16.gmra.mxu0 %v611
      %v650 = vpop.f32.mrf.mxu0
      %v651 = vadd.f32 0.0, %v650
      %v652 = vpop.f32.mrf.mxu0
      %v653 = vpop.f32.mrf.mxu0
      %v654 = vadd.f32 0.0, %v653
      %v655 = vpop.f32.mrf.mxu0
      %656 = vdwg.mxu0
      %v657 = vmul.f32 %v651, 0.35355338
      %v658 = vmul.f32 %v654, 0.35355338
      %v659 = vsel %vm278, %v657, -inf
      %660 = vmax.xlane.f32.xlu0 %v659
      %v661 = vpop.xlane.xlu0 %660
      %v662 = vsel %vm282, %v658, -inf
      %663 = vmax.xlane.f32.xlu0 %v662
      %v664 = vpop.xlane.xlu0 %663
      %v665 = vsub.f32 %v657, %v661
      %v666 = vsub.f32 %v658, %v664
      %v667 = vmul.f32 %v665, 1.442695
      %v668 = vpow.pop %v667
      %v669 = vmul.f32 %v666, 1.442695
      %v670 = vpow.pop %v669
      %v671 = vsel %vm278, %v668, 0.0
      %672 = vadd.xlane.f32.xlu0 %v671
      %v673 = vpop.xlane.xlu0 %672
      %v674 = vsel %vm282, %v670, 0.0
      %675 = vadd.xlane.f32.xlu0 %v674
      %v676 = vpop.xlane.xlu0 %675
      %v677 = vrcp.pop %v673
      %v678 = vrcp.pop %v676
      %v679 = vmul.f32 %v668, %v677
      %v680 = vmul.f32 %v670, %v678
      %v681 = vpack.c.bf16 %v680, %v679
      %682 = vrot.lane.b32.xlu0 %v307, 104
      %v683 = vpop.permute.xlu0 %682
      %v685 = vsel %vm278, %v681, 0
      %v688 = vsel %vm311, %v683, 0
      %690 = vmatprep.subr.bf16.mxu0 0
      %691 = vmatpush1.bf16.msra.mxu0 0
      %692 = vmatprep.subr.bf16.mxu0 0
      %693 = vmatpush1.bf16.msra.mxu0 0
      %694 = vmatprep.subr.bf16.mxu0 0
      %695 = vmatpush1.bf16.msra.mxu0 0
      %696 = vmatprep.subr.bf16.mxu0 0
      %697 = vmatpush1.bf16.msra.mxu0 0
      %698 = vmatprep.subr.bf16.mxu0 0
      %699 = vmatpush1.bf16.msra.mxu0 0
      %700 = vmatprep.subr.bf16.mxu0 0
      %701 = vmatpush1.bf16.msra.mxu0 0
      %702 = vmatprep.subr.bf16.mxu0 0
      %703 = vmatpush1.bf16.msra.mxu0 0
      %704 = vmatprep.subr.bf16.mxu0 0
      %705 = vmatpush1.bf16.msra.mxu0 %v688
      %706 = vmatprep.subr.bf16.mxu0 0
      %707 = vmatpush2.bf16.msra.mxu0 0
      %708 = vmatprep.subr.bf16.mxu0 0
      %709 = vmatpush2.bf16.msra.mxu0 0
      %710 = vmatprep.subr.bf16.mxu0 0
      %711 = vmatpush2.bf16.msra.mxu0 0
      %712 = vmatprep.subr.bf16.mxu0 0
      %713 = vmatpush2.bf16.msra.mxu0 0
      %714 = vmatprep.subr.bf16.mxu0 0
      %715 = vmatpush2.bf16.msra.mxu0 0
      %716 = vmatprep.subr.bf16.mxu0 0
      %717 = vmatpush2.bf16.msra.mxu0 0
      %718 = vmatprep.subr.bf16.mxu0 0
      %719 = vmatpush2.bf16.msra.mxu0 0
      %720 = vmatprep.subr.bf16.mxu0 0
      %721 = vmatpush2.bf16.msra.mxu0 0
      %722 = vmatprep.mubr.bf16.mxu0 0
      %723 = vmatmul.mubr.bf16.gmra.mxu0 %v685
      %v724 = vpop.f32.mrf.mxu0
      %v725 = vadd.f32 0.0, %v724
      %v726 = vpop.f32.mrf.mxu0
      %v727 = vpop.f32.mrf.mxu0
      %v728 = vadd.f32 0.0, %v727
      %v729 = vpop.f32.mrf.mxu0
      %730 = vdwg.mxu0
      %733 = vrot.lane.b32.xlu0 %v475, 8
      %v734 = vpop.permute.xlu0 %733
      %735 = vrot.lane.b32.xlu0 %v478, 8
      %v736 = vpop.permute.xlu0 %735
      %741 = vrot.lane.b32.xlu0 %v600, 16
      %v742 = vpop.permute.xlu0 %741
      %743 = vrot.lane.b32.xlu0 %v603, 16
      %v744 = vpop.permute.xlu0 %743
      %749 = vrot.lane.b32.xlu0 %v725, 24
      %v750 = vpop.permute.xlu0 %749
      %751 = vrot.lane.b32.xlu0 %v728, 24
      %v752 = vpop.permute.xlu0 %751
      %v755 = vsel %vm228, %v350, %v734
      %v756 = vsel %vm228, %v353, %v736
      %vm757 = vcmask 130048
      %v758 = vsel %vm757, %v755, %v742
      %v759 = vsel %vm757, %v756, %v744
      %vm760 = vcmask 195584
      %v761 = vsel %vm760, %v758, %v750
      %v762 = vsel %vm760, %v759, %v752
      %v763 = vpack.c.bf16 %v762, %v761
      %v765 = vunpack.c.l.b16 %v763
      %v766 = vunpack.c.h.b16 %v763
      %v767 = vpack.c.b16 %v765, %v765
      %v768 = vpack.c.b16 %v766, %v766
      %vm771 = vcmask 257024
      %772 = vst.msk [vmem:[%s210] sm:$0xf] %vm771, %v767
      %vm773 = vcmask 253952
      %774 = vst.msk [vmem:[%s210 + $0x4] sm:$0x1] %vm773, %v768
      %p775 = scmp.lt.s32.totalorder %s14, 1
      %s776 = scalar_select %p775, %s14, 1
      %s777 = smul.addr %s776, 2
      %s778 = smul.addr %s777, 4
      %s779 = scalar_lea.vmem %s3, %s778
      // Predicated region
      $region33: #{_lambda_.40} parent=31 // pred_check
        %p780 = pneg %p110
      $region34: #{_lambda_.40} parent=31 // pred_check_branch
        %782 = sbr.rel (%p780) target = $region36
      $region35: #{_lambda_.40} parent=31 // pred_region
        _
      $region36: #{_lambda_.40} parent=31 // pred_fallthru
        _
    $region32: #{_lambda_.40} parent=5 // pred_fallthru
      _
    %p783 = scmp.le.s32.totalorder 2, %s9
    // Predicated region
    $region37: #{_lambda_.40} parent=5 // pred_check
      %p784 = pneg %p783
    $region38: #{_lambda_.40} parent=5 // pred_check_branch
      %786 = sbr.rel (%p784) target = $region40
    $region39: #{_lambda_.40} parent=5 // pred_region
      %s787 = ssub.s32 %s9, 2
      // Predicated region
      $region41: #{_lambda_.40} parent=39 // pred_check
        %p788 = pneg %p116
      $region42: #{_lambda_.40} parent=39 // pred_check_branch
        %790 = sbr.rel (%p788) target = $region44
      $region43: #{_lambda_.40} parent=39 // pred_region
        %p791 = scmp.lt.s32.totalorder %s15, 1
        %s792 = scalar_select %p791, %s15, 1
        %s793 = smul.addr %s792, 2
        %s794 = smul.addr %s793, 4
        %s795 = scalar_lea.vmem %s3, %s794
      $region44: #{_lambda_.40} parent=39 // pred_fallthru
        _
    $region40: #{_lambda_.40} parent=5 // pred_fallthru
      _
  $region6: #{_lambda_.40} parent=0 // loop_footer
    %s13 = sadd.s32 1, %s9
  $region7: #{_lambda_.40} parent=0 // loop_footer_branch
    %8 = sbr.rel target = $region3
  $region8: #{_lambda_.40} parent=0 // loop_exit
    _

// kernel: _lambda_.43
$region0: #{_lambda_.43}
  #allocation0 [shape = 'u32[]', space=smem, size = 0x4, offset = 0x4, fixed_abs, tag = 'smem constant byte address 0x4 - core index']
  #allocation1 [shape = 'u32[144,128]{1,0:T(1,128)}', space=vmem, size = 0x12000, scoped, tag = 'internal scratch']
  #allocation2 [shape = 'f32[20,64]{1,0:T(8,128)}', space=vmem, size = 0x3000, scoped, tag = 'scratch operand']
  %s0 = inlined_call_operand.vmem [shape: bf16[20,32], index: 0, kind: input, shape index: {}]
  %s1 = inlined_call_operand.vmem [shape: bf16[32,64], index: 1, kind: input, shape index: {}]
  %s2 = inlined_call_operand.vmem [shape: f32[1,64], index: 2, kind: input, shape index: {}]
  %s3 = inlined_call_operand.vmem [shape: bf16[20,64], index: 3, kind: output, shape index: {}]
  %s4 = sld [smem:[#allocation0]]
  $region30: #{_lambda_.43} parent=0
    _
  %s6 = ssub.s32 1, %s4
  %s7 = scalar_select 0, %s6, %s4
  // Predicated region
  $region2: #{_lambda_.43} parent=0 // pred_check
    _
  $region3: #{_lambda_.43} parent=0 // pred_check_branch
    %9 = sbr.rel (0) target = $region5
  $region4: #{_lambda_.43} parent=0 // pred_region
    _
  $region5: #{_lambda_.43} parent=0 // pred_fallthru
    _
  // Predicated region
  $region6: #{_lambda_.43} parent=0 // pred_check
    _
  $region7: #{_lambda_.43} parent=0 // pred_check_branch
    %11 = sbr.rel (0) target = $region9
  $region8: #{_lambda_.43} parent=0 // pred_region
    _
  $region9: #{_lambda_.43} parent=0 // pred_fallthru
    _
  // Predicated region
  $region10: #{_lambda_.43} parent=0 // pred_check
    _
  $region11: #{_lambda_.43} parent=0 // pred_check_branch
    %13 = sbr.rel (0) target = $region13
  $region12: #{_lambda_.43} parent=0 // pred_region
    _
  $region13: #{_lambda_.43} parent=0 // pred_fallthru
    _
  %p15 = scmp.eq.s32.totalorder 0, 0
  // Predicated region
  $region14: #{_lambda_.43} parent=0 // pred_check
    %p16 = pneg %p15
  $region15: #{_lambda_.43} parent=0 // pred_check_branch
    %18 = sbr.rel (%p16) target = $region17
  $region16: #{_lambda_.43} parent=0 // pred_region
    %vm19 = vcmask 523264
    %20 = vst.msk [vmem:[#allocation2] sm:$0xff] %vm19, 0.0
    %21 = vst.msk [vmem:[#allocation2 + $0x8] sm:$0xff] %vm19, 0.0
    %vm22 = vcmask 519168
    %23 = vst.msk [vmem:[#allocation2 + $0x10] sm:$0xf] %vm22, 0.0
  $region17: #{_lambda_.43} parent=0 // pred_fallthru
    _
  %v24 = vld [vmem:[#allocation2] sm:$0xff]
  %v25 = vld [vmem:[#allocation2 + $0x8] sm:$0xff]
  %v26 = vld [vmem:[#allocation2 + $0x10] sm:$0xf]
  %v27 = vld [vmem:[%s0] sm:$0xf]
  %v28 = vld [vmem:[%s0 + $0x4] sm:$0xf]
  %v29 = vld [vmem:[%s0 + $0x8] sm:$0x3]
  %v30 = vld [vmem:[%s1] sm:$0xf]
  %v31 = vld [vmem:[%s1 + $0x4] sm:$0xf]
  %v32 = vld [vmem:[%s1 + $0x8] sm:$0xf]
  %v33 = vld [vmem:[%s1 + $0xc] sm:$0xf]
  %v37 = vunpack.c.l.b16 %v27
  %v38 = vunpack.c.l.b16 %v28
  %v39 = vunpack.c.l.b16 %v29
  %v40 = vpack.c.b16 %v38, %v37
  %v41 = vpack.c.b16 %v39, %v39
  %v46 = vunpack.c.l.b16 %v30
  %v47 = vunpack.c.l.b16 %v31
  %v48 = vunpack.c.l.b16 %v32
  %v49 = vunpack.c.l.b16 %v33
  %v50 = vpack.c.b16 %v47, %v46
  %v51 = vpack.c.b16 %v49, %v48
  %vm54 = vcmask 261120
  %v56 = vsel %vm54, %v40, 0
  %v59 = vsel %vm54, %v41, 0
  %61 = vmatprep.subr.bf16.mxu0 0
  %62 = vmatpush1.bf16.msra.mxu0 0
  %63 = vmatprep.subr.bf16.mxu0 0
  %64 = vmatpush1.bf16.msra.mxu0 0
  %65 = vmatprep.subr.bf16.mxu0 0
  %66 = vmatpush1.bf16.msra.mxu0 0
  %67 = vmatprep.subr.bf16.mxu0 0
  %68 = vmatpush1.bf16.msra.mxu0 0
  %69 = vmatprep.subr.bf16.mxu0 0
  %70 = vmatpush1.bf16.msra.mxu0 0
  %71 = vmatprep.subr.bf16.mxu0 0
  %72 = vmatpush1.bf16.msra.mxu0 0
  %73 = vmatprep.subr.bf16.mxu0 0
  %74 = vmatpush1.bf16.msra.mxu0 %v51
  %75 = vmatprep.subr.bf16.mxu0 0
  %76 = vmatpush1.bf16.msra.mxu0 %v50
  %77 = vmatprep.subr.bf16.mxu0 0
  %78 = vmatpush2.bf16.msra.mxu0 0
  %79 = vmatprep.subr.bf16.mxu0 0
  %80 = vmatpush2.bf16.msra.mxu0 0
  %81 = vmatprep.subr.bf16.mxu0 0
  %82 = vmatpush2.bf16.msra.mxu0 0
  %83 = vmatprep.subr.bf16.mxu0 0
  %84 = vmatpush2.bf16.msra.mxu0 0
  %85 = vmatprep.subr.bf16.mxu0 0
  %86 = vmatpush2.bf16.msra.mxu0 0
  %87 = vmatprep.subr.bf16.mxu0 0
  %88 = vmatpush2.bf16.msra.mxu0 0
  %89 = vmatprep.subr.bf16.mxu0 0
  %90 = vmatpush2.bf16.msra.mxu0 0
  %91 = vmatprep.subr.bf16.mxu0 0
  %92 = vmatpush2.bf16.msra.mxu0 0
  %93 = vmatprep.mubr.bf16.mxu0 0
  %94 = vmatmul.mubr.bf16.gmra.mxu0 %v56
  %v95 = vpop.f32.mrf.mxu0
  %v96 = vadd.f32 0.0, %v95
  %v97 = vpop.f32.mrf.mxu0
  %v98 = vpop.f32.mrf.mxu0
  %v99 = vadd.f32 0.0, %v98
  %v100 = vpop.f32.mrf.mxu0
  %101 = vmatprep.mubr.bf16.mxu0 0
  %102 = vmatmul.mubr.bf16.gmra.mxu0 %v59
  %v103 = vpop.f32.mrf.mxu0
  %v104 = vadd.f32 0.0, %v103
  %v105 = vpop.f32.mrf.mxu0
  %v106 = vpop.f32.mrf.mxu0
  %v107 = vpop.f32.mrf.mxu0
  %108 = vdwg.mxu0
  %v109 = vadd.f32 %v24, %v96
  %v110 = vadd.f32 %v25, %v99
  %v111 = vadd.f32 %v26, %v104
  %vm112 = vcmask 523264
  %113 = vst.msk [vmem:[#allocation2] sm:$0xff] %vm112, %v109
  %114 = vst.msk [vmem:[#allocation2 + $0x8] sm:$0xff] %vm112, %v110
  %vm115 = vcmask 519168
  %116 = vst.msk [vmem:[#allocation2 + $0x10] sm:$0xf] %vm115, %v111
  // Predicated region
  $region18: #{_lambda_.43} parent=0 // pred_check
    %p117 = pneg %p15
  $region19: #{_lambda_.43} parent=0 // pred_check_branch
    %119 = sbr.rel (%p117) target = $region21
  $region20: #{_lambda_.43} parent=0 // pred_region
    %v120 = vld [vmem:[#allocation2] sm:$0xff]
    %v121 = vld [vmem:[#allocation2 + $0x8] sm:$0xff]
    %v122 = vld [vmem:[#allocation2 + $0x10] sm:$0xf]
    %v123 = vld [vmem:[%s2] sm:$0x1]
    %v125 = vlaneseq
    %v126 = vshrl.u32 %v125, 7
    %v127 = vsub.s32 0, %v126
    %v128 = vrot.slane %v123, %v127
    %v130 = vadd.f32 %v120, %v128
    %v131 = vadd.f32 %v121, %v128
    %v132 = vadd.f32 %v122, %v128
    %v133 = vmax.f32 %v130, 0.0
    %v134 = vmax.f32 %v131, 0.0
    %v135 = vmax.f32 %v132, 0.0
    %v136 = vpack.c.bf16 %v134, %v133
    %v137 = vpack.c.bf16 %v135, %v135
    %v140 = vunpack.c.l.b16 %v136
    %v141 = vunpack.c.h.b16 %v136
    %v142 = vunpack.c.l.b16 %v137
    %v143 = vpack.c.b16 %v140, %v140
    %v144 = vpack.c.b16 %v141, %v141
    %v145 = vpack.c.b16 %v142, %v142
    %149 = vst.msk [vmem:[%s3] sm:$0xf] %vm115, %v143
    %150 = vst.msk [vmem:[%s3 + $0x4] sm:$0xf] %vm115, %v144
    %vm151 = vcmask 517120
    %152 = vst.msk [vmem:[%s3 + $0x8] sm:$0x3] %vm151, %v145
  $region21: #{_lambda_.43} parent=0 // pred_fallthru
    _
  // Predicated region
  $region22: #{_lambda_.43} parent=0 // pred_check
    _
  $region23: #{_lambda_.43} parent=0 // pred_check_branch
    %154 = sbr.rel (0) target = $region25
  $region24: #{_lambda_.43} parent=0 // pred_region
    _
  $region25: #{_lambda_.43} parent=0 // pred_fallthru
    _
  // Predicated region
  $region26: #{_lambda_.43} parent=0 // pred_check
    _
  $region27: #{_lambda_.43} parent=0 // pred_check_branch
    %156 = sbr.rel (0) target = $region29
  $region28: #{_lambda_.43} parent=0 // pred_region
    _
  $region29: #{_lambda_.43} parent=0 // pred_fallthru
    _

// kernel: _lambda_.44
$region0: #{_lambda_.44}
  #allocation0 [shape = 'u32[]', space=smem, size = 0x4, offset = 0x4, fixed_abs, tag = 'smem constant byte address 0x4 - core index']
  #allocation1 [shape = 'u32[144,128]{1,0:T(1,128)}', space=vmem, size = 0x12000, scoped, tag = 'internal scratch']
  #allocation2 [shape = 'f32[20,32]{1,0:T(8,128)}', space=vmem, size = 0x3000, scoped, tag = 'scratch operand']
  %s0 = inlined_call_operand.vmem [shape: bf16[20,64], index: 0, kind: input, shape index: {}]
  %s1 = inlined_call_operand.vmem [shape: bf16[64,32], index: 1, kind: input, shape index: {}]
  %s2 = inlined_call_operand.vmem [shape: f32[1,32], index: 2, kind: input, shape index: {}]
  %s3 = inlined_call_operand.vmem [shape: f32[20,32], index: 3, kind: output, shape index: {}]
  %s4 = sld [smem:[#allocation0]]
  $region30: #{_lambda_.44} parent=0
    _
  %s6 = ssub.s32 1, %s4
  %s7 = scalar_select 0, %s6, %s4
  // Predicated region
  $region2: #{_lambda_.44} parent=0 // pred_check
    _
  $region3: #{_lambda_.44} parent=0 // pred_check_branch
    %9 = sbr.rel (0) target = $region5
  $region4: #{_lambda_.44} parent=0 // pred_region
    _
  $region5: #{_lambda_.44} parent=0 // pred_fallthru
    _
  // Predicated region
  $region6: #{_lambda_.44} parent=0 // pred_check
    _
  $region7: #{_lambda_.44} parent=0 // pred_check_branch
    %11 = sbr.rel (0) target = $region9
  $region8: #{_lambda_.44} parent=0 // pred_region
    _
  $region9: #{_lambda_.44} parent=0 // pred_fallthru
    _
  // Predicated region
  $region10: #{_lambda_.44} parent=0 // pred_check
    _
  $region11: #{_lambda_.44} parent=0 // pred_check_branch
    %13 = sbr.rel (0) target = $region13
  $region12: #{_lambda_.44} parent=0 // pred_region
    _
  $region13: #{_lambda_.44} parent=0 // pred_fallthru
    _
  %p15 = scmp.eq.s32.totalorder 0, 0
  // Predicated region
  $region14: #{_lambda_.44} parent=0 // pred_check
    %p16 = pneg %p15
  $region15: #{_lambda_.44} parent=0 // pred_check_branch
    %18 = sbr.rel (%p16) target = $region17
  $region16: #{_lambda_.44} parent=0 // pred_region
    %vm19 = vcmask 261120
    %20 = vst.msk [vmem:[#allocation2] sm:$0xff] %vm19, 0.0
    %21 = vst.msk [vmem:[#allocation2 + $0x8] sm:$0xff] %vm19, 0.0
    %vm22 = vcmask 257024
    %23 = vst.msk [vmem:[#allocation2 + $0x10] sm:$0xf] %vm22, 0.0
  $region17: #{_lambda_.44} parent=0 // pred_fallthru
    _
  %v24 = vld [vmem:[#allocation2] sm:$0xff]
  %v25 = vld [vmem:[#allocation2 + $0x8] sm:$0xff]
  %v26 = vld [vmem:[#allocation2 + $0x10] sm:$0xf]
  %v27 = vld [vmem:[%s0] sm:$0xf]
  %v28 = vld [vmem:[%s0 + $0x4] sm:$0xf]
  %v29 = vld [vmem:[%s0 + $0x8] sm:$0x3]
  %v30 = vld [vmem:[%s1] sm:$0xf]
  %v31 = vld [vmem:[%s1 + $0x4] sm:$0xf]
  %v32 = vld [vmem:[%s1 + $0x8] sm:$0xf]
  %v33 = vld [vmem:[%s1 + $0xc] sm:$0xf]
  %v34 = vld [vmem:[%s1 + $0x10] sm:$0xf]
  %v35 = vld [vmem:[%s1 + $0x14] sm:$0xf]
  %v36 = vld [vmem:[%s1 + $0x18] sm:$0xf]
  %v37 = vld [vmem:[%s1 + $0x1c] sm:$0xf]
  %v41 = vunpack.c.l.b16 %v27
  %v42 = vunpack.c.l.b16 %v28
  %v43 = vunpack.c.l.b16 %v29
  %v44 = vpack.c.b16 %v42, %v41
  %v45 = vpack.c.b16 %v43, %v43
  %v54 = vunpack.c.l.b16 %v30
  %v55 = vunpack.c.l.b16 %v31
  %v56 = vunpack.c.l.b16 %v32
  %v57 = vunpack.c.l.b16 %v33
  %v58 = vunpack.c.l.b16 %v34
  %v59 = vunpack.c.l.b16 %v35
  %v60 = vunpack.c.l.b16 %v36
  %v61 = vunpack.c.l.b16 %v37
  %v62 = vpack.c.b16 %v55, %v54
  %v63 = vpack.c.b16 %v57, %v56
  %v64 = vpack.c.b16 %v59, %v58
  %v65 = vpack.c.b16 %v61, %v60
  %vm70 = vcmask 523264
  %v72 = vsel %vm70, %v44, 0
  %v75 = vsel %vm70, %v45, 0
  %77 = vmatprep.subr.bf16.mxu0 0
  %78 = vmatpush1.bf16.msra.mxu0 0
  %79 = vmatprep.subr.bf16.mxu0 0
  %80 = vmatpush1.bf16.msra.mxu0 0
  %81 = vmatprep.subr.bf16.mxu0 0
  %82 = vmatpush1.bf16.msra.mxu0 0
  %83 = vmatprep.subr.bf16.mxu0 0
  %84 = vmatpush1.bf16.msra.mxu0 0
  %85 = vmatprep.subr.bf16.mxu0 0
  %86 = vmatpush1.bf16.msra.mxu0 %v65
  %87 = vmatprep.subr.bf16.mxu0 0
  %88 = vmatpush1.bf16.msra.mxu0 %v64
  %89 = vmatprep.subr.bf16.mxu0 0
  %90 = vmatpush1.bf16.msra.mxu0 %v63
  %91 = vmatprep.subr.bf16.mxu0 0
  %92 = vmatpush1.bf16.msra.mxu0 %v62
  %93 = vmatprep.subr.bf16.mxu0 0
  %94 = vmatpush2.bf16.msra.mxu0 0
  %95 = vmatprep.subr.bf16.mxu0 0
  %96 = vmatpush2.bf16.msra.mxu0 0
  %97 = vmatprep.subr.bf16.mxu0 0
  %98 = vmatpush2.bf16.msra.mxu0 0
  %99 = vmatprep.subr.bf16.mxu0 0
  %100 = vmatpush2.bf16.msra.mxu0 0
  %101 = vmatprep.subr.bf16.mxu0 0
  %102 = vmatpush2.bf16.msra.mxu0 0
  %103 = vmatprep.subr.bf16.mxu0 0
  %104 = vmatpush2.bf16.msra.mxu0 0
  %105 = vmatprep.subr.bf16.mxu0 0
  %106 = vmatpush2.bf16.msra.mxu0 0
  %107 = vmatprep.subr.bf16.mxu0 0
  %108 = vmatpush2.bf16.msra.mxu0 0
  %109 = vmatprep.mubr.bf16.mxu0 0
  %110 = vmatmul.mubr.bf16.gmra.mxu0 %v72
  %v111 = vpop.f32.mrf.mxu0
  %v112 = vadd.f32 0.0, %v111
  %v113 = vpop.f32.mrf.mxu0
  %v114 = vpop.f32.mrf.mxu0
  %v115 = vadd.f32 0.0, %v114
  %v116 = vpop.f32.mrf.mxu0
  %117 = vmatprep.mubr.bf16.mxu0 0
  %118 = vmatmul.mubr.bf16.gmra.mxu0 %v75
  %v119 = vpop.f32.mrf.mxu0
  %v120 = vadd.f32 0.0, %v119
  %v121 = vpop.f32.mrf.mxu0
  %v122 = vpop.f32.mrf.mxu0
  %v123 = vpop.f32.mrf.mxu0
  %124 = vdwg.mxu0
  %v125 = vadd.f32 %v24, %v112
  %v126 = vadd.f32 %v25, %v115
  %v127 = vadd.f32 %v26, %v120
  %vm128 = vcmask 261120
  %129 = vst.msk [vmem:[#allocation2] sm:$0xff] %vm128, %v125
  %130 = vst.msk [vmem:[#allocation2 + $0x8] sm:$0xff] %vm128, %v126
  %vm131 = vcmask 257024
  %132 = vst.msk [vmem:[#allocation2 + $0x10] sm:$0xf] %vm131, %v127
  // Predicated region
  $region18: #{_lambda_.44} parent=0 // pred_check
    %p133 = pneg %p15
  $region19: #{_lambda_.44} parent=0 // pred_check_branch
    %135 = sbr.rel (%p133) target = $region21
  $region20: #{_lambda_.44} parent=0 // pred_region
    %v136 = vld [vmem:[#allocation2] sm:$0xff]
    %v137 = vld [vmem:[#allocation2 + $0x8] sm:$0xff]
    %v138 = vld [vmem:[#allocation2 + $0x10] sm:$0xf]
    %v139 = vld [vmem:[%s2] sm:$0x1]
    %v141 = vlaneseq
    %v142 = vshrl.u32 %v141, 7
    %v143 = vsub.s32 0, %v142
    %v144 = vrot.slane %v139, %v143
    %v146 = vadd.f32 %v136, %v144
    %v147 = vadd.f32 %v137, %v144
    %v148 = vadd.f32 %v138, %v144
    %149 = vst.msk [vmem:[%s3] sm:$0xff] %vm128, %v146
    %150 = vst.msk [vmem:[%s3 + $0x8] sm:$0xff] %vm128, %v147
    %151 = vst.msk [vmem:[%s3 + $0x10] sm:$0xf] %vm131, %v148
  $region21: #{_lambda_.44} parent=0 // pred_fallthru
    _
  // Predicated region
  $region22: #{_lambda_.44} parent=0 // pred_check
    _
  $region23: #{_lambda_.44} parent=0 // pred_check_branch
    %153 = sbr.rel (0) target = $region25
  $region24: #{_lambda_.44} parent=0 // pred_region
    _
  $region25: #{_lambda_.44} parent=0 // pred_fallthru
    _
  // Predicated region
  $region26: #{_lambda_.44} parent=0 // pred_check
    _
  $region27: #{_lambda_.44} parent=0 // pred_check_branch
    %155 = sbr.rel (0) target = $region29
  $region28: #{_lambda_.44} parent=0 // pred_region
    _
  $region29: #{_lambda_.44} parent=0 // pred_fallthru
    _

// kernel: _lambda_.58
$region0: #{_lambda_.58}
  #allocation0 [shape = 'u32[]', space=smem, size = 0x4, offset = 0x4, fixed_abs, tag = 'smem constant byte address 0x4 - core index']
  #allocation1 [shape = 'u32[144,128]{1,0:T(1,128)}', space=vmem, size = 0x12000, scoped, tag = 'internal scratch']
  #allocation2 [shape = 'f32[20,64]{1,0:T(8,128)}', space=vmem, size = 0x3000, scoped, tag = 'scratch operand']
  %s0 = inlined_call_operand.vmem [shape: bf16[20,32], index: 0, kind: input, shape index: {}]
  %s1 = inlined_call_operand.vmem [shape: bf16[32,64], index: 1, kind: input, shape index: {}]
  %s2 = inlined_call_operand.vmem [shape: f32[1,64], index: 2, kind: input, shape index: {}]
  %s3 = inlined_call_operand.vmem [shape: bf16[20,64], index: 3, kind: output, shape index: {}]
  %s4 = sld [smem:[#allocation0]]
  $region30: #{_lambda_.58} parent=0
    _
  %s6 = ssub.s32 1, %s4
  %s7 = scalar_select 0, %s6, %s4
  // Predicated region
  $region2: #{_lambda_.58} parent=0 // pred_check
    _
  $region3: #{_lambda_.58} parent=0 // pred_check_branch
    %9 = sbr.rel (0) target = $region5
  $region4: #{_lambda_.58} parent=0 // pred_region
    _
  $region5: #{_lambda_.58} parent=0 // pred_fallthru
    _
  // Predicated region
  $region6: #{_lambda_.58} parent=0 // pred_check
    _
  $region7: #{_lambda_.58} parent=0 // pred_check_branch
    %11 = sbr.rel (0) target = $region9
  $region8: #{_lambda_.58} parent=0 // pred_region
    _
  $region9: #{_lambda_.58} parent=0 // pred_fallthru
    _
  // Predicated region
  $region10: #{_lambda_.58} parent=0 // pred_check
    _
  $region11: #{_lambda_.58} parent=0 // pred_check_branch
    %13 = sbr.rel (0) target = $region13
  $region12: #{_lambda_.58} parent=0 // pred_region
    _
  $region13: #{_lambda_.58} parent=0 // pred_fallthru
    _
  %p15 = scmp.eq.s32.totalorder 0, 0
  // Predicated region
  $region14: #{_lambda_.58} parent=0 // pred_check
    %p16 = pneg %p15
  $region15: #{_lambda_.58} parent=0 // pred_check_branch
    %18 = sbr.rel (%p16) target = $region17
  $region16: #{_lambda_.58} parent=0 // pred_region
    %vm19 = vcmask 523264
    %20 = vst.msk [vmem:[#allocation2] sm:$0xff] %vm19, 0.0
    %21 = vst.msk [vmem:[#allocation2 + $0x8] sm:$0xff] %vm19, 0.0
    %vm22 = vcmask 519168
    %23 = vst.msk [vmem:[#allocation2 + $0x10] sm:$0xf] %vm22, 0.0
  $region17: #{_lambda_.58} parent=0 // pred_fallthru
    _
  %v24 = vld [vmem:[#allocation2] sm:$0xff]
  %v25 = vld [vmem:[#allocation2 + $0x8] sm:$0xff]
  %v26 = vld [vmem:[#allocation2 + $0x10] sm:$0xf]
  %v27 = vld [vmem:[%s0] sm:$0xf]
  %v28 = vld [vmem:[%s0 + $0x4] sm:$0xf]
  %v29 = vld [vmem:[%s0 + $0x8] sm:$0x3]
  %v30 = vld [vmem:[%s1] sm:$0xf]
  %v31 = vld [vmem:[%s1 + $0x4] sm:$0xf]
  %v32 = vld [vmem:[%s1 + $0x8] sm:$0xf]
  %v33 = vld [vmem:[%s1 + $0xc] sm:$0xf]
  %v37 = vunpack.c.l.b16 %v27
  %v38 = vunpack.c.l.b16 %v28
  %v39 = vunpack.c.l.b16 %v29
  %v40 = vpack.c.b16 %v38, %v37
  %v41 = vpack.c.b16 %v39, %v39
  %v46 = vunpack.c.l.b16 %v30
  %v47 = vunpack.c.l.b16 %v31
  %v48 = vunpack.c.l.b16 %v32
  %v49 = vunpack.c.l.b16 %v33
  %v50 = vpack.c.b16 %v47, %v46
  %v51 = vpack.c.b16 %v49, %v48
  %vm54 = vcmask 261120
  %v56 = vsel %vm54, %v40, 0
  %v59 = vsel %vm54, %v41, 0
  %61 = vmatprep.subr.bf16.mxu0 0
  %62 = vmatpush1.bf16.msra.mxu0 0
  %63 = vmatprep.subr.bf16.mxu0 0
  %64 = vmatpush1.bf16.msra.mxu0 0
  %65 = vmatprep.subr.bf16.mxu0 0
  %66 = vmatpush1.bf16.msra.mxu0 0
  %67 = vmatprep.subr.bf16.mxu0 0
  %68 = vmatpush1.bf16.msra.mxu0 0
  %69 = vmatprep.subr.bf16.mxu0 0
  %70 = vmatpush1.bf16.msra.mxu0 0
  %71 = vmatprep.subr.bf16.mxu0 0
  %72 = vmatpush1.bf16.msra.mxu0 0
  %73 = vmatprep.subr.bf16.mxu0 0
  %74 = vmatpush1.bf16.msra.mxu0 %v51
  %75 = vmatprep.subr.bf16.mxu0 0
  %76 = vmatpush1.bf16.msra.mxu0 %v50
  %77 = vmatprep.subr.bf16.mxu0 0
  %78 = vmatpush2.bf16.msra.mxu0 0
  %79 = vmatprep.subr.bf16.mxu0 0
  %80 = vmatpush2.bf16.msra.mxu0 0
  %81 = vmatprep.subr.bf16.mxu0 0
  %82 = vmatpush2.bf16.msra.mxu0 0
  %83 = vmatprep.subr.bf16.mxu0 0
  %84 = vmatpush2.bf16.msra.mxu0 0
  %85 = vmatprep.subr.bf16.mxu0 0
  %86 = vmatpush2.bf16.msra.mxu0 0
  %87 = vmatprep.subr.bf16.mxu0 0
  %88 = vmatpush2.bf16.msra.mxu0 0
  %89 = vmatprep.subr.bf16.mxu0 0
  %90 = vmatpush2.bf16.msra.mxu0 0
  %91 = vmatprep.subr.bf16.mxu0 0
  %92 = vmatpush2.bf16.msra.mxu0 0
  %93 = vmatprep.mubr.bf16.mxu0 0
  %94 = vmatmul.mubr.bf16.gmra.mxu0 %v56
  %v95 = vpop.f32.mrf.mxu0
  %v96 = vadd.f32 0.0, %v95
  %v97 = vpop.f32.mrf.mxu0
  %v98 = vpop.f32.mrf.mxu0
  %v99 = vadd.f32 0.0, %v98
  %v100 = vpop.f32.mrf.mxu0
  %101 = vmatprep.mubr.bf16.mxu0 0
  %102 = vmatmul.mubr.bf16.gmra.mxu0 %v59
  %v103 = vpop.f32.mrf.mxu0
  %v104 = vadd.f32 0.0, %v103
  %v105 = vpop.f32.mrf.mxu0
  %v106 = vpop.f32.mrf.mxu0
  %v107 = vpop.f32.mrf.mxu0
  %108 = vdwg.mxu0
  %v109 = vadd.f32 %v24, %v96
  %v110 = vadd.f32 %v25, %v99
  %v111 = vadd.f32 %v26, %v104
  %vm112 = vcmask 523264
  %113 = vst.msk [vmem:[#allocation2] sm:$0xff] %vm112, %v109
  %114 = vst.msk [vmem:[#allocation2 + $0x8] sm:$0xff] %vm112, %v110
  %vm115 = vcmask 519168
  %116 = vst.msk [vmem:[#allocation2 + $0x10] sm:$0xf] %vm115, %v111
  // Predicated region
  $region18: #{_lambda_.58} parent=0 // pred_check
    %p117 = pneg %p15
  $region19: #{_lambda_.58} parent=0 // pred_check_branch
    %119 = sbr.rel (%p117) target = $region21
  $region20: #{_lambda_.58} parent=0 // pred_region
    %v120 = vld [vmem:[#allocation2] sm:$0xff]
    %v121 = vld [vmem:[#allocation2 + $0x8] sm:$0xff]
    %v122 = vld [vmem:[#allocation2 + $0x10] sm:$0xf]
    %v123 = vld [vmem:[%s2] sm:$0x1]
    %v125 = vlaneseq
    %v126 = vshrl.u32 %v125, 7
    %v127 = vsub.s32 0, %v126
    %v128 = vrot.slane %v123, %v127
    %v130 = vadd.f32 %v120, %v128
    %v131 = vadd.f32 %v121, %v128
    %v132 = vadd.f32 %v122, %v128
    %v133 = vpack.c.bf16 %v131, %v130
    %v134 = vpack.c.bf16 %v132, %v132
    %v137 = vunpack.c.l.b16 %v133
    %v138 = vunpack.c.h.b16 %v133
    %v139 = vunpack.c.l.b16 %v134
    %v140 = vpack.c.b16 %v137, %v137
    %v141 = vpack.c.b16 %v138, %v138
    %v142 = vpack.c.b16 %v139, %v139
    %146 = vst.msk [vmem:[%s3] sm:$0xf] %vm115, %v140
    %147 = vst.msk [vmem:[%s3 + $0x4] sm:$0xf] %vm115, %v141
    %vm148 = vcmask 517120
    %149 = vst.msk [vmem:[%s3 + $0x8] sm:$0x3] %vm148, %v142
  $region21: #{_lambda_.58} parent=0 // pred_fallthru
    _
  // Predicated region
  $region22: #{_lambda_.58} parent=0 // pred_check
    _
  $region23: #{_lambda_.58} parent=0 // pred_check_branch
    %151 = sbr.rel (0) target = $region25
  $region24: #{_lambda_.58} parent=0 // pred_region
    _
  $region25: #{_lambda_.58} parent=0 // pred_fallthru
    _
  // Predicated region
  $region26: #{_lambda_.58} parent=0 // pred_check
    _
  $region27: #{_lambda_.58} parent=0 // pred_check_branch
    %153 = sbr.rel (0) target = $region29
  $region28: #{_lambda_.58} parent=0 // pred_region
    _
  $region29: #{_lambda_.58} parent=0 // pred_fallthru
    _

// kernel: _lambda_.63
$region0: #{_lambda_.63}
  #allocation0 [shape = 'u32[]', space=smem, size = 0x4, offset = 0x4, fixed_abs, tag = 'smem constant byte address 0x4 - core index']
  #allocation1 [shape = 'u32[144,128]{1,0:T(1,128)}', space=vmem, size = 0x12000, scoped, tag = 'internal scratch']
  #allocation2 [shape = 'f32[16,32]{1,0:T(8,128)}', space=vmem, size = 0x2000, scoped, tag = 'scratch operand']
  %s0 = inlined_call_operand.vmem [shape: bf16[16,64], index: 0, kind: input, shape index: {}]
  %s1 = inlined_call_operand.vmem [shape: bf16[64,32], index: 1, kind: input, shape index: {}]
  %s2 = inlined_call_operand.vmem [shape: f32[1,32], index: 2, kind: input, shape index: {}]
  %s3 = inlined_call_operand.vmem [shape: f32[16,32], index: 3, kind: output, shape index: {}]
  %s4 = sld [smem:[#allocation0]]
  $region30: #{_lambda_.63} parent=0
    _
  %s6 = ssub.s32 1, %s4
  %s7 = scalar_select 0, %s6, %s4
  // Predicated region
  $region2: #{_lambda_.63} parent=0 // pred_check
    _
  $region3: #{_lambda_.63} parent=0 // pred_check_branch
    %9 = sbr.rel (0) target = $region5
  $region4: #{_lambda_.63} parent=0 // pred_region
    _
  $region5: #{_lambda_.63} parent=0 // pred_fallthru
    _
  // Predicated region
  $region6: #{_lambda_.63} parent=0 // pred_check
    _
  $region7: #{_lambda_.63} parent=0 // pred_check_branch
    %11 = sbr.rel (0) target = $region9
  $region8: #{_lambda_.63} parent=0 // pred_region
    _
  $region9: #{_lambda_.63} parent=0 // pred_fallthru
    _
  // Predicated region
  $region10: #{_lambda_.63} parent=0 // pred_check
    _
  $region11: #{_lambda_.63} parent=0 // pred_check_branch
    %13 = sbr.rel (0) target = $region13
  $region12: #{_lambda_.63} parent=0 // pred_region
    _
  $region13: #{_lambda_.63} parent=0 // pred_fallthru
    _
  %p15 = scmp.eq.s32.totalorder 0, 0
  // Predicated region
  $region14: #{_lambda_.63} parent=0 // pred_check
    %p16 = pneg %p15
  $region15: #{_lambda_.63} parent=0 // pred_check_branch
    %18 = sbr.rel (%p16) target = $region17
  $region16: #{_lambda_.63} parent=0 // pred_region
    %vm19 = vcmask 261120
    %20 = vst.msk [vmem:[#allocation2] sm:$0xff] %vm19, 0.0
    %21 = vst.msk [vmem:[#allocation2 + $0x8] sm:$0xff] %vm19, 0.0
  $region17: #{_lambda_.63} parent=0 // pred_fallthru
    _
  %v22 = vld [vmem:[#allocation2] sm:$0xff]
  %v23 = vld [vmem:[#allocation2 + $0x8] sm:$0xff]
  %v24 = vld [vmem:[%s0] sm:$0xf]
  %v25 = vld [vmem:[%s0 + $0x4] sm:$0xf]
  %v26 = vld [vmem:[%s1] sm:$0xf]
  %v27 = vld [vmem:[%s1 + $0x4] sm:$0xf]
  %v28 = vld [vmem:[%s1 + $0x8] sm:$0xf]
  %v29 = vld [vmem:[%s1 + $0xc] sm:$0xf]
  %v30 = vld [vmem:[%s1 + $0x10] sm:$0xf]
  %v31 = vld [vmem:[%s1 + $0x14] sm:$0xf]
  %v32 = vld [vmem:[%s1 + $0x18] sm:$0xf]
  %v33 = vld [vmem:[%s1 + $0x1c] sm:$0xf]
  %v36 = vunpack.c.l.b16 %v24
  %v37 = vunpack.c.l.b16 %v25
  %v38 = vpack.c.b16 %v37, %v36
  %v47 = vunpack.c.l.b16 %v26
  %v48 = vunpack.c.l.b16 %v27
  %v49 = vunpack.c.l.b16 %v28
  %v50 = vunpack.c.l.b16 %v29
  %v51 = vunpack.c.l.b16 %v30
  %v52 = vunpack.c.l.b16 %v31
  %v53 = vunpack.c.l.b16 %v32
  %v54 = vunpack.c.l.b16 %v33
  %v55 = vpack.c.b16 %v48, %v47
  %v56 = vpack.c.b16 %v50, %v49
  %v57 = vpack.c.b16 %v52, %v51
  %v58 = vpack.c.b16 %v54, %v53
  %vm63 = vcmask 523264
  %v65 = vsel %vm63, %v38, 0
  %67 = vmatprep.subr.bf16.mxu0 0
  %68 = vmatpush1.bf16.msra.mxu0 0
  %69 = vmatprep.subr.bf16.mxu0 0
  %70 = vmatpush1.bf16.msra.mxu0 0
  %71 = vmatprep.subr.bf16.mxu0 0
  %72 = vmatpush1.bf16.msra.mxu0 0
  %73 = vmatprep.subr.bf16.mxu0 0
  %74 = vmatpush1.bf16.msra.mxu0 0
  %75 = vmatprep.subr.bf16.mxu0 0
  %76 = vmatpush1.bf16.msra.mxu0 %v58
  %77 = vmatprep.subr.bf16.mxu0 0
  %78 = vmatpush1.bf16.msra.mxu0 %v57
  %79 = vmatprep.subr.bf16.mxu0 0
  %80 = vmatpush1.bf16.msra.mxu0 %v56
  %81 = vmatprep.subr.bf16.mxu0 0
  %82 = vmatpush1.bf16.msra.mxu0 %v55
  %83 = vmatprep.subr.bf16.mxu0 0
  %84 = vmatpush2.bf16.msra.mxu0 0
  %85 = vmatprep.subr.bf16.mxu0 0
  %86 = vmatpush2.bf16.msra.mxu0 0
  %87 = vmatprep.subr.bf16.mxu0 0
  %88 = vmatpush2.bf16.msra.mxu0 0
  %89 = vmatprep.subr.bf16.mxu0 0
  %90 = vmatpush2.bf16.msra.mxu0 0
  %91 = vmatprep.subr.bf16.mxu0 0
  %92 = vmatpush2.bf16.msra.mxu0 0
  %93 = vmatprep.subr.bf16.mxu0 0
  %94 = vmatpush2.bf16.msra.mxu0 0
  %95 = vmatprep.subr.bf16.mxu0 0
  %96 = vmatpush2.bf16.msra.mxu0 0
  %97 = vmatprep.subr.bf16.mxu0 0
  %98 = vmatpush2.bf16.msra.mxu0 0
  %99 = vmatprep.mubr.bf16.mxu0 0
  %100 = vmatmul.mubr.bf16.gmra.mxu0 %v65
  %v101 = vpop.f32.mrf.mxu0
  %v102 = vadd.f32 0.0, %v101
  %v103 = vpop.f32.mrf.mxu0
  %v104 = vpop.f32.mrf.mxu0
  %v105 = vadd.f32 0.0, %v104
  %v106 = vpop.f32.mrf.mxu0
  %107 = vdwg.mxu0
  %v108 = vadd.f32 %v22, %v102
  %v109 = vadd.f32 %v23, %v105
  %vm110 = vcmask 261120
  %111 = vst.msk [vmem:[#allocation2] sm:$0xff] %vm110, %v108
  %112 = vst.msk [vmem:[#allocation2 + $0x8] sm:$0xff] %vm110, %v109
  // Predicated region
  $region18: #{_lambda_.63} parent=0 // pred_check
    %p113 = pneg %p15
  $region19: #{_lambda_.63} parent=0 // pred_check_branch
    %115 = sbr.rel (%p113) target = $region21
  $region20: #{_lambda_.63} parent=0 // pred_region
    %v116 = vld [vmem:[#allocation2] sm:$0xff]
    %v117 = vld [vmem:[#allocation2 + $0x8] sm:$0xff]
    %v118 = vld [vmem:[%s2] sm:$0x1]
    %v120 = vlaneseq
    %v121 = vshrl.u32 %v120, 7
    %v122 = vsub.s32 0, %v121
    %v123 = vrot.slane %v118, %v122
    %v125 = vadd.f32 %v116, %v123
    %v126 = vadd.f32 %v117, %v123
    %127 = vst.msk [vmem:[%s3] sm:$0xff] %vm110, %v125
    %128 = vst.msk [vmem:[%s3 + $0x8] sm:$0xff] %vm110, %v126
  $region21: #{_lambda_.63} parent=0 // pred_fallthru
    _
  // Predicated region
  $region22: #{_lambda_.63} parent=0 // pred_check
    _
  $region23: #{_lambda_.63} parent=0 // pred_check_branch
    %130 = sbr.rel (0) target = $region25
  $region24: #{_lambda_.63} parent=0 // pred_region
    _
  $region25: #{_lambda_.63} parent=0 // pred_fallthru
    _
  // Predicated region
  $region26: #{_lambda_.63} parent=0 // pred_check
    _
  $region27: #{_lambda_.63} parent=0 // pred_check_branch
    %132 = sbr.rel (0) target = $region29
  $region28: #{_lambda_.63} parent=0 // pred_region
    _
  $region29: #{_lambda_.63} parent=0 // pred_fallthru
    _

// kernel: _lambda_.77
$region0: #{_lambda_.77}
  #allocation0 [shape = 'u32[]', space=smem, size = 0x4, offset = 0x4, fixed_abs, tag = 'smem constant byte address 0x4 - core index']
  #allocation1 [shape = 'u32[144,128]{1,0:T(1,128)}', space=vmem, size = 0x12000, scoped, tag = 'internal scratch']
  #allocation2 [shape = 'f32[16,60]{1,0:T(8,128)}', space=vmem, size = 0x2000, scoped, tag = 'scratch operand']
  %s0 = inlined_call_operand.vmem [shape: bf16[16,32], index: 0, kind: input, shape index: {}]
  %s1 = inlined_call_operand.vmem [shape: bf16[32,60], index: 1, kind: input, shape index: {}]
  %s2 = inlined_call_operand.vmem [shape: f32[1,60], index: 2, kind: input, shape index: {}]
  %s3 = inlined_call_operand.hbm [shape: f32[16,60], index: 3, kind: output, shape index: {}]
  %s4 = sld [smem:[#allocation0]]
  $region30: #{_lambda_.77} parent=0
    _
  %s6 = ssub.s32 1, %s4
  %s7 = scalar_select 0, %s6, %s4
  $region1: #{_lambda_.77} parent=0
    #allocation3 [shape = 'u8[8192]{0}', space=vmem, size = 0x2000, scoped, tag = 'output window, operand 0, single buffered']
    #allocation4 [shape = 's32[1]{0}', space=sflag, size = 0x4, scoped, tag = 'scoped memory for _lambda_.77']
    %8 = vsyncpa [#allocation4], 0
    // Predicated region
    $region2: #{_lambda_.77} parent=1 // pred_check
      _
    $region3: #{_lambda_.77} parent=1 // pred_check_branch
      %10 = sbr.rel (0) target = $region5
    $region4: #{_lambda_.77} parent=1 // pred_region
      _
    $region5: #{_lambda_.77} parent=1 // pred_fallthru
      _
    // Predicated region
    $region6: #{_lambda_.77} parent=1 // pred_check
      _
    $region7: #{_lambda_.77} parent=1 // pred_check_branch
      %12 = sbr.rel (0) target = $region9
    $region8: #{_lambda_.77} parent=1 // pred_region
      _
    $region9: #{_lambda_.77} parent=1 // pred_fallthru
      _
    // Predicated region
    $region10: #{_lambda_.77} parent=1 // pred_check
      _
    $region11: #{_lambda_.77} parent=1 // pred_check_branch
      %14 = sbr.rel (0) target = $region13
    $region12: #{_lambda_.77} parent=1 // pred_region
      _
    $region13: #{_lambda_.77} parent=1 // pred_fallthru
      _
    %p16 = scmp.eq.s32.totalorder 0, 0
    // Predicated region
    $region14: #{_lambda_.77} parent=1 // pred_check
      %p17 = pneg %p16
    $region15: #{_lambda_.77} parent=1 // pred_check_branch
      %19 = sbr.rel (%p17) target = $region17
    $region16: #{_lambda_.77} parent=1 // pred_region
      %vm20 = vcmask 490496
      %21 = vst.msk [vmem:[#allocation2] sm:$0xff] %vm20, 0.0
      %22 = vst.msk [vmem:[#allocation2 + $0x8] sm:$0xff] %vm20, 0.0
    $region17: #{_lambda_.77} parent=1 // pred_fallthru
      _
    %v23 = vld [vmem:[#allocation2] sm:$0xff]
    %v24 = vld [vmem:[#allocation2 + $0x8] sm:$0xff]
    %v25 = vld [vmem:[%s0] sm:$0xf]
    %v26 = vld [vmem:[%s0 + $0x4] sm:$0xf]
    %v27 = vld [vmem:[%s1] sm:$0xf]
    %v28 = vld [vmem:[%s1 + $0x4] sm:$0xf]
    %v29 = vld [vmem:[%s1 + $0x8] sm:$0xf]
    %v30 = vld [vmem:[%s1 + $0xc] sm:$0xf]
    %v33 = vunpack.c.l.b16 %v25
    %v34 = vunpack.c.l.b16 %v26
    %v35 = vpack.c.b16 %v34, %v33
    %v40 = vunpack.c.l.b16 %v27
    %v41 = vunpack.c.l.b16 %v28
    %v42 = vunpack.c.l.b16 %v29
    %v43 = vunpack.c.l.b16 %v30
    %v44 = vpack.c.b16 %v41, %v40
    %v45 = vpack.c.b16 %v43, %v42
    %vm48 = vcmask 261120
    %v50 = vsel %vm48, %v35, 0
    %52 = vmatprep.subr.bf16.mxu0 0
    %53 = vmatpush1.bf16.msra.mxu0 0
    %54 = vmatprep.subr.bf16.mxu0 0
    %55 = vmatpush1.bf16.msra.mxu0 0
    %56 = vmatprep.subr.bf16.mxu0 0
    %57 = vmatpush1.bf16.msra.mxu0 0
    %58 = vmatprep.subr.bf16.mxu0 0
    %59 = vmatpush1.bf16.msra.mxu0 0
    %60 = vmatprep.subr.bf16.mxu0 0
    %61 = vmatpush1.bf16.msra.mxu0 0
    %62 = vmatprep.subr.bf16.mxu0 0
    %63 = vmatpush1.bf16.msra.mxu0 0
    %64 = vmatprep.subr.bf16.mxu0 0
    %65 = vmatpush1.bf16.msra.mxu0 %v45
    %66 = vmatprep.subr.bf16.mxu0 0
    %67 = vmatpush1.bf16.msra.mxu0 %v44
    %68 = vmatprep.subr.bf16.mxu0 0
    %69 = vmatpush2.bf16.msra.mxu0 0
    %70 = vmatprep.subr.bf16.mxu0 0
    %71 = vmatpush2.bf16.msra.mxu0 0
    %72 = vmatprep.subr.bf16.mxu0 0
    %73 = vmatpush2.bf16.msra.mxu0 0
    %74 = vmatprep.subr.bf16.mxu0 0
    %75 = vmatpush2.bf16.msra.mxu0 0
    %76 = vmatprep.subr.bf16.mxu0 0
    %77 = vmatpush2.bf16.msra.mxu0 0
    %78 = vmatprep.subr.bf16.mxu0 0
    %79 = vmatpush2.bf16.msra.mxu0 0
    %80 = vmatprep.subr.bf16.mxu0 0
    %81 = vmatpush2.bf16.msra.mxu0 0
    %82 = vmatprep.subr.bf16.mxu0 0
    %83 = vmatpush2.bf16.msra.mxu0 0
    %84 = vmatprep.mubr.bf16.mxu0 0
    %85 = vmatmul.mubr.bf16.gmra.mxu0 %v50
    %v86 = vpop.f32.mrf.mxu0
    %v87 = vadd.f32 0.0, %v86
    %v88 = vpop.f32.mrf.mxu0
    %v89 = vpop.f32.mrf.mxu0
    %v90 = vadd.f32 0.0, %v89
    %v91 = vpop.f32.mrf.mxu0
    %92 = vdwg.mxu0
    %v93 = vadd.f32 %v23, %v87
    %v94 = vadd.f32 %v24, %v90
    %vm95 = vcmask 490496
    %96 = vst.msk [vmem:[#allocation2] sm:$0xff] %vm95, %v93
    %97 = vst.msk [vmem:[#allocation2 + $0x8] sm:$0xff] %vm95, %v94
    // Predicated region
    $region18: #{_lambda_.77} parent=1 // pred_check
      %p98 = pneg %p16
    $region19: #{_lambda_.77} parent=1 // pred_check_branch
      %100 = sbr.rel (%p98) target = $region21
    $region20: #{_lambda_.77} parent=1 // pred_region
      %v101 = vld [vmem:[#allocation2] sm:$0xff]
      %v102 = vld [vmem:[#allocation2 + $0x8] sm:$0xff]
      %v103 = vld [vmem:[%s2] sm:$0x1]
      %v105 = vlaneseq
      %v106 = vshrl.u32 %v105, 7
      %v107 = vsub.s32 0, %v106
      %v108 = vrot.slane %v103, %v107
      %v110 = vadd.f32 %v101, %v108
      %v111 = vadd.f32 %v102, %v108
      %112 = vst.msk [vmem:[#allocation3] sm:$0xff] %vm95, %v110
      %113 = vst.msk [vmem:[#allocation3 + $0x8] sm:$0xff] %vm95, %v111
    $region21: #{_lambda_.77} parent=1 // pred_fallthru
      _
    // Predicated region
    $region22: #{_lambda_.77} parent=1 // pred_check
      _
    $region23: #{_lambda_.77} parent=1 // pred_check_branch
      %115 = sbr.rel (0) target = $region25
    $region24: #{_lambda_.77} parent=1 // pred_region
      %s117 = ssub.s32 256, 256
      %118 = vsyncadd [#allocation4], %s117
      %s119 = sshll.u32 [#allocation3], 4
      %s120 = int_to_ptr.vmem [resolvable:$true] %s119
      %125 = dma.vmem_to_hbm [thread:$0]  %s120, 256, %s3, [#allocation4], 128, 128, 8
    $region25: #{_lambda_.77} parent=1 // pred_fallthru
      _
    // Predicated region
    $region26: #{_lambda_.77} parent=1 // pred_check
      _
    $region27: #{_lambda_.77} parent=1 // pred_check_branch
      %127 = sbr.rel (0) target = $region29
    $region28: #{_lambda_.77} parent=1 // pred_region
      %128 = dma.done [#allocation4], 256
    $region29: #{_lambda_.77} parent=1 // pred_fallthru
      _
    %129 = vsyncpa [#allocation4], 1

// kernel: _lambda_.59
$region0: #{_lambda_.59}
  #allocation0 [shape = 'u32[]', space=smem, size = 0x4, offset = 0x4, fixed_abs, tag = 'smem constant byte address 0x4 - core index']
  #allocation1 [shape = 'u32[144,128]{1,0:T(1,128)}', space=vmem, size = 0x12000, scoped, tag = 'internal scratch']
  %s0 = inlined_call_operand.vmem [shape: bf16[2,8,32], index: 0, kind: input, shape index: {}]
  %s1 = inlined_call_operand.vmem [shape: bf16[2,10,32], index: 1, kind: input, shape index: {}]
  %s2 = inlined_call_operand.vmem [shape: bf16[2,10,32], index: 2, kind: input, shape index: {}]
  %s3 = inlined_call_operand.vmem [shape: bf16[2,8,32], index: 3, kind: output, shape index: {}]
  %s4 = sld [smem:[#allocation0]]
  $region45: #{_lambda_.59} parent=0
    _
  %s6 = ssub.s32 1, %s4
  %s7 = scalar_select 0, %s6, %s4
  loop: start=0, step=1, limit=4
  $region2: #{_lambda_.59} parent=0 // loop_pre_header
    _
  $region3: #{_lambda_.59} parent=0 // loop_header
    %s9 = sphi 0, %s13
    %p10 = scmp.ge.s32.totalorder %s9, 4
    %s19 = sphi 0, %s21
    %s22 = sphi 0, %s19
    %s23 = sphi 0, %s22
    %s39 = sphi 0, %s23
    %s45 = sphi 0, %s47
    %s48 = sphi 0, %s45
    %s49 = sphi 0, %s48
    %s65 = sphi 0, %s49
    %s71 = sphi 0, %s73
    %s74 = sphi 0, %s71
    %s75 = sphi 0, %s74
    %s91 = sphi 0, %s75
    %s97 = sphi 0, %s99
    %s100 = sphi 0, %s97
    %s101 = sphi 0, %s100
    %s117 = sphi 0, %s101
  $region4: #{_lambda_.59} parent=0 // loop_header_branch
    %12 = sbr.rel (%p10) target = $region8
  $region5: #{_lambda_.59} parent=0 // loop_body
    %s14 = ssub.s32 %s9, 1
    %s15 = ssub.s32 %s9, 2
    %s16 = sadd.s32 %s9, 1
    %s17 = ssub.s32 %s9, %s16
    %p18 = scmp.eq.s32.totalorder %s17, 0
    %s20 = sadd.s32 %s19, 1
    %s21 = scalar_select %p18, %s19, %s20
    %p24 = pneg %p18
    %p25 = scmp.eq.s32.totalorder %s9, 1
    %p26 = por %p24, %p25
    %p27 = scmp.ne.s32.totalorder %s19, %s22
    %p28 = scmp.eq.s32.totalorder %s9, 0
    %p29 = por %p27, %p28
    %p30 = scmp.ne.s32.totalorder %s19, %s22
    %p31 = scmp.eq.s32.totalorder %s14, 1
    %p32 = por %p30, %p31
    %p33 = scmp.ne.s32.totalorder %s22, %s23
    %p34 = scmp.eq.s32.totalorder %s14, 0
    %p35 = por %p33, %p34
    %p36 = scmp.ne.s32.totalorder %s22, %s23
    %p37 = scmp.eq.s32.totalorder %s15, 1
    %p38 = por %p36, %p37
    %p40 = scmp.ne.s32.totalorder %s23, %s39
    %p41 = scmp.eq.s32.totalorder %s15, 0
    %p42 = por %p40, %p41
    %s43 = ssub.s32 %s9, %s16
    %p44 = scmp.eq.s32.totalorder %s43, 0
    %s46 = sadd.s32 %s45, 1
    %s47 = scalar_select %p44, %s45, %s46
    %p50 = pneg %p44
    %p51 = scmp.eq.s32.totalorder %s9, 1
    %p52 = por %p50, %p51
    %p53 = scmp.ne.s32.totalorder %s45, %s48
    %p54 = scmp.eq.s32.totalorder %s9, 0
    %p55 = por %p53, %p54
    %p56 = scmp.ne.s32.totalorder %s45, %s48
    %p57 = scmp.eq.s32.totalorder %s14, 1
    %p58 = por %p56, %p57
    %p59 = scmp.ne.s32.totalorder %s48, %s49
    %p60 = scmp.eq.s32.totalorder %s14, 0
    %p61 = por %p59, %p60
    %p62 = scmp.ne.s32.totalorder %s48, %s49
    %p63 = scmp.eq.s32.totalorder %s15, 1
    %p64 = por %p62, %p63
    %p66 = scmp.ne.s32.totalorder %s49, %s65
    %p67 = scmp.eq.s32.totalorder %s15, 0
    %p68 = por %p66, %p67
    %s69 = ssub.s32 %s9, %s16
    %p70 = scmp.eq.s32.totalorder %s69, 0
    %s72 = sadd.s32 %s71, 1
    %s73 = scalar_select %p70, %s71, %s72
    %p76 = pneg %p70
    %p77 = scmp.eq.s32.totalorder %s9, 1
    %p78 = por %p76, %p77
    %p79 = scmp.ne.s32.totalorder %s71, %s74
    %p80 = scmp.eq.s32.totalorder %s9, 0
    %p81 = por %p79, %p80
    %p82 = scmp.ne.s32.totalorder %s71, %s74
    %p83 = scmp.eq.s32.totalorder %s14, 1
    %p84 = por %p82, %p83
    %p85 = scmp.ne.s32.totalorder %s74, %s75
    %p86 = scmp.eq.s32.totalorder %s14, 0
    %p87 = por %p85, %p86
    %p88 = scmp.ne.s32.totalorder %s74, %s75
    %p89 = scmp.eq.s32.totalorder %s15, 1
    %p90 = por %p88, %p89
    %p92 = scmp.ne.s32.totalorder %s75, %s91
    %p93 = scmp.eq.s32.totalorder %s15, 0
    %p94 = por %p92, %p93
    %s95 = ssub.s32 %s9, %s16
    %p96 = scmp.eq.s32.totalorder %s95, 0
    %s98 = sadd.s32 %s97, 1
    %s99 = scalar_select %p96, %s97, %s98
    %p102 = pneg %p96
    %p103 = scmp.eq.s32.totalorder %s9, 1
    %p104 = por %p102, %p103
    %p105 = scmp.ne.s32.totalorder %s97, %s100
    %p106 = scmp.eq.s32.totalorder %s9, 0
    %p107 = por %p105, %p106
    %p108 = scmp.ne.s32.totalorder %s97, %s100
    %p109 = scmp.eq.s32.totalorder %s14, 1
    %p110 = por %p108, %p109
    %p111 = scmp.ne.s32.totalorder %s100, %s101
    %p112 = scmp.eq.s32.totalorder %s14, 0
    %p113 = por %p111, %p112
    %p114 = scmp.ne.s32.totalorder %s100, %s101
    %p115 = scmp.eq.s32.totalorder %s15, 1
    %p116 = por %p114, %p115
    %p118 = scmp.ne.s32.totalorder %s101, %s117
    %p119 = scmp.eq.s32.totalorder %s15, 0
    %p120 = por %p118, %p119
    %p121 = scmp.le.s32.totalorder 1, %s9
    %p122 = scmp.lt.s32.totalorder %s9, 3
    %p123 = pnand %p121, %p122
    %p124 = pneg %p123
    // Predicated region
    $region9: #{_lambda_.59} parent=5 // pred_check
      _
    $region10: #{_lambda_.59} parent=5 // pred_check_branch
      %126 = sbr.rel (%p123) target = $region12
    $region11: #{_lambda_.59} parent=5 // pred_region
      %s127 = ssub.s32 %s9, 1
    $region12: #{_lambda_.59} parent=5 // pred_fallthru
      _
    %p128 = scmp.lt.s32.totalorder %s9, 2
    // Predicated region
    $region13: #{_lambda_.59} parent=5 // pred_check
      %p129 = pneg %p128
    $region14: #{_lambda_.59} parent=5 // pred_check_branch
      %131 = sbr.rel (%p129) target = $region16
    $region15: #{_lambda_.59} parent=5 // pred_region
      // Predicated region
      $region17: #{_lambda_.59} parent=15 // pred_check
        %p132 = pneg %p29
      $region18: #{_lambda_.59} parent=15 // pred_check_branch
        %134 = sbr.rel (%p132) target = $region20
      $region19: #{_lambda_.59} parent=15 // pred_region
        %p135 = scmp.lt.s32.totalorder %s9, 1
        %s136 = scalar_select %p135, %s9, 1
        %s137 = smul.addr %s136, 4
        %s138 = scalar_lea.vmem %s0, %s137
      $region20: #{_lambda_.59} parent=15 // pred_fallthru
        _
      // Predicated region
      $region21: #{_lambda_.59} parent=15 // pred_check
        %p139 = pneg %p55
      $region22: #{_lambda_.59} parent=15 // pred_check_branch
        %141 = sbr.rel (%p139) target = $region24
      $region23: #{_lambda_.59} parent=15 // pred_region
        %p142 = scmp.lt.s32.totalorder %s9, 1
        %s143 = scalar_select %p142, %s9, 1
        %s144 = smul.addr %s143, 2
        %s145 = smul.addr %s144, 4
        %s146 = scalar_lea.vmem %s1, %s145
      $region24: #{_lambda_.59} parent=15 // pred_fallthru
        _
      // Predicated region
      $region25: #{_lambda_.59} parent=15 // pred_check
        %p147 = pneg %p81
      $region26: #{_lambda_.59} parent=15 // pred_check_branch
        %149 = sbr.rel (%p147) target = $region28
      $region27: #{_lambda_.59} parent=15 // pred_region
        %p150 = scmp.lt.s32.totalorder %s9, 1
        %s151 = scalar_select %p150, %s9, 1
        %s152 = smul.addr %s151, 2
        %s153 = smul.addr %s152, 4
        %s154 = scalar_lea.vmem %s2, %s153
      $region28: #{_lambda_.59} parent=15 // pred_fallthru
        _
    $region16: #{_lambda_.59} parent=5 // pred_fallthru
      _
    %p155 = scmp.le.s32.totalorder 1, %s9
    %p156 = scmp.lt.s32.totalorder %s9, 3
    %p157 = pnand %p155, %p156
    %p158 = pneg %p157
    // Predicated region
    $region29: #{_lambda_.59} parent=5 // pred_check
      _
    $region30: #{_lambda_.59} parent=5 // pred_check_branch
      %160 = sbr.rel (%p157) target = $region32
    $region31: #{_lambda_.59} parent=5 // pred_region
      %s161 = ssub.s32 %s9, 1
      %p162 = scmp.lt.s32.totalorder %s14, 1
      %s163 = scalar_select %p162, %s14, 1
      %s164 = smul.addr %s163, 4
      %s165 = scalar_lea.vmem %s0, %s164
      %p166 = pneg %p35
      %p167 = pneg %p32
      %p168 = scmp.lt.s32.totalorder %s14, 1
      %s169 = scalar_select %p168, %s14, 1
      %s170 = smul.addr %s169, 2
      %s171 = smul.addr %s170, 4
      %s172 = scalar_lea.vmem %s1, %s171
      %p173 = pneg %p61
      %p174 = pneg %p58
      %p175 = scmp.lt.s32.totalorder %s14, 1
      %s176 = scalar_select %p175, %s14, 1
      %s177 = smul.addr %s176, 2
      %s178 = smul.addr %s177, 4
      %s179 = scalar_lea.vmem %s2, %s178
      %p180 = pneg %p87
      %p181 = pneg %p84
      %p182 = pneg %p113
      %p183 = pneg %p110
      %p184 = scmp.lt.s32.totalorder %s14, 1
      %s185 = scalar_select %p184, %s14, 1
      %s186 = smul.addr %s185, 4
      %s187 = scalar_lea.vmem %s3, %s186
      %p188 = scmp.lt.s32.totalorder %s14, 1
      %s189 = scalar_select %p188, %s14, 1
      %s190 = smul.addr %s189, 4
      %s191 = scalar_lea.vmem %s0, %s190
      %p192 = scmp.lt.s32.totalorder %s14, 1
      %s193 = scalar_select %p192, %s14, 1
      %s194 = smul.addr %s193, 2
      %s195 = smul.addr %s194, 4
      %s196 = scalar_lea.vmem %s1, %s195
      %p197 = scmp.lt.s32.totalorder %s14, 1
      %s198 = scalar_select %p197, %s14, 1
      %s199 = smul.addr %s198, 2
      %s200 = smul.addr %s199, 4
      %s201 = scalar_lea.vmem %s2, %s200
      %p202 = scmp.lt.s32.totalorder %s14, 1
      %s203 = scalar_select %p202, %s14, 1
      %s204 = smul.addr %s203, 4
      %s205 = scalar_lea.vmem %s3, %s204
      %v207 = vld [vmem:[%s191] sm:$0xf]
      %v208 = vld [vmem:[%s196] sm:$0xf]
      %v209 = vld [vmem:[%s196 + $0x4] sm:$0x1]
      %v210 = vld [vmem:[%s201] sm:$0xf]
      %v211 = vld [vmem:[%s201 + $0x4] sm:$0x1]
      %v214 = vunpack.c.l.b16 %v208
      %v215 = vunpack.c.l.b16 %v209
      %v216 = vpack.c.b16 %v215, %v214
      %vm217 = vcmask 64512
      %v219 = vsel %vm217, %v207, 0
      %v222 = vsel %vm217, %v216, 0
      %224 = vmatprep.subr.bf16.mxu0 0
      %225 = vmatpush1.bf16.xpose.msra.mxu0 0
      %226 = vmatprep.subr.bf16.mxu0 0
      %227 = vmatpush1.bf16.xpose.msra.mxu0 0
      %228 = vmatprep.subr.bf16.mxu0 0
      %229 = vmatpush1.bf16.xpose.msra.mxu0 0
      %230 = vmatprep.subr.bf16.mxu0 0
      %231 = vmatpush1.bf16.xpose.msra.mxu0 0
      %232 = vmatprep.subr.bf16.mxu0 0
      %233 = vmatpush1.bf16.xpose.msra.mxu0 0
      %234 = vmatprep.subr.bf16.mxu0 0
      %235 = vmatpush1.bf16.xpose.msra.mxu0 0
      %236 = vmatprep.subr.bf16.mxu0 0
      %237 = vmatpush1.bf16.xpose.msra.mxu0 0
      %238 = vmatprep.subr.bf16.mxu0 0
      %239 = vmatpush1.bf16.xpose.msra.mxu0 %v222
      %240 = vmatprep.subr.bf16.mxu0 0
      %241 = vmatpush2.bf16.xpose.msra.mxu0 0
      %242 = vmatprep.subr.bf16.mxu0 0
      %243 = vmatpush2.bf16.xpose.msra.mxu0 0
      %244 = vmatprep.subr.bf16.mxu0 0
      %245 = vmatpush2.bf16.xpose.msra.mxu0 0
      %246 = vmatprep.subr.bf16.mxu0 0
      %247 = vmatpush2.bf16.xpose.msra.mxu0 0
      %248 = vmatprep.subr.bf16.mxu0 0
      %249 = vmatpush2.bf16.xpose.msra.mxu0 0
      %250 = vmatprep.subr.bf16.mxu0 0
      %251 = vmatpush2.bf16.xpose.msra.mxu0 0
      %252 = vmatprep.subr.bf16.mxu0 0
      %253 = vmatpush2.bf16.xpose.msra.mxu0 0
      %254 = vmatprep.subr.bf16.mxu0 0
      %255 = vmatpush2.bf16.xpose.msra.mxu0 0
      %256 = vmatprep.mubr.bf16.mxu0 0
      %257 = vmatmul.mubr.bf16.gmra.mxu0 %v219
      %v258 = vpop.f32.mrf.mxu0
      %v259 = vadd.f32 0.0, %v258
      %v260 = vpop.f32.mrf.mxu0
      %v261 = vpop.f32.mrf.mxu0
      %v262 = vpop.f32.mrf.mxu0
      %263 = vdwg.mxu0
      %v264 = vmul.f32 %v259, 0.35355338
      %vm265 = vcmask 80896
      %v266 = vsel %vm265, %v264, -inf
      %267 = vmax.xlane.f32.xlu0 %v266
      %v268 = vpop.xlane.xlu0 %267
      %v269 = vsub.f32 %v264, %v268
      %v270 = vmul.f32 %v269, 1.442695
      %v271 = vpow.pop %v270
      %v272 = vsel %vm265, %v271, 0.0
      %273 = vadd.xlane.f32.xlu0 %v272
      %v274 = vpop.xlane.xlu0 %273
      %v275 = vrcp.pop %v274
      %v276 = vmul.f32 %v271, %v275
      %v277 = vpack.c.bf16 %v276, %v276
      %v280 = vunpack.c.l.b16 %v210
      %v281 = vunpack.c.l.b16 %v211
      %v282 = vpack.c.b16 %v281, %v280
      %v284 = vsel %vm265, %v277, 0
      %vm286 = vcmask 1044480
      %v288 = vsel %vm286, %v282, 0
      %290 = vmatprep.subr.bf16.mxu0 0
      %291 = vmatpush1.bf16.msra.mxu0 0
      %292 = vmatprep.subr.bf16.mxu0 0
      %293 = vmatpush1.bf16.msra.mxu0 0
      %294 = vmatprep.subr.bf16.mxu0 0
      %295 = vmatpush1.bf16.msra.mxu0 0
      %296 = vmatprep.subr.bf16.mxu0 0
      %297 = vmatpush1.bf16.msra.mxu0 0
      %298 = vmatprep.subr.bf16.mxu0 0
      %299 = vmatpush1.bf16.msra.mxu0 0
      %300 = vmatprep.subr.bf16.mxu0 0
      %301 = vmatpush1.bf16.msra.mxu0 0
      %302 = vmatprep.subr.bf16.mxu0 0
      %303 = vmatpush1.bf16.msra.mxu0 0
      %304 = vmatprep.subr.bf16.mxu0 0
      %305 = vmatpush1.bf16.msra.mxu0 %v288
      %306 = vmatprep.subr.bf16.mxu0 0
      %307 = vmatpush2.bf16.msra.mxu0 0
      %308 = vmatprep.subr.bf16.mxu0 0
      %309 = vmatpush2.bf16.msra.mxu0 0
      %310 = vmatprep.subr.bf16.mxu0 0
      %311 = vmatpush2.bf16.msra.mxu0 0
      %312 = vmatprep.subr.bf16.mxu0 0
      %313 = vmatpush2.bf16.msra.mxu0 0
      %314 = vmatprep.subr.bf16.mxu0 0
      %315 = vmatpush2.bf16.msra.mxu0 0
      %316 = vmatprep.subr.bf16.mxu0 0
      %317 = vmatpush2.bf16.msra.mxu0 0
      %318 = vmatprep.subr.bf16.mxu0 0
      %319 = vmatpush2.bf16.msra.mxu0 0
      %320 = vmatprep.subr.bf16.mxu0 0
      %321 = vmatpush2.bf16.msra.mxu0 0
      %322 = vmatprep.mubr.bf16.mxu0 0
      %323 = vmatmul.mubr.bf16.gmra.mxu0 %v284
      %v324 = vpop.f32.mrf.mxu0
      %v325 = vadd.f32 0.0, %v324
      %v326 = vpop.f32.mrf.mxu0
      %v327 = vpop.f32.mrf.mxu0
      %v328 = vpop.f32.mrf.mxu0
      %329 = vdwg.mxu0
      %v331 = vunpack.c.l.b16 %v207
      %v332 = vpack.c.b16 %v331, %v331
      %333 = vrot.lane.b32.xlu0 %v332, 120
      %v334 = vpop.permute.xlu0 %333
      %335 = vrot.lane.b32.xlu0 %v216, 120
      %v336 = vpop.permute.xlu0 %335
      %v338 = vsel %vm217, %v334, 0
      %v341 = vsel %vm217, %v336, 0
      %343 = vmatprep.subr.bf16.mxu0 0
      %344 = vmatpush1.bf16.xpose.msra.mxu0 0
      %345 = vmatprep.subr.bf16.mxu0 0
      %346 = vmatpush1.bf16.xpose.msra.mxu0 0
      %347 = vmatprep.subr.bf16.mxu0 0
      %348 = vmatpush1.bf16.xpose.msra.mxu0 0
      %349 = vmatprep.subr.bf16.mxu0 0
      %350 = vmatpush1.bf16.xpose.msra.mxu0 0
      %351 = vmatprep.subr.bf16.mxu0 0
      %352 = vmatpush1.bf16.xpose.msra.mxu0 0
      %353 = vmatprep.subr.bf16.mxu0 0
      %354 = vmatpush1.bf16.xpose.msra.mxu0 0
      %355 = vmatprep.subr.bf16.mxu0 0
      %356 = vmatpush1.bf16.xpose.msra.mxu0 0
      %357 = vmatprep.subr.bf16.mxu0 0
      %358 = vmatpush1.bf16.xpose.msra.mxu0 %v341
      %359 = vmatprep.subr.bf16.mxu0 0
      %360 = vmatpush2.bf16.xpose.msra.mxu0 0
      %361 = vmatprep.subr.bf16.mxu0 0
      %362 = vmatpush2.bf16.xpose.msra.mxu0 0
      %363 = vmatprep.subr.bf16.mxu0 0
      %364 = vmatpush2.bf16.xpose.msra.mxu0 0
      %365 = vmatprep.subr.bf16.mxu0 0
      %366 = vmatpush2.bf16.xpose.msra.mxu0 0
      %367 = vmatprep.subr.bf16.mxu0 0
      %368 = vmatpush2.bf16.xpose.msra.mxu0 0
      %369 = vmatprep.subr.bf16.mxu0 0
      %370 = vmatpush2.bf16.xpose.msra.mxu0 0
      %371 = vmatprep.subr.bf16.mxu0 0
      %372 = vmatpush2.bf16.xpose.msra.mxu0 0
      %373 = vmatprep.subr.bf16.mxu0 0
      %374 = vmatpush2.bf16.xpose.msra.mxu0 0
      %375 = vmatprep.mubr.bf16.mxu0 0
      %376 = vmatmul.mubr.bf16.gmra.mxu0 %v338
      %v377 = vpop.f32.mrf.mxu0
      %v378 = vadd.f32 0.0, %v377
      %v379 = vpop.f32.mrf.mxu0
      %v380 = vpop.f32.mrf.mxu0
      %v381 = vpop.f32.mrf.mxu0
      %382 = vdwg.mxu0
      %v383 = vmul.f32 %v378, 0.35355338
      %v384 = vsel %vm265, %v383, -inf
      %385 = vmax.xlane.f32.xlu0 %v384
      %v386 = vpop.xlane.xlu0 %385
      %v387 = vsub.f32 %v383, %v386
      %v388 = vmul.f32 %v387, 1.442695
      %v389 = vpow.pop %v388
      %v390 = vsel %vm265, %v389, 0.0
      %391 = vadd.xlane.f32.xlu0 %v390
      %v392 = vpop.xlane.xlu0 %391
      %v393 = vrcp.pop %v392
      %v394 = vmul.f32 %v389, %v393
      %v395 = vpack.c.bf16 %v394, %v394
      %396 = vrot.lane.b32.xlu0 %v282, 120
      %v397 = vpop.permute.xlu0 %396
      %v399 = vsel %vm265, %v395, 0
      %v402 = vsel %vm286, %v397, 0
      %404 = vmatprep.subr.bf16.mxu0 0
      %405 = vmatpush1.bf16.msra.mxu0 0
      %406 = vmatprep.subr.bf16.mxu0 0
      %407 = vmatpush1.bf16.msra.mxu0 0
      %408 = vmatprep.subr.bf16.mxu0 0
      %409 = vmatpush1.bf16.msra.mxu0 0
      %410 = vmatprep.subr.bf16.mxu0 0
      %411 = vmatpush1.bf16.msra.mxu0 0
      %412 = vmatprep.subr.bf16.mxu0 0
      %413 = vmatpush1.bf16.msra.mxu0 0
      %414 = vmatprep.subr.bf16.mxu0 0
      %415 = vmatpush1.bf16.msra.mxu0 0
      %416 = vmatprep.subr.bf16.mxu0 0
      %417 = vmatpush1.bf16.msra.mxu0 0
      %418 = vmatprep.subr.bf16.mxu0 0
      %419 = vmatpush1.bf16.msra.mxu0 %v402
      %420 = vmatprep.subr.bf16.mxu0 0
      %421 = vmatpush2.bf16.msra.mxu0 0
      %422 = vmatprep.subr.bf16.mxu0 0
      %423 = vmatpush2.bf16.msra.mxu0 0
      %424 = vmatprep.subr.bf16.mxu0 0
      %425 = vmatpush2.bf16.msra.mxu0 0
      %426 = vmatprep.subr.bf16.mxu0 0
      %427 = vmatpush2.bf16.msra.mxu0 0
      %428 = vmatprep.subr.bf16.mxu0 0
      %429 = vmatpush2.bf16.msra.mxu0 0
      %430 = vmatprep.subr.bf16.mxu0 0
      %431 = vmatpush2.bf16.msra.mxu0 0
      %432 = vmatprep.subr.bf16.mxu0 0
      %433 = vmatpush2.bf16.msra.mxu0 0
      %434 = vmatprep.subr.bf16.mxu0 0
      %435 = vmatpush2.bf16.msra.mxu0 0
      %436 = vmatprep.mubr.bf16.mxu0 0
      %437 = vmatmul.mubr.bf16.gmra.mxu0 %v399
      %v438 = vpop.f32.mrf.mxu0
      %v439 = vadd.f32 0.0, %v438
      %v440 = vpop.f32.mrf.mxu0
      %v441 = vpop.f32.mrf.mxu0
      %v442 = vpop.f32.mrf.mxu0
      %443 = vdwg.mxu0
      %444 = vrot.lane.b32.xlu0 %v332, 112
      %v445 = vpop.permute.xlu0 %444
      %446 = vrot.lane.b32.xlu0 %v216, 112
      %v447 = vpop.permute.xlu0 %446
      %v449 = vsel %vm217, %v445, 0
      %v452 = vsel %vm217, %v447, 0
      %454 = vmatprep.subr.bf16.mxu0 0
      %455 = vmatpush1.bf16.xpose.msra.mxu0 0
      %456 = vmatprep.subr.bf16.mxu0 0
      %457 = vmatpush1.bf16.xpose.msra.mxu0 0
      %458 = vmatprep.subr.bf16.mxu0 0
      %459 = vmatpush1.bf16.xpose.msra.mxu0 0
      %460 = vmatprep.subr.bf16.mxu0 0
      %461 = vmatpush1.bf16.xpose.msra.mxu0 0
      %462 = vmatprep.subr.bf16.mxu0 0
      %463 = vmatpush1.bf16.xpose.msra.mxu0 0
      %464 = vmatprep.subr.bf16.mxu0 0
      %465 = vmatpush1.bf16.xpose.msra.mxu0 0
      %466 = vmatprep.subr.bf16.mxu0 0
      %467 = vmatpush1.bf16.xpose.msra.mxu0 0
      %468 = vmatprep.subr.bf16.mxu0 0
      %469 = vmatpush1.bf16.xpose.msra.mxu0 %v452
      %470 = vmatprep.subr.bf16.mxu0 0
      %471 = vmatpush2.bf16.xpose.msra.mxu0 0
      %472 = vmatprep.subr.bf16.mxu0 0
      %473 = vmatpush2.bf16.xpose.msra.mxu0 0
      %474 = vmatprep.subr.bf16.mxu0 0
      %475 = vmatpush2.bf16.xpose.msra.mxu0 0
      %476 = vmatprep.subr.bf16.mxu0 0
      %477 = vmatpush2.bf16.xpose.msra.mxu0 0
      %478 = vmatprep.subr.bf16.mxu0 0
      %479 = vmatpush2.bf16.xpose.msra.mxu0 0
      %480 = vmatprep.subr.bf16.mxu0 0
      %481 = vmatpush2.bf16.xpose.msra.mxu0 0
      %482 = vmatprep.subr.bf16.mxu0 0
      %483 = vmatpush2.bf16.xpose.msra.mxu0 0
      %484 = vmatprep.subr.bf16.mxu0 0
      %485 = vmatpush2.bf16.xpose.msra.mxu0 0
      %486 = vmatprep.mubr.bf16.mxu0 0
      %487 = vmatmul.mubr.bf16.gmra.mxu0 %v449
      %v488 = vpop.f32.mrf.mxu0
      %v489 = vadd.f32 0.0, %v488
      %v490 = vpop.f32.mrf.mxu0
      %v491 = vpop.f32.mrf.mxu0
      %v492 = vpop.f32.mrf.mxu0
      %493 = vdwg.mxu0
      %v494 = vmul.f32 %v489, 0.35355338
      %v495 = vsel %vm265, %v494, -inf
      %496 = vmax.xlane.f32.xlu0 %v495
      %v497 = vpop.xlane.xlu0 %496
      %v498 = vsub.f32 %v494, %v497
      %v499 = vmul.f32 %v498, 1.442695
      %v500 = vpow.pop %v499
      %v501 = vsel %vm265, %v500, 0.0
      %502 = vadd.xlane.f32.xlu0 %v501
      %v503 = vpop.xlane.xlu0 %502
      %v504 = vrcp.pop %v503
      %v505 = vmul.f32 %v500, %v504
      %v506 = vpack.c.bf16 %v505, %v505
      %507 = vrot.lane.b32.xlu0 %v282, 112
      %v508 = vpop.permute.xlu0 %507
      %v510 = vsel %vm265, %v506, 0
      %v513 = vsel %vm286, %v508, 0
      %515 = vmatprep.subr.bf16.mxu0 0
      %516 = vmatpush1.bf16.msra.mxu0 0
      %517 = vmatprep.subr.bf16.mxu0 0
      %518 = vmatpush1.bf16.msra.mxu0 0
      %519 = vmatprep.subr.bf16.mxu0 0
      %520 = vmatpush1.bf16.msra.mxu0 0
      %521 = vmatprep.subr.bf16.mxu0 0
      %522 = vmatpush1.bf16.msra.mxu0 0
      %523 = vmatprep.subr.bf16.mxu0 0
      %524 = vmatpush1.bf16.msra.mxu0 0
      %525 = vmatprep.subr.bf16.mxu0 0
      %526 = vmatpush1.bf16.msra.mxu0 0
      %527 = vmatprep.subr.bf16.mxu0 0
      %528 = vmatpush1.bf16.msra.mxu0 0
      %529 = vmatprep.subr.bf16.mxu0 0
      %530 = vmatpush1.bf16.msra.mxu0 %v513
      %531 = vmatprep.subr.bf16.mxu0 0
      %532 = vmatpush2.bf16.msra.mxu0 0
      %533 = vmatprep.subr.bf16.mxu0 0
      %534 = vmatpush2.bf16.msra.mxu0 0
      %535 = vmatprep.subr.bf16.mxu0 0
      %536 = vmatpush2.bf16.msra.mxu0 0
      %537 = vmatprep.subr.bf16.mxu0 0
      %538 = vmatpush2.bf16.msra.mxu0 0
      %539 = vmatprep.subr.bf16.mxu0 0
      %540 = vmatpush2.bf16.msra.mxu0 0
      %541 = vmatprep.subr.bf16.mxu0 0
      %542 = vmatpush2.bf16.msra.mxu0 0
      %543 = vmatprep.subr.bf16.mxu0 0
      %544 = vmatpush2.bf16.msra.mxu0 0
      %545 = vmatprep.subr.bf16.mxu0 0
      %546 = vmatpush2.bf16.msra.mxu0 0
      %547 = vmatprep.mubr.bf16.mxu0 0
      %548 = vmatmul.mubr.bf16.gmra.mxu0 %v510
      %v549 = vpop.f32.mrf.mxu0
      %v550 = vadd.f32 0.0, %v549
      %v551 = vpop.f32.mrf.mxu0
      %v552 = vpop.f32.mrf.mxu0
      %v553 = vpop.f32.mrf.mxu0
      %554 = vdwg.mxu0
      %555 = vrot.lane.b32.xlu0 %v332, 104
      %v556 = vpop.permute.xlu0 %555
      %557 = vrot.lane.b32.xlu0 %v216, 104
      %v558 = vpop.permute.xlu0 %557
      %v560 = vsel %vm217, %v556, 0
      %v563 = vsel %vm217, %v558, 0
      %565 = vmatprep.subr.bf16.mxu0 0
      %566 = vmatpush1.bf16.xpose.msra.mxu0 0
      %567 = vmatprep.subr.bf16.mxu0 0
      %568 = vmatpush1.bf16.xpose.msra.mxu0 0
      %569 = vmatprep.subr.bf16.mxu0 0
      %570 = vmatpush1.bf16.xpose.msra.mxu0 0
      %571 = vmatprep.subr.bf16.mxu0 0
      %572 = vmatpush1.bf16.xpose.msra.mxu0 0
      %573 = vmatprep.subr.bf16.mxu0 0
      %574 = vmatpush1.bf16.xpose.msra.mxu0 0
      %575 = vmatprep.subr.bf16.mxu0 0
      %576 = vmatpush1.bf16.xpose.msra.mxu0 0
      %577 = vmatprep.subr.bf16.mxu0 0
      %578 = vmatpush1.bf16.xpose.msra.mxu0 0
      %579 = vmatprep.subr.bf16.mxu0 0
      %580 = vmatpush1.bf16.xpose.msra.mxu0 %v563
      %581 = vmatprep.subr.bf16.mxu0 0
      %582 = vmatpush2.bf16.xpose.msra.mxu0 0
      %583 = vmatprep.subr.bf16.mxu0 0
      %584 = vmatpush2.bf16.xpose.msra.mxu0 0
      %585 = vmatprep.subr.bf16.mxu0 0
      %586 = vmatpush2.bf16.xpose.msra.mxu0 0
      %587 = vmatprep.subr.bf16.mxu0 0
      %588 = vmatpush2.bf16.xpose.msra.mxu0 0
      %589 = vmatprep.subr.bf16.mxu0 0
      %590 = vmatpush2.bf16.xpose.msra.mxu0 0
      %591 = vmatprep.subr.bf16.mxu0 0
      %592 = vmatpush2.bf16.xpose.msra.mxu0 0
      %593 = vmatprep.subr.bf16.mxu0 0
      %594 = vmatpush2.bf16.xpose.msra.mxu0 0
      %595 = vmatprep.subr.bf16.mxu0 0
      %596 = vmatpush2.bf16.xpose.msra.mxu0 0
      %597 = vmatprep.mubr.bf16.mxu0 0
      %598 = vmatmul.mubr.bf16.gmra.mxu0 %v560
      %v599 = vpop.f32.mrf.mxu0
      %v600 = vadd.f32 0.0, %v599
      %v601 = vpop.f32.mrf.mxu0
      %v602 = vpop.f32.mrf.mxu0
      %v603 = vpop.f32.mrf.mxu0
      %604 = vdwg.mxu0
      %v605 = vmul.f32 %v600, 0.35355338
      %v606 = vsel %vm265, %v605, -inf
      %607 = vmax.xlane.f32.xlu0 %v606
      %v608 = vpop.xlane.xlu0 %607
      %v609 = vsub.f32 %v605, %v608
      %v610 = vmul.f32 %v609, 1.442695
      %v611 = vpow.pop %v610
      %v612 = vsel %vm265, %v611, 0.0
      %613 = vadd.xlane.f32.xlu0 %v612
      %v614 = vpop.xlane.xlu0 %613
      %v615 = vrcp.pop %v614
      %v616 = vmul.f32 %v611, %v615
      %v617 = vpack.c.bf16 %v616, %v616
      %618 = vrot.lane.b32.xlu0 %v282, 104
      %v619 = vpop.permute.xlu0 %618
      %v621 = vsel %vm265, %v617, 0
      %v624 = vsel %vm286, %v619, 0
      %626 = vmatprep.subr.bf16.mxu0 0
      %627 = vmatpush1.bf16.msra.mxu0 0
      %628 = vmatprep.subr.bf16.mxu0 0
      %629 = vmatpush1.bf16.msra.mxu0 0
      %630 = vmatprep.subr.bf16.mxu0 0
      %631 = vmatpush1.bf16.msra.mxu0 0
      %632 = vmatprep.subr.bf16.mxu0 0
      %633 = vmatpush1.bf16.msra.mxu0 0
      %634 = vmatprep.subr.bf16.mxu0 0
      %635 = vmatpush1.bf16.msra.mxu0 0
      %636 = vmatprep.subr.bf16.mxu0 0
      %637 = vmatpush1.bf16.msra.mxu0 0
      %638 = vmatprep.subr.bf16.mxu0 0
      %639 = vmatpush1.bf16.msra.mxu0 0
      %640 = vmatprep.subr.bf16.mxu0 0
      %641 = vmatpush1.bf16.msra.mxu0 %v624
      %642 = vmatprep.subr.bf16.mxu0 0
      %643 = vmatpush2.bf16.msra.mxu0 0
      %644 = vmatprep.subr.bf16.mxu0 0
      %645 = vmatpush2.bf16.msra.mxu0 0
      %646 = vmatprep.subr.bf16.mxu0 0
      %647 = vmatpush2.bf16.msra.mxu0 0
      %648 = vmatprep.subr.bf16.mxu0 0
      %649 = vmatpush2.bf16.msra.mxu0 0
      %650 = vmatprep.subr.bf16.mxu0 0
      %651 = vmatpush2.bf16.msra.mxu0 0
      %652 = vmatprep.subr.bf16.mxu0 0
      %653 = vmatpush2.bf16.msra.mxu0 0
      %654 = vmatprep.subr.bf16.mxu0 0
      %655 = vmatpush2.bf16.msra.mxu0 0
      %656 = vmatprep.subr.bf16.mxu0 0
      %657 = vmatpush2.bf16.msra.mxu0 0
      %658 = vmatprep.mubr.bf16.mxu0 0
      %659 = vmatmul.mubr.bf16.gmra.mxu0 %v621
      %v660 = vpop.f32.mrf.mxu0
      %v661 = vadd.f32 0.0, %v660
      %v662 = vpop.f32.mrf.mxu0
      %v663 = vpop.f32.mrf.mxu0
      %v664 = vpop.f32.mrf.mxu0
      %665 = vdwg.mxu0
      %667 = vrot.lane.b32.xlu0 %v439, 8
      %v668 = vpop.permute.xlu0 %667
      %671 = vrot.lane.b32.xlu0 %v550, 16
      %v672 = vpop.permute.xlu0 %671
      %675 = vrot.lane.b32.xlu0 %v661, 24
      %v676 = vpop.permute.xlu0 %675
      %v678 = vsel %vm217, %v325, %v668
      %vm679 = vcmask 130048
      %v680 = vsel %vm679, %v678, %v672
      %vm681 = vcmask 195584
      %v682 = vsel %vm681, %v680, %v676
      %v683 = vpack.c.bf16 %v682, %v682
      %vm684 = vcmask 257024
      %685 = vst.msk [vmem:[%s205] sm:$0xf] %vm684, %v683
      %p686 = scmp.lt.s32.totalorder %s14, 1
      %s687 = scalar_select %p686, %s14, 1
      %s688 = smul.addr %s687, 4
      %s689 = scalar_lea.vmem %s3, %s688
      // Predicated region
      $region33: #{_lambda_.59} parent=31 // pred_check
        %p690 = pneg %p110
      $region34: #{_lambda_.59} parent=31 // pred_check_branch
        %692 = sbr.rel (%p690) target = $region36
      $region35: #{_lambda_.59} parent=31 // pred_region
        _
      $region36: #{_lambda_.59} parent=31 // pred_fallthru
        _
    $region32: #{_lambda_.59} parent=5 // pred_fallthru
      _
    %p693 = scmp.le.s32.totalorder 2, %s9
    // Predicated region
    $region37: #{_lambda_.59} parent=5 // pred_check
      %p694 = pneg %p693
    $region38: #{_lambda_.59} parent=5 // pred_check_branch
      %696 = sbr.rel (%p694) target = $region40
    $region39: #{_lambda_.59} parent=5 // pred_region
      %s697 = ssub.s32 %s9, 2
      // Predicated region
      $region41: #{_lambda_.59} parent=39 // pred_check
        %p698 = pneg %p116
      $region42: #{_lambda_.59} parent=39 // pred_check_branch
        %700 = sbr.rel (%p698) target = $region44
      $region43: #{_lambda_.59} parent=39 // pred_region
        %p701 = scmp.lt.s32.totalorder %s15, 1
        %s702 = scalar_select %p701, %s15, 1
        %s703 = smul.addr %s702, 4
        %s704 = scalar_lea.vmem %s3, %s703
      $region44: #{_lambda_.59} parent=39 // pred_fallthru
        _
    $region40: #{_lambda_.59} parent=5 // pred_fallthru
      _
  $region6: #{_lambda_.59} parent=0 // loop_footer
    %s13 = sadd.s32 1, %s9
  $region7: #{_lambda_.59} parent=0 // loop_footer_branch
    %8 = sbr.rel target = $region3
  $region8: #{_lambda_.59} parent=0 // loop_exit
    _

// kernel: _lambda_.62
$region0: #{_lambda_.62}
  #allocation0 [shape = 'u32[]', space=smem, size = 0x4, offset = 0x4, fixed_abs, tag = 'smem constant byte address 0x4 - core index']
  #allocation1 [shape = 'u32[144,128]{1,0:T(1,128)}', space=vmem, size = 0x12000, scoped, tag = 'internal scratch']
  #allocation2 [shape = 'f32[16,64]{1,0:T(8,128)}', space=vmem, size = 0x2000, scoped, tag = 'scratch operand']
  %s0 = inlined_call_operand.vmem [shape: bf16[16,32], index: 0, kind: input, shape index: {}]
  %s1 = inlined_call_operand.vmem [shape: bf16[32,64], index: 1, kind: input, shape index: {}]
  %s2 = inlined_call_operand.vmem [shape: f32[1,64], index: 2, kind: input, shape index: {}]
  %s3 = inlined_call_operand.vmem [shape: bf16[16,64], index: 3, kind: output, shape index: {}]
  %s4 = sld [smem:[#allocation0]]
  $region30: #{_lambda_.62} parent=0
    _
  %s6 = ssub.s32 1, %s4
  %s7 = scalar_select 0, %s6, %s4
  // Predicated region
  $region2: #{_lambda_.62} parent=0 // pred_check
    _
  $region3: #{_lambda_.62} parent=0 // pred_check_branch
    %9 = sbr.rel (0) target = $region5
  $region4: #{_lambda_.62} parent=0 // pred_region
    _
  $region5: #{_lambda_.62} parent=0 // pred_fallthru
    _
  // Predicated region
  $region6: #{_lambda_.62} parent=0 // pred_check
    _
  $region7: #{_lambda_.62} parent=0 // pred_check_branch
    %11 = sbr.rel (0) target = $region9
  $region8: #{_lambda_.62} parent=0 // pred_region
    _
  $region9: #{_lambda_.62} parent=0 // pred_fallthru
    _
  // Predicated region
  $region10: #{_lambda_.62} parent=0 // pred_check
    _
  $region11: #{_lambda_.62} parent=0 // pred_check_branch
    %13 = sbr.rel (0) target = $region13
  $region12: #{_lambda_.62} parent=0 // pred_region
    _
  $region13: #{_lambda_.62} parent=0 // pred_fallthru
    _
  %p15 = scmp.eq.s32.totalorder 0, 0
  // Predicated region
  $region14: #{_lambda_.62} parent=0 // pred_check
    %p16 = pneg %p15
  $region15: #{_lambda_.62} parent=0 // pred_check_branch
    %18 = sbr.rel (%p16) target = $region17
  $region16: #{_lambda_.62} parent=0 // pred_region
    %vm19 = vcmask 523264
    %20 = vst.msk [vmem:[#allocation2] sm:$0xff] %vm19, 0.0
    %21 = vst.msk [vmem:[#allocation2 + $0x8] sm:$0xff] %vm19, 0.0
  $region17: #{_lambda_.62} parent=0 // pred_fallthru
    _
  %v22 = vld [vmem:[#allocation2] sm:$0xff]
  %v23 = vld [vmem:[#allocation2 + $0x8] sm:$0xff]
  %v24 = vld [vmem:[%s0] sm:$0xf]
  %v25 = vld [vmem:[%s0 + $0x4] sm:$0xf]
  %v26 = vld [vmem:[%s1] sm:$0xf]
  %v27 = vld [vmem:[%s1 + $0x4] sm:$0xf]
  %v28 = vld [vmem:[%s1 + $0x8] sm:$0xf]
  %v29 = vld [vmem:[%s1 + $0xc] sm:$0xf]
  %v32 = vunpack.c.l.b16 %v24
  %v33 = vunpack.c.l.b16 %v25
  %v34 = vpack.c.b16 %v33, %v32
  %v39 = vunpack.c.l.b16 %v26
  %v40 = vunpack.c.l.b16 %v27
  %v41 = vunpack.c.l.b16 %v28
  %v42 = vunpack.c.l.b16 %v29
  %v43 = vpack.c.b16 %v40, %v39
  %v44 = vpack.c.b16 %v42, %v41
  %vm47 = vcmask 261120
  %v49 = vsel %vm47, %v34, 0
  %51 = vmatprep.subr.bf16.mxu0 0
  %52 = vmatpush1.bf16.msra.mxu0 0
  %53 = vmatprep.subr.bf16.mxu0 0
  %54 = vmatpush1.bf16.msra.mxu0 0
  %55 = vmatprep.subr.bf16.mxu0 0
  %56 = vmatpush1.bf16.msra.mxu0 0
  %57 = vmatprep.subr.bf16.mxu0 0
  %58 = vmatpush1.bf16.msra.mxu0 0
  %59 = vmatprep.subr.bf16.mxu0 0
  %60 = vmatpush1.bf16.msra.mxu0 0
  %61 = vmatprep.subr.bf16.mxu0 0
  %62 = vmatpush1.bf16.msra.mxu0 0
  %63 = vmatprep.subr.bf16.mxu0 0
  %64 = vmatpush1.bf16.msra.mxu0 %v44
  %65 = vmatprep.subr.bf16.mxu0 0
  %66 = vmatpush1.bf16.msra.mxu0 %v43
  %67 = vmatprep.subr.bf16.mxu0 0
  %68 = vmatpush2.bf16.msra.mxu0 0
  %69 = vmatprep.subr.bf16.mxu0 0
  %70 = vmatpush2.bf16.msra.mxu0 0
  %71 = vmatprep.subr.bf16.mxu0 0
  %72 = vmatpush2.bf16.msra.mxu0 0
  %73 = vmatprep.subr.bf16.mxu0 0
  %74 = vmatpush2.bf16.msra.mxu0 0
  %75 = vmatprep.subr.bf16.mxu0 0
  %76 = vmatpush2.bf16.msra.mxu0 0
  %77 = vmatprep.subr.bf16.mxu0 0
  %78 = vmatpush2.bf16.msra.mxu0 0
  %79 = vmatprep.subr.bf16.mxu0 0
  %80 = vmatpush2.bf16.msra.mxu0 0
  %81 = vmatprep.subr.bf16.mxu0 0
  %82 = vmatpush2.bf16.msra.mxu0 0
  %83 = vmatprep.mubr.bf16.mxu0 0
  %84 = vmatmul.mubr.bf16.gmra.mxu0 %v49
  %v85 = vpop.f32.mrf.mxu0
  %v86 = vadd.f32 0.0, %v85
  %v87 = vpop.f32.mrf.mxu0
  %v88 = vpop.f32.mrf.mxu0
  %v89 = vadd.f32 0.0, %v88
  %v90 = vpop.f32.mrf.mxu0
  %91 = vdwg.mxu0
  %v92 = vadd.f32 %v22, %v86
  %v93 = vadd.f32 %v23, %v89
  %vm94 = vcmask 523264
  %95 = vst.msk [vmem:[#allocation2] sm:$0xff] %vm94, %v92
  %96 = vst.msk [vmem:[#allocation2 + $0x8] sm:$0xff] %vm94, %v93
  // Predicated region
  $region18: #{_lambda_.62} parent=0 // pred_check
    %p97 = pneg %p15
  $region19: #{_lambda_.62} parent=0 // pred_check_branch
    %99 = sbr.rel (%p97) target = $region21
  $region20: #{_lambda_.62} parent=0 // pred_region
    %v100 = vld [vmem:[#allocation2] sm:$0xff]
    %v101 = vld [vmem:[#allocation2 + $0x8] sm:$0xff]
    %v102 = vld [vmem:[%s2] sm:$0x1]
    %v104 = vlaneseq
    %v105 = vshrl.u32 %v104, 7
    %v106 = vsub.s32 0, %v105
    %v107 = vrot.slane %v102, %v106
    %v109 = vadd.f32 %v100, %v107
    %v110 = vadd.f32 %v101, %v107
    %v111 = vmax.f32 %v109, 0.0
    %v112 = vmax.f32 %v110, 0.0
    %v113 = vpack.c.bf16 %v112, %v111
    %v115 = vunpack.c.l.b16 %v113
    %v116 = vunpack.c.h.b16 %v113
    %v117 = vpack.c.b16 %v115, %v115
    %v118 = vpack.c.b16 %v116, %v116
    %vm121 = vcmask 519168
    %122 = vst.msk [vmem:[%s3] sm:$0xf] %vm121, %v117
    %123 = vst.msk [vmem:[%s3 + $0x4] sm:$0xf] %vm121, %v118
  $region21: #{_lambda_.62} parent=0 // pred_fallthru
    _
  // Predicated region
  $region22: #{_lambda_.62} parent=0 // pred_check
    _
  $region23: #{_lambda_.62} parent=0 // pred_check_branch
    %125 = sbr.rel (0) target = $region25
  $region24: #{_lambda_.62} parent=0 // pred_region
    _
  $region25: #{_lambda_.62} parent=0 // pred_fallthru
    _
  // Predicated region
  $region26: #{_lambda_.62} parent=0 // pred_check
    _
  $region27: #{_lambda_.62} parent=0 // pred_check_branch
    %127 = sbr.rel (0) target = $region29
  $region28: #{_lambda_.62} parent=0 // pred_region
    _
  $region29: #{_lambda_.62} parent=0 // pred_fallthru
    _

</llo_original>
